<compile_context>
chip_gen: v7x
topology: tpu7x:2x2x1
jax: 0.10.0
libtpu: 0.0.40
codegen_flags: <defaults>
</compile_context>

<pallas_src>
import math

import numpy as np
import jax
import jax.numpy as jnp
from jax.experimental import pallas as pl
from jax.experimental.pallas import tpu as pltpu


def _conv_out(w, k, s):
    return (w - k) // s + 1


# ---------------------------------------------------------------------------
# Fused kernel:  conv1(GEMM) -> conv2(implicit im2col) -> conv3 -> fc, one image
# per grid step.  Everything is f32; at these sizes the kernel is launch/DMA
# bound, not MXU bound, and f32 avoids bf16 sublane-packing relayouts on the
# tiny odd-shaped strided gathers.
# ---------------------------------------------------------------------------
def _build_fused_kernel(Ho1, Wo1, Ho2, Wo2, Ho3, Wo3):
    C1, C2, C3 = 32, 64, 64
    K2, S2 = 4, 2
    K3, S3 = 3, 1

    def kernel(p_ref, w1_ref, b1_ref, w2_ref, b2_ref, w3_ref, b3_ref,
               fcw_ref, fcb_ref, o_ref, h1_ref, h2_ref):
        # ---- conv1: pre-built patches (M1, 256) @ (256, 32) -- one MXU GEMM.
        h1 = jnp.dot(p_ref[0], w1_ref[...], preferred_element_type=jnp.float32)
        h1_ref[...] = jnp.maximum(h1 + b1_ref[...], 0.0)        # rows = (oh1, ow1)

        # ---- conv2 (k=4, s=2): implicit im2col via strided row reads of h1.
        b2 = b2_ref[...]
        for oh2 in range(Ho2):
            acc = jnp.zeros((Wo2, C2), jnp.float32)
            for kh in range(K2):
                row0 = (S2 * oh2 + kh) * Wo1
                for kw in range(K2):
                    taps = h1_ref[pl.ds(row0 + kw, Wo2, stride=S2), :]   # (Wo2, C1)
                    t = kh * K2 + kw
                    acc = acc + jnp.dot(taps, w2_ref[t * C1:(t + 1) * C1, :],
                                        preferred_element_type=jnp.float32)
            h2_ref[oh2 * Wo2:(oh2 + 1) * Wo2, :] = jnp.maximum(acc + b2, 0.0)

        # ---- conv3 (k=3, s=1) + fc, fused; fc accumulates straight from conv3.
        b3 = b3_ref[...]
        fc_acc = fcb_ref[...]                                            # (1, 512)
        for oh3 in range(Ho3):
            acc = jnp.zeros((Wo3, C3), jnp.float32)
            for kh in range(K3):
                row0 = (S3 * oh3 + kh) * Wo2
                for kw in range(K3):
                    taps = h2_ref[row0 + kw:row0 + kw + Wo3, :]          # (Wo3, C2)
                    t = kh * K3 + kw
                    acc = acc + jnp.dot(taps, w3_ref[t * C2:(t + 1) * C2, :],
                                        preferred_element_type=jnp.float32)
            h3_blk = jnp.maximum(acc + b3, 0.0)                          # (Wo3, C3)
            for ow3 in range(Wo3):
                p3 = oh3 * Wo3 + ow3
                fc_acc = fc_acc + jnp.dot(h3_blk[ow3:ow3 + 1, :],
                                          fcw_ref[p3 * C3:(p3 + 1) * C3, :],
                                          preferred_element_type=jnp.float32)
        o_ref[0] = jnp.maximum(fc_acc, 0.0)                              # (1, 512)

    return kernel


# ---------------------------------------------------------------------------
# Wrapper: conv1 im2col (XLA) + the single pallas_call
# ---------------------------------------------------------------------------
def _im2col_conv1(x, k=8, stride=4):
    """x: (N, H, W, C) NHWC -> (N, Ho*Wo, k*k*C) patches in (kh, kw, c) order."""
    N, H, W, C = x.shape
    Ho, Wo = _conv_out(H, k, stride), _conv_out(W, k, stride)
    cols = []
    for kh in range(k):
        for kw in range(k):
            cols.append(x[:, kh:kh + stride * Ho:stride,
                          kw:kw + stride * Wo:stride, :])
    patches = jnp.concatenate(cols, axis=-1)            # (N, Ho, Wo, k*k*C)
    return patches.reshape(N, Ho * Wo, k * k * C)


def nature_cnn_forward(params, x):
    """x: (N, H, W, 4) NHWC in [0, 255].  Returns (N, 512) f32."""
    N, H, W, Cin = x.shape
    Ho1, Wo1 = _conv_out(H, 8, 4), _conv_out(W, 8, 4)
    Ho2, Wo2 = _conv_out(Ho1, 4, 2), _conv_out(Wo1, 4, 2)
    Ho3, Wo3 = _conv_out(Ho2, 3, 1), _conv_out(Wo2, 3, 1)
    M1, K1 = Ho1 * Wo1, 8 * 8 * Cin

    # conv1 patches only (1/255 is folded into w1, so no scaling here).
    patches = _im2col_conv1(x.astype(jnp.float32))       # (N, M1, 256)

    kernel = _build_fused_kernel(Ho1, Wo1, Ho2, Wo2, Ho3, Wo3)

    out = pl.pallas_call(
        kernel,
        out_shape=jax.ShapeDtypeStruct((N, 1, 512), jnp.float32),
        grid=(N,),
        in_specs=[
            pl.BlockSpec((1, M1, K1), lambda i: (i, 0, 0)),        # per-image patches
            pl.BlockSpec((K1, 32), lambda i: (0, 0)),              # conv1 w (resident)
            pl.BlockSpec((1, 32), lambda i: (0, 0)),               # conv1 b
            pl.BlockSpec((4 * 4 * 32, 64), lambda i: (0, 0)),      # conv2 w
            pl.BlockSpec((1, 64), lambda i: (0, 0)),               # conv2 b
            pl.BlockSpec((3 * 3 * 64, 64), lambda i: (0, 0)),      # conv3 w
            pl.BlockSpec((1, 64), lambda i: (0, 0)),               # conv3 b
            pl.BlockSpec((Ho3 * Wo3 * 64, 512), lambda i: (0, 0)), # fc w
            pl.BlockSpec((1, 512), lambda i: (0, 0)),              # fc b
        ],
        out_specs=pl.BlockSpec((1, 1, 512), lambda i: (i, 0, 0)),
        scratch_shapes=[
            pltpu.VMEM((M1, 32), jnp.float32),            # conv1 activation
            pltpu.VMEM((Ho2 * Wo2, 64), jnp.float32),     # conv2 activation
        ],
        compiler_params=pltpu.CompilerParams(
            dimension_semantics=("parallel",)),           # one image per TensorCore
    )(patches, params["w1"], params["b1"], params["w2"], params["b2"],
      params["w3"], params["b3"], params["fc_w"], params["fc_b"])
    return out.reshape(N, 512)


# ---------------------------------------------------------------------------
# Parameter init (deterministic re-implementation of baselines_orthogonal_)
# and one-time layout prep (transpose to (kh,kw,cin,cout), fold 1/255, bake
# the NCHW flatten order into the fc weight rows).
# ---------------------------------------------------------------------------
def _orthogonal(rng, shape, gain):
    rows = shape[0]
    cols = int(np.prod(shape[1:]))
    flat = rng.normal(0.0, 1.0, (cols, rows))
    u, _, v = np.linalg.svd(flat, full_matrices=False)
    q = u if u.shape == (cols, rows) else v
    q = q.T.reshape(shape)
    return (q * gain).astype(np.float32)


def init_nature_cnn_params(indim):
    gain = float(math.sqrt(2))
    rng = np.random.RandomState(0)
    o1 = _conv_out(indim, 8, 4)
    o2 = _conv_out(o1, 4, 2)
    o3 = _conv_out(o2, 3, 1)
    fc_in = o3 * o3 * 64
    return dict(
        conv1_w=_orthogonal(rng, (32, 4, 8, 8), gain),
        conv1_b=np.zeros((32,), np.float32),
        conv2_w=_orthogonal(rng, (64, 32, 4, 4), gain),
        conv2_b=np.zeros((64,), np.float32),
        conv3_w=_orthogonal(rng, (64, 64, 3, 3), gain),
        conv3_b=np.zeros((64,), np.float32),
        fc_w=_orthogonal(rng, (512, fc_in), gain),       # PyTorch Linear: (out, in)
        fc_b=np.zeros((512,), np.float32),
    )


def _conv_w2d(w, scale=1.0):
    """(Cout, Cin, kh, kw) torch weight -> (kh*kw*Cin, Cout) f32, no padding."""
    cout, cin, kh, kw = w.shape
    wt = np.transpose(w, (2, 3, 1, 0)).reshape(kh * kw * cin, cout) * scale
    return jnp.asarray(wt, jnp.float32)


def prepare_params(raw, indim):
    o1 = _conv_out(indim, 8, 4)
    o2 = _conv_out(o1, 4, 2)
    o3 = _conv_out(o2, 3, 1)
    # fc: PyTorch flattens NCHW -> columns ordered (c, h, w); our conv3 rows are
    # ordered (h, w) with 64 channels per row -> permute to (h, w, c, out).
    fc_w = raw["fc_w"].reshape(512, 64, o3, o3)
    fc_w = np.transpose(fc_w, (2, 3, 1, 0)).reshape(o3 * o3 * 64, 512)
    return dict(
        w1=_conv_w2d(raw["conv1_w"], scale=1.0 / 255.0),   # fold x/255 into w1
        b1=jnp.asarray(raw["conv1_b"].reshape(1, 32), jnp.float32),
        w2=_conv_w2d(raw["conv2_w"]),
        b2=jnp.asarray(raw["conv2_b"].reshape(1, 64), jnp.float32),
        w3=_conv_w2d(raw["conv3_w"]),
        b3=jnp.asarray(raw["conv3_b"].reshape(1, 64), jnp.float32),
        fc_w=jnp.asarray(fc_w, jnp.float32),
        fc_b=jnp.asarray(raw["fc_b"].reshape(1, 512), jnp.float32),
    )


# ---------------------------------------------------------------------------
# Pure-XLA reference of the PyTorch module (for a correctness cross-check)
# ---------------------------------------------------------------------------
def nature_cnn_reference(raw, x):
    h = x.astype(jnp.float32) / 255.0

    def conv(h, w, b, s):
        out = jax.lax.conv_general_dilated(
            h, jnp.asarray(w), window_strides=(s, s), padding="VALID",
            dimension_numbers=("NHWC", "OIHW", "NHWC"))
        return jax.nn.relu(out + jnp.asarray(b))

    h = conv(h, raw["conv1_w"], raw["conv1_b"], 4)
    h = conv(h, raw["conv2_w"], raw["conv2_b"], 2)
    h = conv(h, raw["conv3_w"], raw["conv3_b"], 1)
    h = jnp.transpose(h, (0, 3, 1, 2)).reshape(h.shape[0], -1)   # NCHW flatten
    return jax.nn.relu(h @ jnp.asarray(raw["fc_w"]).T + jnp.asarray(raw["fc_b"]))


if __name__ == "__main__":
    INDIM = 36   # smallest spatial size the conv stack admits (36 -> 8 -> 3 -> 1)
    BATCH = 2
    key = jax.random.PRNGKey(0)
    x = jax.random.uniform(key, (BATCH, INDIM, INDIM, 4),
                           minval=0.0, maxval=255.0, dtype=jnp.float32)

    raw = init_nature_cnn_params(INDIM)
    params = prepare_params(raw, INDIM)

    fwd = jax.jit(nature_cnn_forward)
    out = jax.block_until_ready(fwd(params, x))

    assert out.shape == (BATCH, 512), out.shape
    assert out.dtype == jnp.float32
    assert bool(jnp.all(out >= 0.0))            # ReLU output
    assert bool(jnp.all(jnp.isfinite(out)))

    # Numerical cross-check against the XLA reference of the PyTorch module.
    ref = nature_cnn_reference(raw, x)
    np.testing.assert_allclose(np.asarray(out), np.asarray(ref),
                               rtol=5e-2, atol=5e-2)

    print("KERNEL_OK")
</pallas_src>

<mosaic_0001>
module attributes {stable_mosaic.version = 11 : i64} {
  func.func @kernel(%arg0: i32, %arg1: memref<1x64x256xf32, #tpu.memory_space<vmem>>, %arg2: memref<256x32xf32, #tpu.memory_space<vmem>>, %arg3: memref<1x32xf32, #tpu.memory_space<vmem>>, %arg4: memref<512x64xf32, #tpu.memory_space<vmem>>, %arg5: memref<1x64xf32, #tpu.memory_space<vmem>>, %arg6: memref<576x64xf32, #tpu.memory_space<vmem>>, %arg7: memref<1x64xf32, #tpu.memory_space<vmem>>, %arg8: memref<64x512xf32, #tpu.memory_space<vmem>>, %arg9: memref<1x512xf32, #tpu.memory_space<vmem>>, %arg10: memref<1x1x512xf32, #tpu.memory_space<vmem>>, %arg11: memref<64x32xf32, #tpu.memory_space<vmem>>, %arg12: memref<9x64xf32, #tpu.memory_space<vmem>>) attributes {dimension_semantics = [#tpu.dimension_semantics<parallel>], iteration_bounds = array<i64: 2>, scalar_prefetch = 0 : i64, scratch_operands = 2 : i64, tpu.core_type = #tpu.core_type<tc>, window_params = [{transform_indices = @transform_0, window_bounds = array<i64: 1, 64, 256>}, {pipeline_mode = #tpu.pipeline_mode<synchronous>, transform_indices = @transform_1, window_bounds = array<i64: 256, 32>}, {pipeline_mode = #tpu.pipeline_mode<synchronous>, transform_indices = @transform_2, window_bounds = array<i64: 1, 32>}, {pipeline_mode = #tpu.pipeline_mode<synchronous>, transform_indices = @transform_3, window_bounds = array<i64: 512, 64>}, {pipeline_mode = #tpu.pipeline_mode<synchronous>, transform_indices = @transform_4, window_bounds = array<i64: 1, 64>}, {pipeline_mode = #tpu.pipeline_mode<synchronous>, transform_indices = @transform_5, window_bounds = array<i64: 576, 64>}, {pipeline_mode = #tpu.pipeline_mode<synchronous>, transform_indices = @transform_6, window_bounds = array<i64: 1, 64>}, {pipeline_mode = #tpu.pipeline_mode<synchronous>, transform_indices = @transform_7, window_bounds = array<i64: 64, 512>}, {pipeline_mode = #tpu.pipeline_mode<synchronous>, transform_indices = @transform_8, window_bounds = array<i64: 1, 512>}, {transform_indices = @transform_9, window_bounds = array<i64: 1, 1, 512>}]} {
    %c0 = arith.constant 0 : index
    %c0_0 = arith.constant 0 : index
    %c0_1 = arith.constant 0 : index
    %0 = vector.load %arg1[%c0, %c0_0, %c0_1] : memref<1x64x256xf32, #tpu.memory_space<vmem>>, vector<1x64x256xf32>
    %1 = vector.shape_cast %0 : vector<1x64x256xf32> to vector<64x256xf32>
    %c0_2 = arith.constant 0 : index
    %c0_3 = arith.constant 0 : index
    %2 = vector.load %arg2[%c0_2, %c0_3] : memref<256x32xf32, #tpu.memory_space<vmem>>, vector<256x32xf32>
    %cst = arith.constant dense<0.000000e+00> : vector<64x32xf32>
    %3 = tpu.matmul %1, %2, %cst {dimension_numbers = #tpu.dot_dimension_numbers<[1], [0], [0], [1], [0, 0, 1, 1], [], []>} : vector<64x256xf32>, vector<256x32xf32>, vector<64x32xf32> -> vector<64x32xf32>
    %c0_4 = arith.constant 0 : index
    %c0_5 = arith.constant 0 : index
    %4 = vector.load %arg3[%c0_4, %c0_5] : memref<1x32xf32, #tpu.memory_space<vmem>>, vector<1x32xf32>
    %5 = vector.broadcast %4 : vector<1x32xf32> to vector<64x32xf32>
    %6 = arith.addf %3, %5 : vector<64x32xf32>
    %cst_6 = arith.constant 0.000000e+00 : f32
    %7 = vector.broadcast %cst_6 : f32 to vector<64x32xf32>
    %8 = arith.maximumf %6, %7 : vector<64x32xf32>
    %c0_7 = arith.constant 0 : index
    %c0_8 = arith.constant 0 : index
    %9 = vector.load %arg11[%c0_7, %c0_8] : memref<64x32xf32, #tpu.memory_space<vmem>>, vector<64x32xf32>
    tpu.vector_store %arg11[%c0_7, %c0_8], %8 {strides = array<i32>} : memref<64x32xf32, #tpu.memory_space<vmem>>, vector<64x32xf32>,
    %c0_9 = arith.constant 0 : index
    %c0_10 = arith.constant 0 : index
    %10 = vector.load %arg5[%c0_9, %c0_10] : memref<1x64xf32, #tpu.memory_space<vmem>>, vector<1x64xf32>
    %cst_11 = arith.constant 0.000000e+00 : f32
    %11 = vector.broadcast %cst_11 : f32 to vector<3x64xf32>
    %c0_12 = arith.constant 0 : index
    %c0_13 = arith.constant 0 : index
    %12 = tpu.strided_load %arg11[%c0_12, %c0_13] {strides = array<i32: 2, 1>} : memref<64x32xf32, #tpu.memory_space<vmem>>, vector<3x32xf32>
    %c0_14 = arith.constant 0 : index
    %c0_15 = arith.constant 0 : index
    %13 = vector.load %arg4[%c0_14, %c0_15] : memref<512x64xf32, #tpu.memory_space<vmem>>, vector<32x64xf32>
    %cst_16 = arith.constant dense<0.000000e+00> : vector<3x64xf32>
    %14 = tpu.matmul %12, %13, %cst_16 {dimension_numbers = #tpu.dot_dimension_numbers<[1], [0], [0], [1], [0, 0, 1, 1], [], []>} : vector<3x32xf32>, vector<32x64xf32>, vector<3x64xf32> -> vector<3x64xf32>
    %15 = arith.addf %11, %14 : vector<3x64xf32>
    %c1 = arith.constant 1 : index
    %c0_17 = arith.constant 0 : index
    %16 = tpu.strided_load %arg11[%c1, %c0_17] {strides = array<i32: 2, 1>} : memref<64x32xf32, #tpu.memory_space<vmem>>, vector<3x32xf32>
    %c32 = arith.constant 32 : index
    %c0_18 = arith.constant 0 : index
    %17 = vector.load %arg4[%c32, %c0_18] : memref<512x64xf32, #tpu.memory_space<vmem>>, vector<32x64xf32>
    %cst_19 = arith.constant dense<0.000000e+00> : vector<3x64xf32>
    %18 = tpu.matmul %16, %17, %cst_19 {dimension_numbers = #tpu.dot_dimension_numbers<[1], [0], [0], [1], [0, 0, 1, 1], [], []>} : vector<3x32xf32>, vector<32x64xf32>, vector<3x64xf32> -> vector<3x64xf32>
    %19 = arith.addf %15, %18 : vector<3x64xf32>
    %c2 = arith.constant 2 : index
    %c0_20 = arith.constant 0 : index
    %20 = tpu.strided_load %arg11[%c2, %c0_20] {strides = array<i32: 2, 1>} : memref<64x32xf32, #tpu.memory_space<vmem>>, vector<3x32xf32>
    %c64 = arith.constant 64 : index
    %c0_21 = arith.constant 0 : index
    %21 = vector.load %arg4[%c64, %c0_21] : memref<512x64xf32, #tpu.memory_space<vmem>>, vector<32x64xf32>
    %cst_22 = arith.constant dense<0.000000e+00> : vector<3x64xf32>
    %22 = tpu.matmul %20, %21, %cst_22 {dimension_numbers = #tpu.dot_dimension_numbers<[1], [0], [0], [1], [0, 0, 1, 1], [], []>} : vector<3x32xf32>, vector<32x64xf32>, vector<3x64xf32> -> vector<3x64xf32>
    %23 = arith.addf %19, %22 : vector<3x64xf32>
    %c3 = arith.constant 3 : index
    %c0_23 = arith.constant 0 : index
    %24 = tpu.strided_load %arg11[%c3, %c0_23] {strides = array<i32: 2, 1>} : memref<64x32xf32, #tpu.memory_space<vmem>>, vector<3x32xf32>
    %c96 = arith.constant 96 : index
    %c0_24 = arith.constant 0 : index
    %25 = vector.load %arg4[%c96, %c0_24] : memref<512x64xf32, #tpu.memory_space<vmem>>, vector<32x64xf32>
    %cst_25 = arith.constant dense<0.000000e+00> : vector<3x64xf32>
    %26 = tpu.matmul %24, %25, %cst_25 {dimension_numbers = #tpu.dot_dimension_numbers<[1], [0], [0], [1], [0, 0, 1, 1], [], []>} : vector<3x32xf32>, vector<32x64xf32>, vector<3x64xf32> -> vector<3x64xf32>
    %27 = arith.addf %23, %26 : vector<3x64xf32>
    %c8 = arith.constant 8 : index
    %c0_26 = arith.constant 0 : index
    %28 = tpu.strided_load %arg11[%c8, %c0_26] {strides = array<i32: 2, 1>} : memref<64x32xf32, #tpu.memory_space<vmem>>, vector<3x32xf32>
    %c128 = arith.constant 128 : index
    %c0_27 = arith.constant 0 : index
    %29 = vector.load %arg4[%c128, %c0_27] : memref<512x64xf32, #tpu.memory_space<vmem>>, vector<32x64xf32>
    %cst_28 = arith.constant dense<0.000000e+00> : vector<3x64xf32>
    %30 = tpu.matmul %28, %29, %cst_28 {dimension_numbers = #tpu.dot_dimension_numbers<[1], [0], [0], [1], [0, 0, 1, 1], [], []>} : vector<3x32xf32>, vector<32x64xf32>, vector<3x64xf32> -> vector<3x64xf32>
    %31 = arith.addf %27, %30 : vector<3x64xf32>
    %c9 = arith.constant 9 : index
    %c0_29 = arith.constant 0 : index
    %32 = tpu.strided_load %arg11[%c9, %c0_29] {strides = array<i32: 2, 1>} : memref<64x32xf32, #tpu.memory_space<vmem>>, vector<3x32xf32>
    %c160 = arith.constant 160 : index
    %c0_30 = arith.constant 0 : index
    %33 = vector.load %arg4[%c160, %c0_30] : memref<512x64xf32, #tpu.memory_space<vmem>>, vector<32x64xf32>
    %cst_31 = arith.constant dense<0.000000e+00> : vector<3x64xf32>
    %34 = tpu.matmul %32, %33, %cst_31 {dimension_numbers = #tpu.dot_dimension_numbers<[1], [0], [0], [1], [0, 0, 1, 1], [], []>} : vector<3x32xf32>, vector<32x64xf32>, vector<3x64xf32> -> vector<3x64xf32>
    %35 = arith.addf %31, %34 : vector<3x64xf32>
    %c10 = arith.constant 10 : index
    %c0_32 = arith.constant 0 : index
    %36 = tpu.strided_load %arg11[%c10, %c0_32] {strides = array<i32: 2, 1>} : memref<64x32xf32, #tpu.memory_space<vmem>>, vector<3x32xf32>
    %c192 = arith.constant 192 : index
    %c0_33 = arith.constant 0 : index
    %37 = vector.load %arg4[%c192, %c0_33] : memref<512x64xf32, #tpu.memory_space<vmem>>, vector<32x64xf32>
    %cst_34 = arith.constant dense<0.000000e+00> : vector<3x64xf32>
    %38 = tpu.matmul %36, %37, %cst_34 {dimension_numbers = #tpu.dot_dimension_numbers<[1], [0], [0], [1], [0, 0, 1, 1], [], []>} : vector<3x32xf32>, vector<32x64xf32>, vector<3x64xf32> -> vector<3x64xf32>
    %39 = arith.addf %35, %38 : vector<3x64xf32>
    %c11 = arith.constant 11 : index
    %c0_35 = arith.constant 0 : index
    %40 = tpu.strided_load %arg11[%c11, %c0_35] {strides = array<i32: 2, 1>} : memref<64x32xf32, #tpu.memory_space<vmem>>, vector<3x32xf32>
    %c224 = arith.constant 224 : index
    %c0_36 = arith.constant 0 : index
    %41 = vector.load %arg4[%c224, %c0_36] : memref<512x64xf32, #tpu.memory_space<vmem>>, vector<32x64xf32>
    %cst_37 = arith.constant dense<0.000000e+00> : vector<3x64xf32>
    %42 = tpu.matmul %40, %41, %cst_37 {dimension_numbers = #tpu.dot_dimension_numbers<[1], [0], [0], [1], [0, 0, 1, 1], [], []>} : vector<3x32xf32>, vector<32x64xf32>, vector<3x64xf32> -> vector<3x64xf32>
    %43 = arith.addf %39, %42 : vector<3x64xf32>
    %c16 = arith.constant 16 : index
    %c0_38 = arith.constant 0 : index
    %44 = tpu.strided_load %arg11[%c16, %c0_38] {strides = array<i32: 2, 1>} : memref<64x32xf32, #tpu.memory_space<vmem>>, vector<3x32xf32>
    %c256 = arith.constant 256 : index
    %c0_39 = arith.constant 0 : index
    %45 = vector.load %arg4[%c256, %c0_39] : memref<512x64xf32, #tpu.memory_space<vmem>>, vector<32x64xf32>
    %cst_40 = arith.constant dense<0.000000e+00> : vector<3x64xf32>
    %46 = tpu.matmul %44, %45, %cst_40 {dimension_numbers = #tpu.dot_dimension_numbers<[1], [0], [0], [1], [0, 0, 1, 1], [], []>} : vector<3x32xf32>, vector<32x64xf32>, vector<3x64xf32> -> vector<3x64xf32>
    %47 = arith.addf %43, %46 : vector<3x64xf32>
    %c17 = arith.constant 17 : index
    %c0_41 = arith.constant 0 : index
    %48 = tpu.strided_load %arg11[%c17, %c0_41] {strides = array<i32: 2, 1>} : memref<64x32xf32, #tpu.memory_space<vmem>>, vector<3x32xf32>
    %c288 = arith.constant 288 : index
    %c0_42 = arith.constant 0 : index
    %49 = vector.load %arg4[%c288, %c0_42] : memref<512x64xf32, #tpu.memory_space<vmem>>, vector<32x64xf32>
    %cst_43 = arith.constant dense<0.000000e+00> : vector<3x64xf32>
    %50 = tpu.matmul %48, %49, %cst_43 {dimension_numbers = #tpu.dot_dimension_numbers<[1], [0], [0], [1], [0, 0, 1, 1], [], []>} : vector<3x32xf32>, vector<32x64xf32>, vector<3x64xf32> -> vector<3x64xf32>
    %51 = arith.addf %47, %50 : vector<3x64xf32>
    %c18 = arith.constant 18 : index
    %c0_44 = arith.constant 0 : index
    %52 = tpu.strided_load %arg11[%c18, %c0_44] {strides = array<i32: 2, 1>} : memref<64x32xf32, #tpu.memory_space<vmem>>, vector<3x32xf32>
    %c320 = arith.constant 320 : index
    %c0_45 = arith.constant 0 : index
    %53 = vector.load %arg4[%c320, %c0_45] : memref<512x64xf32, #tpu.memory_space<vmem>>, vector<32x64xf32>
    %cst_46 = arith.constant dense<0.000000e+00> : vector<3x64xf32>
    %54 = tpu.matmul %52, %53, %cst_46 {dimension_numbers = #tpu.dot_dimension_numbers<[1], [0], [0], [1], [0, 0, 1, 1], [], []>} : vector<3x32xf32>, vector<32x64xf32>, vector<3x64xf32> -> vector<3x64xf32>
    %55 = arith.addf %51, %54 : vector<3x64xf32>
    %c19 = arith.constant 19 : index
    %c0_47 = arith.constant 0 : index
    %56 = tpu.strided_load %arg11[%c19, %c0_47] {strides = array<i32: 2, 1>} : memref<64x32xf32, #tpu.memory_space<vmem>>, vector<3x32xf32>
    %c352 = arith.constant 352 : index
    %c0_48 = arith.constant 0 : index
    %57 = vector.load %arg4[%c352, %c0_48] : memref<512x64xf32, #tpu.memory_space<vmem>>, vector<32x64xf32>
    %cst_49 = arith.constant dense<0.000000e+00> : vector<3x64xf32>
    %58 = tpu.matmul %56, %57, %cst_49 {dimension_numbers = #tpu.dot_dimension_numbers<[1], [0], [0], [1], [0, 0, 1, 1], [], []>} : vector<3x32xf32>, vector<32x64xf32>, vector<3x64xf32> -> vector<3x64xf32>
    %59 = arith.addf %55, %58 : vector<3x64xf32>
    %c24 = arith.constant 24 : index
    %c0_50 = arith.constant 0 : index
    %60 = tpu.strided_load %arg11[%c24, %c0_50] {strides = array<i32: 2, 1>} : memref<64x32xf32, #tpu.memory_space<vmem>>, vector<3x32xf32>
    %c384 = arith.constant 384 : index
    %c0_51 = arith.constant 0 : index
    %61 = vector.load %arg4[%c384, %c0_51] : memref<512x64xf32, #tpu.memory_space<vmem>>, vector<32x64xf32>
    %cst_52 = arith.constant dense<0.000000e+00> : vector<3x64xf32>
    %62 = tpu.matmul %60, %61, %cst_52 {dimension_numbers = #tpu.dot_dimension_numbers<[1], [0], [0], [1], [0, 0, 1, 1], [], []>} : vector<3x32xf32>, vector<32x64xf32>, vector<3x64xf32> -> vector<3x64xf32>
    %63 = arith.addf %59, %62 : vector<3x64xf32>
    %c25 = arith.constant 25 : index
    %c0_53 = arith.constant 0 : index
    %64 = tpu.strided_load %arg11[%c25, %c0_53] {strides = array<i32: 2, 1>} : memref<64x32xf32, #tpu.memory_space<vmem>>, vector<3x32xf32>
    %c416 = arith.constant 416 : index
    %c0_54 = arith.constant 0 : index
    %65 = vector.load %arg4[%c416, %c0_54] : memref<512x64xf32, #tpu.memory_space<vmem>>, vector<32x64xf32>
    %cst_55 = arith.constant dense<0.000000e+00> : vector<3x64xf32>
    %66 = tpu.matmul %64, %65, %cst_55 {dimension_numbers = #tpu.dot_dimension_numbers<[1], [0], [0], [1], [0, 0, 1, 1], [], []>} : vector<3x32xf32>, vector<32x64xf32>, vector<3x64xf32> -> vector<3x64xf32>
    %67 = arith.addf %63, %66 : vector<3x64xf32>
    %c26 = arith.constant 26 : index
    %c0_56 = arith.constant 0 : index
    %68 = tpu.strided_load %arg11[%c26, %c0_56] {strides = array<i32: 2, 1>} : memref<64x32xf32, #tpu.memory_space<vmem>>, vector<3x32xf32>
    %c448 = arith.constant 448 : index
    %c0_57 = arith.constant 0 : index
    %69 = vector.load %arg4[%c448, %c0_57] : memref<512x64xf32, #tpu.memory_space<vmem>>, vector<32x64xf32>
    %cst_58 = arith.constant dense<0.000000e+00> : vector<3x64xf32>
    %70 = tpu.matmul %68, %69, %cst_58 {dimension_numbers = #tpu.dot_dimension_numbers<[1], [0], [0], [1], [0, 0, 1, 1], [], []>} : vector<3x32xf32>, vector<32x64xf32>, vector<3x64xf32> -> vector<3x64xf32>
    %71 = arith.addf %67, %70 : vector<3x64xf32>
    %c27 = arith.constant 27 : index
    %c0_59 = arith.constant 0 : index
    %72 = tpu.strided_load %arg11[%c27, %c0_59] {strides = array<i32: 2, 1>} : memref<64x32xf32, #tpu.memory_space<vmem>>, vector<3x32xf32>
    %c480 = arith.constant 480 : index
    %c0_60 = arith.constant 0 : index
    %73 = vector.load %arg4[%c480, %c0_60] : memref<512x64xf32, #tpu.memory_space<vmem>>, vector<32x64xf32>
    %cst_61 = arith.constant dense<0.000000e+00> : vector<3x64xf32>
    %74 = tpu.matmul %72, %73, %cst_61 {dimension_numbers = #tpu.dot_dimension_numbers<[1], [0], [0], [1], [0, 0, 1, 1], [], []>} : vector<3x32xf32>, vector<32x64xf32>, vector<3x64xf32> -> vector<3x64xf32>
    %75 = arith.addf %71, %74 : vector<3x64xf32>
    %76 = vector.broadcast %10 : vector<1x64xf32> to vector<3x64xf32>
    %77 = arith.addf %75, %76 : vector<3x64xf32>
    %cst_62 = arith.constant 0.000000e+00 : f32
    %78 = vector.broadcast %cst_62 : f32 to vector<3x64xf32>
    %79 = arith.maximumf %77, %78 : vector<3x64xf32>
    %c0_63 = arith.constant 0 : index
    %c0_64 = arith.constant 0 : index
    %80 = vector.load %arg12[%c0_63, %c0_64] : memref<9x64xf32, #tpu.memory_space<vmem>>, vector<3x64xf32>
    tpu.vector_store %arg12[%c0_63, %c0_64], %79 {strides = array<i32>} : memref<9x64xf32, #tpu.memory_space<vmem>>, vector<3x64xf32>,
    %cst_65 = arith.constant 0.000000e+00 : f32
    %81 = vector.broadcast %cst_65 : f32 to vector<3x64xf32>
    %c16_66 = arith.constant 16 : index
    %c0_67 = arith.constant 0 : index
    %82 = tpu.strided_load %arg11[%c16_66, %c0_67] {strides = array<i32: 2, 1>} : memref<64x32xf32, #tpu.memory_space<vmem>>, vector<3x32xf32>
    %c0_68 = arith.constant 0 : index
    %c0_69 = arith.constant 0 : index
    %83 = vector.load %arg4[%c0_68, %c0_69] : memref<512x64xf32, #tpu.memory_space<vmem>>, vector<32x64xf32>
    %cst_70 = arith.constant dense<0.000000e+00> : vector<3x64xf32>
    %84 = tpu.matmul %82, %83, %cst_70 {dimension_numbers = #tpu.dot_dimension_numbers<[1], [0], [0], [1], [0, 0, 1, 1], [], []>} : vector<3x32xf32>, vector<32x64xf32>, vector<3x64xf32> -> vector<3x64xf32>
    %85 = arith.addf %81, %84 : vector<3x64xf32>
    %c17_71 = arith.constant 17 : index
    %c0_72 = arith.constant 0 : index
    %86 = tpu.strided_load %arg11[%c17_71, %c0_72] {strides = array<i32: 2, 1>} : memref<64x32xf32, #tpu.memory_space<vmem>>, vector<3x32xf32>
    %c32_73 = arith.constant 32 : index
    %c0_74 = arith.constant 0 : index
    %87 = vector.load %arg4[%c32_73, %c0_74] : memref<512x64xf32, #tpu.memory_space<vmem>>, vector<32x64xf32>
    %cst_75 = arith.constant dense<0.000000e+00> : vector<3x64xf32>
    %88 = tpu.matmul %86, %87, %cst_75 {dimension_numbers = #tpu.dot_dimension_numbers<[1], [0], [0], [1], [0, 0, 1, 1], [], []>} : vector<3x32xf32>, vector<32x64xf32>, vector<3x64xf32> -> vector<3x64xf32>
    %89 = arith.addf %85, %88 : vector<3x64xf32>
    %c18_76 = arith.constant 18 : index
    %c0_77 = arith.constant 0 : index
    %90 = tpu.strided_load %arg11[%c18_76, %c0_77] {strides = array<i32: 2, 1>} : memref<64x32xf32, #tpu.memory_space<vmem>>, vector<3x32xf32>
    %c64_78 = arith.constant 64 : index
    %c0_79 = arith.constant 0 : index
    %91 = vector.load %arg4[%c64_78, %c0_79] : memref<512x64xf32, #tpu.memory_space<vmem>>, vector<32x64xf32>
    %cst_80 = arith.constant dense<0.000000e+00> : vector<3x64xf32>
    %92 = tpu.matmul %90, %91, %cst_80 {dimension_numbers = #tpu.dot_dimension_numbers<[1], [0], [0], [1], [0, 0, 1, 1], [], []>} : vector<3x32xf32>, vector<32x64xf32>, vector<3x64xf32> -> vector<3x64xf32>
    %93 = arith.addf %89, %92 : vector<3x64xf32>
    %c19_81 = arith.constant 19 : index
    %c0_82 = arith.constant 0 : index
    %94 = tpu.strided_load %arg11[%c19_81, %c0_82] {strides = array<i32: 2, 1>} : memref<64x32xf32, #tpu.memory_space<vmem>>, vector<3x32xf32>
    %c96_83 = arith.constant 96 : index
    %c0_84 = arith.constant 0 : index
    %95 = vector.load %arg4[%c96_83, %c0_84] : memref<512x64xf32, #tpu.memory_space<vmem>>, vector<32x64xf32>
    %cst_85 = arith.constant dense<0.000000e+00> : vector<3x64xf32>
    %96 = tpu.matmul %94, %95, %cst_85 {dimension_numbers = #tpu.dot_dimension_numbers<[1], [0], [0], [1], [0, 0, 1, 1], [], []>} : vector<3x32xf32>, vector<32x64xf32>, vector<3x64xf32> -> vector<3x64xf32>
    %97 = arith.addf %93, %96 : vector<3x64xf32>
    %c24_86 = arith.constant 24 : index
    %c0_87 = arith.constant 0 : index
    %98 = tpu.strided_load %arg11[%c24_86, %c0_87] {strides = array<i32: 2, 1>} : memref<64x32xf32, #tpu.memory_space<vmem>>, vector<3x32xf32>
    %c128_88 = arith.constant 128 : index
    %c0_89 = arith.constant 0 : index
    %99 = vector.load %arg4[%c128_88, %c0_89] : memref<512x64xf32, #tpu.memory_space<vmem>>, vector<32x64xf32>
    %cst_90 = arith.constant dense<0.000000e+00> : vector<3x64xf32>
    %100 = tpu.matmul %98, %99, %cst_90 {dimension_numbers = #tpu.dot_dimension_numbers<[1], [0], [0], [1], [0, 0, 1, 1], [], []>} : vector<3x32xf32>, vector<32x64xf32>, vector<3x64xf32> -> vector<3x64xf32>
    %101 = arith.addf %97, %100 : vector<3x64xf32>
    %c25_91 = arith.constant 25 : index
    %c0_92 = arith.constant 0 : index
    %102 = tpu.strided_load %arg11[%c25_91, %c0_92] {strides = array<i32: 2, 1>} : memref<64x32xf32, #tpu.memory_space<vmem>>, vector<3x32xf32>
    %c160_93 = arith.constant 160 : index
    %c0_94 = arith.constant 0 : index
    %103 = vector.load %arg4[%c160_93, %c0_94] : memref<512x64xf32, #tpu.memory_space<vmem>>, vector<32x64xf32>
    %cst_95 = arith.constant dense<0.000000e+00> : vector<3x64xf32>
    %104 = tpu.matmul %102, %103, %cst_95 {dimension_numbers = #tpu.dot_dimension_numbers<[1], [0], [0], [1], [0, 0, 1, 1], [], []>} : vector<3x32xf32>, vector<32x64xf32>, vector<3x64xf32> -> vector<3x64xf32>
    %105 = arith.addf %101, %104 : vector<3x64xf32>
    %c26_96 = arith.constant 26 : index
    %c0_97 = arith.constant 0 : index
    %106 = tpu.strided_load %arg11[%c26_96, %c0_97] {strides = array<i32: 2, 1>} : memref<64x32xf32, #tpu.memory_space<vmem>>, vector<3x32xf32>
    %c192_98 = arith.constant 192 : index
    %c0_99 = arith.constant 0 : index
    %107 = vector.load %arg4[%c192_98, %c0_99] : memref<512x64xf32, #tpu.memory_space<vmem>>, vector<32x64xf32>
    %cst_100 = arith.constant dense<0.000000e+00> : vector<3x64xf32>
    %108 = tpu.matmul %106, %107, %cst_100 {dimension_numbers = #tpu.dot_dimension_numbers<[1], [0], [0], [1], [0, 0, 1, 1], [], []>} : vector<3x32xf32>, vector<32x64xf32>, vector<3x64xf32> -> vector<3x64xf32>
    %109 = arith.addf %105, %108 : vector<3x64xf32>
    %c27_101 = arith.constant 27 : index
    %c0_102 = arith.constant 0 : index
    %110 = tpu.strided_load %arg11[%c27_101, %c0_102] {strides = array<i32: 2, 1>} : memref<64x32xf32, #tpu.memory_space<vmem>>, vector<3x32xf32>
    %c224_103 = arith.constant 224 : index
    %c0_104 = arith.constant 0 : index
    %111 = vector.load %arg4[%c224_103, %c0_104] : memref<512x64xf32, #tpu.memory_space<vmem>>, vector<32x64xf32>
    %cst_105 = arith.constant dense<0.000000e+00> : vector<3x64xf32>
    %112 = tpu.matmul %110, %111, %cst_105 {dimension_numbers = #tpu.dot_dimension_numbers<[1], [0], [0], [1], [0, 0, 1, 1], [], []>} : vector<3x32xf32>, vector<32x64xf32>, vector<3x64xf32> -> vector<3x64xf32>
    %113 = arith.addf %109, %112 : vector<3x64xf32>
    %c32_106 = arith.constant 32 : index
    %c0_107 = arith.constant 0 : index
    %114 = tpu.strided_load %arg11[%c32_106, %c0_107] {strides = array<i32: 2, 1>} : memref<64x32xf32, #tpu.memory_space<vmem>>, vector<3x32xf32>
    %c256_108 = arith.constant 256 : index
    %c0_109 = arith.constant 0 : index
    %115 = vector.load %arg4[%c256_108, %c0_109] : memref<512x64xf32, #tpu.memory_space<vmem>>, vector<32x64xf32>
    %cst_110 = arith.constant dense<0.000000e+00> : vector<3x64xf32>
    %116 = tpu.matmul %114, %115, %cst_110 {dimension_numbers = #tpu.dot_dimension_numbers<[1], [0], [0], [1], [0, 0, 1, 1], [], []>} : vector<3x32xf32>, vector<32x64xf32>, vector<3x64xf32> -> vector<3x64xf32>
    %117 = arith.addf %113, %116 : vector<3x64xf32>
    %c33 = arith.constant 33 : index
    %c0_111 = arith.constant 0 : index
    %118 = tpu.strided_load %arg11[%c33, %c0_111] {strides = array<i32: 2, 1>} : memref<64x32xf32, #tpu.memory_space<vmem>>, vector<3x32xf32>
    %c288_112 = arith.constant 288 : index
    %c0_113 = arith.constant 0 : index
    %119 = vector.load %arg4[%c288_112, %c0_113] : memref<512x64xf32, #tpu.memory_space<vmem>>, vector<32x64xf32>
    %cst_114 = arith.constant dense<0.000000e+00> : vector<3x64xf32>
    %120 = tpu.matmul %118, %119, %cst_114 {dimension_numbers = #tpu.dot_dimension_numbers<[1], [0], [0], [1], [0, 0, 1, 1], [], []>} : vector<3x32xf32>, vector<32x64xf32>, vector<3x64xf32> -> vector<3x64xf32>
    %121 = arith.addf %117, %120 : vector<3x64xf32>
    %c34 = arith.constant 34 : index
    %c0_115 = arith.constant 0 : index
    %122 = tpu.strided_load %arg11[%c34, %c0_115] {strides = array<i32: 2, 1>} : memref<64x32xf32, #tpu.memory_space<vmem>>, vector<3x32xf32>
    %c320_116 = arith.constant 320 : index
    %c0_117 = arith.constant 0 : index
    %123 = vector.load %arg4[%c320_116, %c0_117] : memref<512x64xf32, #tpu.memory_space<vmem>>, vector<32x64xf32>
    %cst_118 = arith.constant dense<0.000000e+00> : vector<3x64xf32>
    %124 = tpu.matmul %122, %123, %cst_118 {dimension_numbers = #tpu.dot_dimension_numbers<[1], [0], [0], [1], [0, 0, 1, 1], [], []>} : vector<3x32xf32>, vector<32x64xf32>, vector<3x64xf32> -> vector<3x64xf32>
    %125 = arith.addf %121, %124 : vector<3x64xf32>
    %c35 = arith.constant 35 : index
    %c0_119 = arith.constant 0 : index
    %126 = tpu.strided_load %arg11[%c35, %c0_119] {strides = array<i32: 2, 1>} : memref<64x32xf32, #tpu.memory_space<vmem>>, vector<3x32xf32>
    %c352_120 = arith.constant 352 : index
    %c0_121 = arith.constant 0 : index
    %127 = vector.load %arg4[%c352_120, %c0_121] : memref<512x64xf32, #tpu.memory_space<vmem>>, vector<32x64xf32>
    %cst_122 = arith.constant dense<0.000000e+00> : vector<3x64xf32>
    %128 = tpu.matmul %126, %127, %cst_122 {dimension_numbers = #tpu.dot_dimension_numbers<[1], [0], [0], [1], [0, 0, 1, 1], [], []>} : vector<3x32xf32>, vector<32x64xf32>, vector<3x64xf32> -> vector<3x64xf32>
    %129 = arith.addf %125, %128 : vector<3x64xf32>
    %c40 = arith.constant 40 : index
    %c0_123 = arith.constant 0 : index
    %130 = tpu.strided_load %arg11[%c40, %c0_123] {strides = array<i32: 2, 1>} : memref<64x32xf32, #tpu.memory_space<vmem>>, vector<3x32xf32>
    %c384_124 = arith.constant 384 : index
    %c0_125 = arith.constant 0 : index
    %131 = vector.load %arg4[%c384_124, %c0_125] : memref<512x64xf32, #tpu.memory_space<vmem>>, vector<32x64xf32>
    %cst_126 = arith.constant dense<0.000000e+00> : vector<3x64xf32>
    %132 = tpu.matmul %130, %131, %cst_126 {dimension_numbers = #tpu.dot_dimension_numbers<[1], [0], [0], [1], [0, 0, 1, 1], [], []>} : vector<3x32xf32>, vector<32x64xf32>, vector<3x64xf32> -> vector<3x64xf32>
    %133 = arith.addf %129, %132 : vector<3x64xf32>
    %c41 = arith.constant 41 : index
    %c0_127 = arith.constant 0 : index
    %134 = tpu.strided_load %arg11[%c41, %c0_127] {strides = array<i32: 2, 1>} : memref<64x32xf32, #tpu.memory_space<vmem>>, vector<3x32xf32>
    %c416_128 = arith.constant 416 : index
    %c0_129 = arith.constant 0 : index
    %135 = vector.load %arg4[%c416_128, %c0_129] : memref<512x64xf32, #tpu.memory_space<vmem>>, vector<32x64xf32>
    %cst_130 = arith.constant dense<0.000000e+00> : vector<3x64xf32>
    %136 = tpu.matmul %134, %135, %cst_130 {dimension_numbers = #tpu.dot_dimension_numbers<[1], [0], [0], [1], [0, 0, 1, 1], [], []>} : vector<3x32xf32>, vector<32x64xf32>, vector<3x64xf32> -> vector<3x64xf32>
    %137 = arith.addf %133, %136 : vector<3x64xf32>
    %c42 = arith.constant 42 : index
    %c0_131 = arith.constant 0 : index
    %138 = tpu.strided_load %arg11[%c42, %c0_131] {strides = array<i32: 2, 1>} : memref<64x32xf32, #tpu.memory_space<vmem>>, vector<3x32xf32>
    %c448_132 = arith.constant 448 : index
    %c0_133 = arith.constant 0 : index
    %139 = vector.load %arg4[%c448_132, %c0_133] : memref<512x64xf32, #tpu.memory_space<vmem>>, vector<32x64xf32>
    %cst_134 = arith.constant dense<0.000000e+00> : vector<3x64xf32>
    %140 = tpu.matmul %138, %139, %cst_134 {dimension_numbers = #tpu.dot_dimension_numbers<[1], [0], [0], [1], [0, 0, 1, 1], [], []>} : vector<3x32xf32>, vector<32x64xf32>, vector<3x64xf32> -> vector<3x64xf32>
    %141 = arith.addf %137, %140 : vector<3x64xf32>
    %c43 = arith.constant 43 : index
    %c0_135 = arith.constant 0 : index
    %142 = tpu.strided_load %arg11[%c43, %c0_135] {strides = array<i32: 2, 1>} : memref<64x32xf32, #tpu.memory_space<vmem>>, vector<3x32xf32>
    %c480_136 = arith.constant 480 : index
    %c0_137 = arith.constant 0 : index
    %143 = vector.load %arg4[%c480_136, %c0_137] : memref<512x64xf32, #tpu.memory_space<vmem>>, vector<32x64xf32>
    %cst_138 = arith.constant dense<0.000000e+00> : vector<3x64xf32>
    %144 = tpu.matmul %142, %143, %cst_138 {dimension_numbers = #tpu.dot_dimension_numbers<[1], [0], [0], [1], [0, 0, 1, 1], [], []>} : vector<3x32xf32>, vector<32x64xf32>, vector<3x64xf32> -> vector<3x64xf32>
    %145 = arith.addf %141, %144 : vector<3x64xf32>
    %146 = vector.broadcast %10 : vector<1x64xf32> to vector<3x64xf32>
    %147 = arith.addf %145, %146 : vector<3x64xf32>
    %cst_139 = arith.constant 0.000000e+00 : f32
    %148 = vector.broadcast %cst_139 : f32 to vector<3x64xf32>
    %149 = arith.maximumf %147, %148 : vector<3x64xf32>
    %c3_140 = arith.constant 3 : index
    %c0_141 = arith.constant 0 : index
    %150 = vector.load %arg12[%c3_140, %c0_141] : memref<9x64xf32, #tpu.memory_space<vmem>>, vector<3x64xf32>
    tpu.vector_store %arg12[%c3_140, %c0_141], %149 {strides = array<i32>} : memref<9x64xf32, #tpu.memory_space<vmem>>, vector<3x64xf32>,
    %cst_142 = arith.constant 0.000000e+00 : f32
    %151 = vector.broadcast %cst_142 : f32 to vector<3x64xf32>
    %c32_143 = arith.constant 32 : index
    %c0_144 = arith.constant 0 : index
    %152 = tpu.strided_load %arg11[%c32_143, %c0_144] {strides = array<i32: 2, 1>} : memref<64x32xf32, #tpu.memory_space<vmem>>, vector<3x32xf32>
    %c0_145 = arith.constant 0 : index
    %c0_146 = arith.constant 0 : index
    %153 = vector.load %arg4[%c0_145, %c0_146] : memref<512x64xf32, #tpu.memory_space<vmem>>, vector<32x64xf32>
    %cst_147 = arith.constant dense<0.000000e+00> : vector<3x64xf32>
    %154 = tpu.matmul %152, %153, %cst_147 {dimension_numbers = #tpu.dot_dimension_numbers<[1], [0], [0], [1], [0, 0, 1, 1], [], []>} : vector<3x32xf32>, vector<32x64xf32>, vector<3x64xf32> -> vector<3x64xf32>
    %155 = arith.addf %151, %154 : vector<3x64xf32>
    %c33_148 = arith.constant 33 : index
    %c0_149 = arith.constant 0 : index
    %156 = tpu.strided_load %arg11[%c33_148, %c0_149] {strides = array<i32: 2, 1>} : memref<64x32xf32, #tpu.memory_space<vmem>>, vector<3x32xf32>
    %c32_150 = arith.constant 32 : index
    %c0_151 = arith.constant 0 : index
    %157 = vector.load %arg4[%c32_150, %c0_151] : memref<512x64xf32, #tpu.memory_space<vmem>>, vector<32x64xf32>
    %cst_152 = arith.constant dense<0.000000e+00> : vector<3x64xf32>
    %158 = tpu.matmul %156, %157, %cst_152 {dimension_numbers = #tpu.dot_dimension_numbers<[1], [0], [0], [1], [0, 0, 1, 1], [], []>} : vector<3x32xf32>, vector<32x64xf32>, vector<3x64xf32> -> vector<3x64xf32>
    %159 = arith.addf %155, %158 : vector<3x64xf32>
    %c34_153 = arith.constant 34 : index
    %c0_154 = arith.constant 0 : index
    %160 = tpu.strided_load %arg11[%c34_153, %c0_154] {strides = array<i32: 2, 1>} : memref<64x32xf32, #tpu.memory_space<vmem>>, vector<3x32xf32>
    %c64_155 = arith.constant 64 : index
    %c0_156 = arith.constant 0 : index
    %161 = vector.load %arg4[%c64_155, %c0_156] : memref<512x64xf32, #tpu.memory_space<vmem>>, vector<32x64xf32>
    %cst_157 = arith.constant dense<0.000000e+00> : vector<3x64xf32>
    %162 = tpu.matmul %160, %161, %cst_157 {dimension_numbers = #tpu.dot_dimension_numbers<[1], [0], [0], [1], [0, 0, 1, 1], [], []>} : vector<3x32xf32>, vector<32x64xf32>, vector<3x64xf32> -> vector<3x64xf32>
    %163 = arith.addf %159, %162 : vector<3x64xf32>
    %c35_158 = arith.constant 35 : index
    %c0_159 = arith.constant 0 : index
    %164 = tpu.strided_load %arg11[%c35_158, %c0_159] {strides = array<i32: 2, 1>} : memref<64x32xf32, #tpu.memory_space<vmem>>, vector<3x32xf32>
    %c96_160 = arith.constant 96 : index
    %c0_161 = arith.constant 0 : index
    %165 = vector.load %arg4[%c96_160, %c0_161] : memref<512x64xf32, #tpu.memory_space<vmem>>, vector<32x64xf32>
    %cst_162 = arith.constant dense<0.000000e+00> : vector<3x64xf32>
    %166 = tpu.matmul %164, %165, %cst_162 {dimension_numbers = #tpu.dot_dimension_numbers<[1], [0], [0], [1], [0, 0, 1, 1], [], []>} : vector<3x32xf32>, vector<32x64xf32>, vector<3x64xf32> -> vector<3x64xf32>
    %167 = arith.addf %163, %166 : vector<3x64xf32>
    %c40_163 = arith.constant 40 : index
    %c0_164 = arith.constant 0 : index
    %168 = tpu.strided_load %arg11[%c40_163, %c0_164] {strides = array<i32: 2, 1>} : memref<64x32xf32, #tpu.memory_space<vmem>>, vector<3x32xf32>
    %c128_165 = arith.constant 128 : index
    %c0_166 = arith.constant 0 : index
    %169 = vector.load %arg4[%c128_165, %c0_166] : memref<512x64xf32, #tpu.memory_space<vmem>>, vector<32x64xf32>
    %cst_167 = arith.constant dense<0.000000e+00> : vector<3x64xf32>
    %170 = tpu.matmul %168, %169, %cst_167 {dimension_numbers = #tpu.dot_dimension_numbers<[1], [0], [0], [1], [0, 0, 1, 1], [], []>} : vector<3x32xf32>, vector<32x64xf32>, vector<3x64xf32> -> vector<3x64xf32>
    %171 = arith.addf %167, %170 : vector<3x64xf32>
    %c41_168 = arith.constant 41 : index
    %c0_169 = arith.constant 0 : index
    %172 = tpu.strided_load %arg11[%c41_168, %c0_169] {strides = array<i32: 2, 1>} : memref<64x32xf32, #tpu.memory_space<vmem>>, vector<3x32xf32>
    %c160_170 = arith.constant 160 : index
    %c0_171 = arith.constant 0 : index
    %173 = vector.load %arg4[%c160_170, %c0_171] : memref<512x64xf32, #tpu.memory_space<vmem>>, vector<32x64xf32>
    %cst_172 = arith.constant dense<0.000000e+00> : vector<3x64xf32>
    %174 = tpu.matmul %172, %173, %cst_172 {dimension_numbers = #tpu.dot_dimension_numbers<[1], [0], [0], [1], [0, 0, 1, 1], [], []>} : vector<3x32xf32>, vector<32x64xf32>, vector<3x64xf32> -> vector<3x64xf32>
    %175 = arith.addf %171, %174 : vector<3x64xf32>
    %c42_173 = arith.constant 42 : index
    %c0_174 = arith.constant 0 : index
    %176 = tpu.strided_load %arg11[%c42_173, %c0_174] {strides = array<i32: 2, 1>} : memref<64x32xf32, #tpu.memory_space<vmem>>, vector<3x32xf32>
    %c192_175 = arith.constant 192 : index
    %c0_176 = arith.constant 0 : index
    %177 = vector.load %arg4[%c192_175, %c0_176] : memref<512x64xf32, #tpu.memory_space<vmem>>, vector<32x64xf32>
    %cst_177 = arith.constant dense<0.000000e+00> : vector<3x64xf32>
    %178 = tpu.matmul %176, %177, %cst_177 {dimension_numbers = #tpu.dot_dimension_numbers<[1], [0], [0], [1], [0, 0, 1, 1], [], []>} : vector<3x32xf32>, vector<32x64xf32>, vector<3x64xf32> -> vector<3x64xf32>
    %179 = arith.addf %175, %178 : vector<3x64xf32>
    %c43_178 = arith.constant 43 : index
    %c0_179 = arith.constant 0 : index
    %180 = tpu.strided_load %arg11[%c43_178, %c0_179] {strides = array<i32: 2, 1>} : memref<64x32xf32, #tpu.memory_space<vmem>>, vector<3x32xf32>
    %c224_180 = arith.constant 224 : index
    %c0_181 = arith.constant 0 : index
    %181 = vector.load %arg4[%c224_180, %c0_181] : memref<512x64xf32, #tpu.memory_space<vmem>>, vector<32x64xf32>
    %cst_182 = arith.constant dense<0.000000e+00> : vector<3x64xf32>
    %182 = tpu.matmul %180, %181, %cst_182 {dimension_numbers = #tpu.dot_dimension_numbers<[1], [0], [0], [1], [0, 0, 1, 1], [], []>} : vector<3x32xf32>, vector<32x64xf32>, vector<3x64xf32> -> vector<3x64xf32>
    %183 = arith.addf %179, %182 : vector<3x64xf32>
    %c48 = arith.constant 48 : index
    %c0_183 = arith.constant 0 : index
    %184 = tpu.strided_load %arg11[%c48, %c0_183] {strides = array<i32: 2, 1>} : memref<64x32xf32, #tpu.memory_space<vmem>>, vector<3x32xf32>
    %c256_184 = arith.constant 256 : index
    %c0_185 = arith.constant 0 : index
    %185 = vector.load %arg4[%c256_184, %c0_185] : memref<512x64xf32, #tpu.memory_space<vmem>>, vector<32x64xf32>
    %cst_186 = arith.constant dense<0.000000e+00> : vector<3x64xf32>
    %186 = tpu.matmul %184, %185, %cst_186 {dimension_numbers = #tpu.dot_dimension_numbers<[1], [0], [0], [1], [0, 0, 1, 1], [], []>} : vector<3x32xf32>, vector<32x64xf32>, vector<3x64xf32> -> vector<3x64xf32>
    %187 = arith.addf %183, %186 : vector<3x64xf32>
    %c49 = arith.constant 49 : index
    %c0_187 = arith.constant 0 : index
    %188 = tpu.strided_load %arg11[%c49, %c0_187] {strides = array<i32: 2, 1>} : memref<64x32xf32, #tpu.memory_space<vmem>>, vector<3x32xf32>
    %c288_188 = arith.constant 288 : index
    %c0_189 = arith.constant 0 : index
    %189 = vector.load %arg4[%c288_188, %c0_189] : memref<512x64xf32, #tpu.memory_space<vmem>>, vector<32x64xf32>
    %cst_190 = arith.constant dense<0.000000e+00> : vector<3x64xf32>
    %190 = tpu.matmul %188, %189, %cst_190 {dimension_numbers = #tpu.dot_dimension_numbers<[1], [0], [0], [1], [0, 0, 1, 1], [], []>} : vector<3x32xf32>, vector<32x64xf32>, vector<3x64xf32> -> vector<3x64xf32>
    %191 = arith.addf %187, %190 : vector<3x64xf32>
    %c50 = arith.constant 50 : index
    %c0_191 = arith.constant 0 : index
    %192 = tpu.strided_load %arg11[%c50, %c0_191] {strides = array<i32: 2, 1>} : memref<64x32xf32, #tpu.memory_space<vmem>>, vector<3x32xf32>
    %c320_192 = arith.constant 320 : index
    %c0_193 = arith.constant 0 : index
    %193 = vector.load %arg4[%c320_192, %c0_193] : memref<512x64xf32, #tpu.memory_space<vmem>>, vector<32x64xf32>
    %cst_194 = arith.constant dense<0.000000e+00> : vector<3x64xf32>
    %194 = tpu.matmul %192, %193, %cst_194 {dimension_numbers = #tpu.dot_dimension_numbers<[1], [0], [0], [1], [0, 0, 1, 1], [], []>} : vector<3x32xf32>, vector<32x64xf32>, vector<3x64xf32> -> vector<3x64xf32>
    %195 = arith.addf %191, %194 : vector<3x64xf32>
    %c51 = arith.constant 51 : index
    %c0_195 = arith.constant 0 : index
    %196 = tpu.strided_load %arg11[%c51, %c0_195] {strides = array<i32: 2, 1>} : memref<64x32xf32, #tpu.memory_space<vmem>>, vector<3x32xf32>
    %c352_196 = arith.constant 352 : index
    %c0_197 = arith.constant 0 : index
    %197 = vector.load %arg4[%c352_196, %c0_197] : memref<512x64xf32, #tpu.memory_space<vmem>>, vector<32x64xf32>
    %cst_198 = arith.constant dense<0.000000e+00> : vector<3x64xf32>
    %198 = tpu.matmul %196, %197, %cst_198 {dimension_numbers = #tpu.dot_dimension_numbers<[1], [0], [0], [1], [0, 0, 1, 1], [], []>} : vector<3x32xf32>, vector<32x64xf32>, vector<3x64xf32> -> vector<3x64xf32>
    %199 = arith.addf %195, %198 : vector<3x64xf32>
    %c56 = arith.constant 56 : index
    %c0_199 = arith.constant 0 : index
    %200 = tpu.strided_load %arg11[%c56, %c0_199] {strides = array<i32: 2, 1>} : memref<64x32xf32, #tpu.memory_space<vmem>>, vector<3x32xf32>
    %c384_200 = arith.constant 384 : index
    %c0_201 = arith.constant 0 : index
    %201 = vector.load %arg4[%c384_200, %c0_201] : memref<512x64xf32, #tpu.memory_space<vmem>>, vector<32x64xf32>
    %cst_202 = arith.constant dense<0.000000e+00> : vector<3x64xf32>
    %202 = tpu.matmul %200, %201, %cst_202 {dimension_numbers = #tpu.dot_dimension_numbers<[1], [0], [0], [1], [0, 0, 1, 1], [], []>} : vector<3x32xf32>, vector<32x64xf32>, vector<3x64xf32> -> vector<3x64xf32>
    %203 = arith.addf %199, %202 : vector<3x64xf32>
    %c57 = arith.constant 57 : index
    %c0_203 = arith.constant 0 : index
    %204 = tpu.strided_load %arg11[%c57, %c0_203] {strides = array<i32: 2, 1>} : memref<64x32xf32, #tpu.memory_space<vmem>>, vector<3x32xf32>
    %c416_204 = arith.constant 416 : index
    %c0_205 = arith.constant 0 : index
    %205 = vector.load %arg4[%c416_204, %c0_205] : memref<512x64xf32, #tpu.memory_space<vmem>>, vector<32x64xf32>
    %cst_206 = arith.constant dense<0.000000e+00> : vector<3x64xf32>
    %206 = tpu.matmul %204, %205, %cst_206 {dimension_numbers = #tpu.dot_dimension_numbers<[1], [0], [0], [1], [0, 0, 1, 1], [], []>} : vector<3x32xf32>, vector<32x64xf32>, vector<3x64xf32> -> vector<3x64xf32>
    %207 = arith.addf %203, %206 : vector<3x64xf32>
    %c58 = arith.constant 58 : index
    %c0_207 = arith.constant 0 : index
    %208 = tpu.strided_load %arg11[%c58, %c0_207] {strides = array<i32: 2, 1>} : memref<64x32xf32, #tpu.memory_space<vmem>>, vector<3x32xf32>
    %c448_208 = arith.constant 448 : index
    %c0_209 = arith.constant 0 : index
    %209 = vector.load %arg4[%c448_208, %c0_209] : memref<512x64xf32, #tpu.memory_space<vmem>>, vector<32x64xf32>
    %cst_210 = arith.constant dense<0.000000e+00> : vector<3x64xf32>
    %210 = tpu.matmul %208, %209, %cst_210 {dimension_numbers = #tpu.dot_dimension_numbers<[1], [0], [0], [1], [0, 0, 1, 1], [], []>} : vector<3x32xf32>, vector<32x64xf32>, vector<3x64xf32> -> vector<3x64xf32>
    %211 = arith.addf %207, %210 : vector<3x64xf32>
    %c59 = arith.constant 59 : index
    %c0_211 = arith.constant 0 : index
    %212 = tpu.strided_load %arg11[%c59, %c0_211] {strides = array<i32: 2, 1>} : memref<64x32xf32, #tpu.memory_space<vmem>>, vector<3x32xf32>
    %c480_212 = arith.constant 480 : index
    %c0_213 = arith.constant 0 : index
    %213 = vector.load %arg4[%c480_212, %c0_213] : memref<512x64xf32, #tpu.memory_space<vmem>>, vector<32x64xf32>
    %cst_214 = arith.constant dense<0.000000e+00> : vector<3x64xf32>
    %214 = tpu.matmul %212, %213, %cst_214 {dimension_numbers = #tpu.dot_dimension_numbers<[1], [0], [0], [1], [0, 0, 1, 1], [], []>} : vector<3x32xf32>, vector<32x64xf32>, vector<3x64xf32> -> vector<3x64xf32>
    %215 = arith.addf %211, %214 : vector<3x64xf32>
    %216 = vector.broadcast %10 : vector<1x64xf32> to vector<3x64xf32>
    %217 = arith.addf %215, %216 : vector<3x64xf32>
    %cst_215 = arith.constant 0.000000e+00 : f32
    %218 = vector.broadcast %cst_215 : f32 to vector<3x64xf32>
    %219 = arith.maximumf %217, %218 : vector<3x64xf32>
    %c6 = arith.constant 6 : index
    %c0_216 = arith.constant 0 : index
    %220 = vector.load %arg12[%c6, %c0_216] : memref<9x64xf32, #tpu.memory_space<vmem>>, vector<3x64xf32>
    tpu.vector_store %arg12[%c6, %c0_216], %219 {strides = array<i32>} : memref<9x64xf32, #tpu.memory_space<vmem>>, vector<3x64xf32>,
    %c0_217 = arith.constant 0 : index
    %c0_218 = arith.constant 0 : index
    %221 = vector.load %arg7[%c0_217, %c0_218] : memref<1x64xf32, #tpu.memory_space<vmem>>, vector<1x64xf32>
    %c0_219 = arith.constant 0 : index
    %c0_220 = arith.constant 0 : index
    %222 = vector.load %arg9[%c0_219, %c0_220] : memref<1x512xf32, #tpu.memory_space<vmem>>, vector<1x512xf32>
    %cst_221 = arith.constant 0.000000e+00 : f32
    %223 = vector.broadcast %cst_221 : f32 to vector<1x64xf32>
    %c0_222 = arith.constant 0 : index
    %c0_223 = arith.constant 0 : index
    %224 = vector.load %arg12[%c0_222, %c0_223] : memref<9x64xf32, #tpu.memory_space<vmem>>, vector<1x64xf32>
    %c0_224 = arith.constant 0 : index
    %c0_225 = arith.constant 0 : index
    %225 = vector.load %arg6[%c0_224, %c0_225] : memref<576x64xf32, #tpu.memory_space<vmem>>, vector<64x64xf32>
    %cst_226 = arith.constant dense<0.000000e+00> : vector<1x64xf32>
    %226 = tpu.matmul %224, %225, %cst_226 {dimension_numbers = #tpu.dot_dimension_numbers<[1], [0], [0], [1], [0, 0, 1, 1], [], []>} : vector<1x64xf32>, vector<64x64xf32>, vector<1x64xf32> -> vector<1x64xf32>
    %227 = arith.addf %223, %226 : vector<1x64xf32>
    %c1_227 = arith.constant 1 : index
    %c0_228 = arith.constant 0 : index
    %228 = vector.load %arg12[%c1_227, %c0_228] : memref<9x64xf32, #tpu.memory_space<vmem>>, vector<1x64xf32>
    %c64_229 = arith.constant 64 : index
    %c0_230 = arith.constant 0 : index
    %229 = vector.load %arg6[%c64_229, %c0_230] : memref<576x64xf32, #tpu.memory_space<vmem>>, vector<64x64xf32>
    %cst_231 = arith.constant dense<0.000000e+00> : vector<1x64xf32>
    %230 = tpu.matmul %228, %229, %cst_231 {dimension_numbers = #tpu.dot_dimension_numbers<[1], [0], [0], [1], [0, 0, 1, 1], [], []>} : vector<1x64xf32>, vector<64x64xf32>, vector<1x64xf32> -> vector<1x64xf32>
    %231 = arith.addf %227, %230 : vector<1x64xf32>
    %c2_232 = arith.constant 2 : index
    %c0_233 = arith.constant 0 : index
    %232 = vector.load %arg12[%c2_232, %c0_233] : memref<9x64xf32, #tpu.memory_space<vmem>>, vector<1x64xf32>
    %c128_234 = arith.constant 128 : index
    %c0_235 = arith.constant 0 : index
    %233 = vector.load %arg6[%c128_234, %c0_235] : memref<576x64xf32, #tpu.memory_space<vmem>>, vector<64x64xf32>
    %cst_236 = arith.constant dense<0.000000e+00> : vector<1x64xf32>
    %234 = tpu.matmul %232, %233, %cst_236 {dimension_numbers = #tpu.dot_dimension_numbers<[1], [0], [0], [1], [0, 0, 1, 1], [], []>} : vector<1x64xf32>, vector<64x64xf32>, vector<1x64xf32> -> vector<1x64xf32>
    %235 = arith.addf %231, %234 : vector<1x64xf32>
    %c3_237 = arith.constant 3 : index
    %c0_238 = arith.constant 0 : index
    %236 = vector.load %arg12[%c3_237, %c0_238] : memref<9x64xf32, #tpu.memory_space<vmem>>, vector<1x64xf32>
    %c192_239 = arith.constant 192 : index
    %c0_240 = arith.constant 0 : index
    %237 = vector.load %arg6[%c192_239, %c0_240] : memref<576x64xf32, #tpu.memory_space<vmem>>, vector<64x64xf32>
    %cst_241 = arith.constant dense<0.000000e+00> : vector<1x64xf32>
    %238 = tpu.matmul %236, %237, %cst_241 {dimension_numbers = #tpu.dot_dimension_numbers<[1], [0], [0], [1], [0, 0, 1, 1], [], []>} : vector<1x64xf32>, vector<64x64xf32>, vector<1x64xf32> -> vector<1x64xf32>
    %239 = arith.addf %235, %238 : vector<1x64xf32>
    %c4 = arith.constant 4 : index
    %c0_242 = arith.constant 0 : index
    %240 = vector.load %arg12[%c4, %c0_242] : memref<9x64xf32, #tpu.memory_space<vmem>>, vector<1x64xf32>
    %c256_243 = arith.constant 256 : index
    %c0_244 = arith.constant 0 : index
    %241 = vector.load %arg6[%c256_243, %c0_244] : memref<576x64xf32, #tpu.memory_space<vmem>>, vector<64x64xf32>
    %cst_245 = arith.constant dense<0.000000e+00> : vector<1x64xf32>
    %242 = tpu.matmul %240, %241, %cst_245 {dimension_numbers = #tpu.dot_dimension_numbers<[1], [0], [0], [1], [0, 0, 1, 1], [], []>} : vector<1x64xf32>, vector<64x64xf32>, vector<1x64xf32> -> vector<1x64xf32>
    %243 = arith.addf %239, %242 : vector<1x64xf32>
    %c5 = arith.constant 5 : index
    %c0_246 = arith.constant 0 : index
    %244 = vector.load %arg12[%c5, %c0_246] : memref<9x64xf32, #tpu.memory_space<vmem>>, vector<1x64xf32>
    %c320_247 = arith.constant 320 : index
    %c0_248 = arith.constant 0 : index
    %245 = vector.load %arg6[%c320_247, %c0_248] : memref<576x64xf32, #tpu.memory_space<vmem>>, vector<64x64xf32>
    %cst_249 = arith.constant dense<0.000000e+00> : vector<1x64xf32>
    %246 = tpu.matmul %244, %245, %cst_249 {dimension_numbers = #tpu.dot_dimension_numbers<[1], [0], [0], [1], [0, 0, 1, 1], [], []>} : vector<1x64xf32>, vector<64x64xf32>, vector<1x64xf32> -> vector<1x64xf32>
    %247 = arith.addf %243, %246 : vector<1x64xf32>
    %c6_250 = arith.constant 6 : index
    %c0_251 = arith.constant 0 : index
    %248 = vector.load %arg12[%c6_250, %c0_251] : memref<9x64xf32, #tpu.memory_space<vmem>>, vector<1x64xf32>
    %c384_252 = arith.constant 384 : index
    %c0_253 = arith.constant 0 : index
    %249 = vector.load %arg6[%c384_252, %c0_253] : memref<576x64xf32, #tpu.memory_space<vmem>>, vector<64x64xf32>
    %cst_254 = arith.constant dense<0.000000e+00> : vector<1x64xf32>
    %250 = tpu.matmul %248, %249, %cst_254 {dimension_numbers = #tpu.dot_dimension_numbers<[1], [0], [0], [1], [0, 0, 1, 1], [], []>} : vector<1x64xf32>, vector<64x64xf32>, vector<1x64xf32> -> vector<1x64xf32>
    %251 = arith.addf %247, %250 : vector<1x64xf32>
    %c7 = arith.constant 7 : index
    %c0_255 = arith.constant 0 : index
    %252 = vector.load %arg12[%c7, %c0_255] : memref<9x64xf32, #tpu.memory_space<vmem>>, vector<1x64xf32>
    %c448_256 = arith.constant 448 : index
    %c0_257 = arith.constant 0 : index
    %253 = vector.load %arg6[%c448_256, %c0_257] : memref<576x64xf32, #tpu.memory_space<vmem>>, vector<64x64xf32>
    %cst_258 = arith.constant dense<0.000000e+00> : vector<1x64xf32>
    %254 = tpu.matmul %252, %253, %cst_258 {dimension_numbers = #tpu.dot_dimension_numbers<[1], [0], [0], [1], [0, 0, 1, 1], [], []>} : vector<1x64xf32>, vector<64x64xf32>, vector<1x64xf32> -> vector<1x64xf32>
    %255 = arith.addf %251, %254 : vector<1x64xf32>
    %c8_259 = arith.constant 8 : index
    %c0_260 = arith.constant 0 : index
    %256 = vector.load %arg12[%c8_259, %c0_260] : memref<9x64xf32, #tpu.memory_space<vmem>>, vector<1x64xf32>
    %c512 = arith.constant 512 : index
    %c0_261 = arith.constant 0 : index
    %257 = vector.load %arg6[%c512, %c0_261] : memref<576x64xf32, #tpu.memory_space<vmem>>, vector<64x64xf32>
    %cst_262 = arith.constant dense<0.000000e+00> : vector<1x64xf32>
    %258 = tpu.matmul %256, %257, %cst_262 {dimension_numbers = #tpu.dot_dimension_numbers<[1], [0], [0], [1], [0, 0, 1, 1], [], []>} : vector<1x64xf32>, vector<64x64xf32>, vector<1x64xf32> -> vector<1x64xf32>
    %259 = arith.addf %255, %258 : vector<1x64xf32>
    %260 = arith.addf %259, %221 : vector<1x64xf32>
    %cst_263 = arith.constant 0.000000e+00 : f32
    %261 = vector.broadcast %cst_263 : f32 to vector<1x64xf32>
    %262 = arith.maximumf %260, %261 : vector<1x64xf32>
    %c0_264 = arith.constant 0 : index
    %c0_265 = arith.constant 0 : index
    %263 = vector.load %arg8[%c0_264, %c0_265] : memref<64x512xf32, #tpu.memory_space<vmem>>, vector<64x512xf32>
    %cst_266 = arith.constant dense<0.000000e+00> : vector<1x512xf32>
    %264 = tpu.matmul %262, %263, %cst_266 {dimension_numbers = #tpu.dot_dimension_numbers<[1], [0], [0], [1], [0, 0, 1, 1], [], []>} : vector<1x64xf32>, vector<64x512xf32>, vector<1x512xf32> -> vector<1x512xf32>
    %265 = arith.addf %222, %264 : vector<1x512xf32>
    %cst_267 = arith.constant 0.000000e+00 : f32
    %266 = vector.broadcast %cst_267 : f32 to vector<1x512xf32>
    %267 = arith.maximumf %265, %266 : vector<1x512xf32>
    %c0_268 = arith.constant 0 : index
    %c0_269 = arith.constant 0 : index
    %c0_270 = arith.constant 0 : index
    %268 = vector.load %arg10[%c0_268, %c0_269, %c0_270] : memref<1x1x512xf32, #tpu.memory_space<vmem>>, vector<1x1x512xf32>
    %269 = vector.shape_cast %268 : vector<1x1x512xf32> to vector<1x512xf32>
    %270 = vector.shape_cast %267 : vector<1x512xf32> to vector<1x1x512xf32>
    tpu.vector_store %arg10[%c0_268, %c0_269, %c0_270], %270 {strides = array<i32>} : memref<1x1x512xf32, #tpu.memory_space<vmem>>, vector<1x1x512xf32>,
    return
  }
  func.func @transform_0(%arg0: i32) -> (i32, i32, i32) {
    %c0_i32 = arith.constant 0 : i32
    %c0_i32_0 = arith.constant 0 : i32
    %c0_i32_1 = arith.constant 0 : i32
    return %arg0, %c0_i32, %c0_i32_0 : i32, i32, i32
  }
  func.func @transform_1(%arg0: i32) -> (i32, i32) {
    %c0_i32 = arith.constant 0 : i32
    %c0_i32_0 = arith.constant 0 : i32
    %c0_i32_1 = arith.constant 0 : i32
    return %c0_i32, %c0_i32_0 : i32, i32
  }
  func.func @transform_2(%arg0: i32) -> (i32, i32) {
    %c0_i32 = arith.constant 0 : i32
    %c0_i32_0 = arith.constant 0 : i32
    %c0_i32_1 = arith.constant 0 : i32
    return %c0_i32, %c0_i32_0 : i32, i32
  }
  func.func @transform_3(%arg0: i32) -> (i32, i32) {
    %c0_i32 = arith.constant 0 : i32
    %c0_i32_0 = arith.constant 0 : i32
    %c0_i32_1 = arith.constant 0 : i32
    return %c0_i32, %c0_i32_0 : i32, i32
  }
  func.func @transform_4(%arg0: i32) -> (i32, i32) {
    %c0_i32 = arith.constant 0 : i32
    %c0_i32_0 = arith.constant 0 : i32
    %c0_i32_1 = arith.constant 0 : i32
    return %c0_i32, %c0_i32_0 : i32, i32
  }
  func.func @transform_5(%arg0: i32) -> (i32, i32) {
    %c0_i32 = arith.constant 0 : i32
    %c0_i32_0 = arith.constant 0 : i32
    %c0_i32_1 = arith.constant 0 : i32
    return %c0_i32, %c0_i32_0 : i32, i32
  }
  func.func @transform_6(%arg0: i32) -> (i32, i32) {
    %c0_i32 = arith.constant 0 : i32
    %c0_i32_0 = arith.constant 0 : i32
    %c0_i32_1 = arith.constant 0 : i32
    return %c0_i32, %c0_i32_0 : i32, i32
  }
  func.func @transform_7(%arg0: i32) -> (i32, i32) {
    %c0_i32 = arith.constant 0 : i32
    %c0_i32_0 = arith.constant 0 : i32
    %c0_i32_1 = arith.constant 0 : i32
    return %c0_i32, %c0_i32_0 : i32, i32
  }
  func.func @transform_8(%arg0: i32) -> (i32, i32) {
    %c0_i32 = arith.constant 0 : i32
    %c0_i32_0 = arith.constant 0 : i32
    %c0_i32_1 = arith.constant 0 : i32
    return %c0_i32, %c0_i32_0 : i32, i32
  }
  func.func @transform_9(%arg0: i32) -> (i32, i32, i32) {
    %c0_i32 = arith.constant 0 : i32
    %c0_i32_0 = arith.constant 0 : i32
    %c0_i32_1 = arith.constant 0 : i32
    return %arg0, %c0_i32, %c0_i32_0 : i32, i32, i32
  }
}

</mosaic_0001>

<llo_original>
// kernel: nature_cnn_forward.1
$region0: #{nature_cnn_forward.1}
  #allocation0 [shape = 'u32[]', space=smem, size = 0x4, offset = 0x4, fixed_abs, tag = 'smem constant byte address 0x4 - core index']
  #allocation1 [shape = 'u32[144,128]{1,0:T(1,128)}', space=vmem, size = 0x12000, scoped, tag = 'internal scratch']
  #allocation2 [shape = 'f32[64,32]{1,0:T(8,128)}', space=vmem, size = 0x8000, scoped, tag = 'scratch operand']
  #allocation3 [shape = 'f32[9,64]{1,0:T(8,128)}', space=vmem, size = 0x2000, scoped, tag = 'scratch operand']
  %s0 = inlined_call_operand.vmem [shape: f32[2,64,256], index: 0, kind: input, shape index: {}]
  %s1 = inlined_call_operand.vmem [shape: f32[256,32], index: 1, kind: input, shape index: {}]
  %s2 = inlined_call_operand.vmem [shape: f32[1,32], index: 2, kind: input, shape index: {}]
  %s3 = inlined_call_operand.vmem [shape: f32[512,64], index: 3, kind: input, shape index: {}]
  %s4 = inlined_call_operand.vmem [shape: f32[1,64], index: 4, kind: input, shape index: {}]
  %s5 = inlined_call_operand.vmem [shape: f32[576,64], index: 5, kind: input, shape index: {}]
  %s6 = inlined_call_operand.vmem [shape: f32[1,64], index: 6, kind: input, shape index: {}]
  %s7 = inlined_call_operand.vmem [shape: f32[64,512], index: 7, kind: input, shape index: {}]
  %s8 = inlined_call_operand.vmem [shape: f32[1,512], index: 8, kind: input, shape index: {}]
  %s9 = inlined_call_operand.vmem [shape: f32[2,1,512], index: 9, kind: output, shape index: {}]
  %s10 = sld [smem:[#allocation0]]
  $region69: #{nature_cnn_forward.1} parent=0
    _
  %s12 = ssub.s32 1, %s10
  %s13 = scalar_select 0, %s12, %s10
  loop: start=0, step=1, limit=4
  $region2: #{nature_cnn_forward.1} parent=0 // loop_pre_header
    _
  $region3: #{nature_cnn_forward.1} parent=0 // loop_header
    %s15 = sphi 0, %s19
    %p16 = scmp.ge.s32.totalorder %s15, 4
    %s25 = sphi 0, %s27
    %s28 = sphi 0, %s25
    %s29 = sphi 0, %s28
    %s45 = sphi 0, %s29
    %s49 = sphi 0, %s49
    %s51 = sphi 0, %s49
    %s52 = sphi 0, %s51
    %s66 = sphi 0, %s52
    %s70 = sphi 0, %s70
    %s72 = sphi 0, %s70
    %s73 = sphi 0, %s72
    %s87 = sphi 0, %s73
    %s91 = sphi 0, %s91
    %s93 = sphi 0, %s91
    %s94 = sphi 0, %s93
    %s108 = sphi 0, %s94
    %s112 = sphi 0, %s112
    %s114 = sphi 0, %s112
    %s115 = sphi 0, %s114
    %s129 = sphi 0, %s115
    %s133 = sphi 0, %s133
    %s135 = sphi 0, %s133
    %s136 = sphi 0, %s135
    %s150 = sphi 0, %s136
    %s154 = sphi 0, %s154
    %s156 = sphi 0, %s154
    %s157 = sphi 0, %s156
    %s171 = sphi 0, %s157
    %s175 = sphi 0, %s175
    %s177 = sphi 0, %s175
    %s178 = sphi 0, %s177
    %s192 = sphi 0, %s178
    %s196 = sphi 0, %s196
    %s198 = sphi 0, %s196
    %s199 = sphi 0, %s198
    %s213 = sphi 0, %s199
    %s219 = sphi 0, %s221
    %s222 = sphi 0, %s219
    %s223 = sphi 0, %s222
    %s239 = sphi 0, %s223
  $region4: #{nature_cnn_forward.1} parent=0 // loop_header_branch
    %18 = sbr.rel (%p16) target = $region8
  $region5: #{nature_cnn_forward.1} parent=0 // loop_body
    %s20 = ssub.s32 %s15, 1
    %s21 = ssub.s32 %s15, 2
    %s22 = sadd.s32 %s15, 1
    %s23 = ssub.s32 %s15, %s22
    %p24 = scmp.eq.s32.totalorder %s23, 0
    %s26 = sadd.s32 %s25, 1
    %s27 = scalar_select %p24, %s25, %s26
    %p30 = pneg %p24
    %p31 = scmp.eq.s32.totalorder %s15, 1
    %p32 = por %p30, %p31
    %p33 = scmp.ne.s32.totalorder %s25, %s28
    %p34 = scmp.eq.s32.totalorder %s15, 0
    %p35 = por %p33, %p34
    %p36 = scmp.ne.s32.totalorder %s25, %s28
    %p37 = scmp.eq.s32.totalorder %s20, 1
    %p38 = por %p36, %p37
    %p39 = scmp.ne.s32.totalorder %s28, %s29
    %p40 = scmp.eq.s32.totalorder %s20, 0
    %p41 = por %p39, %p40
    %p42 = scmp.ne.s32.totalorder %s28, %s29
    %p43 = scmp.eq.s32.totalorder %s21, 1
    %p44 = por %p42, %p43
    %p46 = scmp.ne.s32.totalorder %s29, %s45
    %p47 = scmp.eq.s32.totalorder %s21, 0
    %p48 = por %p46, %p47
    %s50 = sadd.s32 %s49, 1
    %p53 = scmp.eq.s32.totalorder %s15, 1
    %p54 = scmp.ne.s32.totalorder %s49, %s51
    %p55 = scmp.eq.s32.totalorder %s15, 0
    %p56 = por %p54, %p55
    %p57 = scmp.ne.s32.totalorder %s49, %s51
    %p58 = scmp.eq.s32.totalorder %s20, 1
    %p59 = por %p57, %p58
    %p60 = scmp.ne.s32.totalorder %s51, %s52
    %p61 = scmp.eq.s32.totalorder %s20, 0
    %p62 = por %p60, %p61
    %p63 = scmp.ne.s32.totalorder %s51, %s52
    %p64 = scmp.eq.s32.totalorder %s21, 1
    %p65 = por %p63, %p64
    %p67 = scmp.ne.s32.totalorder %s52, %s66
    %p68 = scmp.eq.s32.totalorder %s21, 0
    %p69 = por %p67, %p68
    %s71 = sadd.s32 %s70, 1
    %p74 = scmp.eq.s32.totalorder %s15, 1
    %p75 = scmp.ne.s32.totalorder %s70, %s72
    %p76 = scmp.eq.s32.totalorder %s15, 0
    %p77 = por %p75, %p76
    %p78 = scmp.ne.s32.totalorder %s70, %s72
    %p79 = scmp.eq.s32.totalorder %s20, 1
    %p80 = por %p78, %p79
    %p81 = scmp.ne.s32.totalorder %s72, %s73
    %p82 = scmp.eq.s32.totalorder %s20, 0
    %p83 = por %p81, %p82
    %p84 = scmp.ne.s32.totalorder %s72, %s73
    %p85 = scmp.eq.s32.totalorder %s21, 1
    %p86 = por %p84, %p85
    %p88 = scmp.ne.s32.totalorder %s73, %s87
    %p89 = scmp.eq.s32.totalorder %s21, 0
    %p90 = por %p88, %p89
    %s92 = sadd.s32 %s91, 1
    %p95 = scmp.eq.s32.totalorder %s15, 1
    %p96 = scmp.ne.s32.totalorder %s91, %s93
    %p97 = scmp.eq.s32.totalorder %s15, 0
    %p98 = por %p96, %p97
    %p99 = scmp.ne.s32.totalorder %s91, %s93
    %p100 = scmp.eq.s32.totalorder %s20, 1
    %p101 = por %p99, %p100
    %p102 = scmp.ne.s32.totalorder %s93, %s94
    %p103 = scmp.eq.s32.totalorder %s20, 0
    %p104 = por %p102, %p103
    %p105 = scmp.ne.s32.totalorder %s93, %s94
    %p106 = scmp.eq.s32.totalorder %s21, 1
    %p107 = por %p105, %p106
    %p109 = scmp.ne.s32.totalorder %s94, %s108
    %p110 = scmp.eq.s32.totalorder %s21, 0
    %p111 = por %p109, %p110
    %s113 = sadd.s32 %s112, 1
    %p116 = scmp.eq.s32.totalorder %s15, 1
    %p117 = scmp.ne.s32.totalorder %s112, %s114
    %p118 = scmp.eq.s32.totalorder %s15, 0
    %p119 = por %p117, %p118
    %p120 = scmp.ne.s32.totalorder %s112, %s114
    %p121 = scmp.eq.s32.totalorder %s20, 1
    %p122 = por %p120, %p121
    %p123 = scmp.ne.s32.totalorder %s114, %s115
    %p124 = scmp.eq.s32.totalorder %s20, 0
    %p125 = por %p123, %p124
    %p126 = scmp.ne.s32.totalorder %s114, %s115
    %p127 = scmp.eq.s32.totalorder %s21, 1
    %p128 = por %p126, %p127
    %p130 = scmp.ne.s32.totalorder %s115, %s129
    %p131 = scmp.eq.s32.totalorder %s21, 0
    %p132 = por %p130, %p131
    %s134 = sadd.s32 %s133, 1
    %p137 = scmp.eq.s32.totalorder %s15, 1
    %p138 = scmp.ne.s32.totalorder %s133, %s135
    %p139 = scmp.eq.s32.totalorder %s15, 0
    %p140 = por %p138, %p139
    %p141 = scmp.ne.s32.totalorder %s133, %s135
    %p142 = scmp.eq.s32.totalorder %s20, 1
    %p143 = por %p141, %p142
    %p144 = scmp.ne.s32.totalorder %s135, %s136
    %p145 = scmp.eq.s32.totalorder %s20, 0
    %p146 = por %p144, %p145
    %p147 = scmp.ne.s32.totalorder %s135, %s136
    %p148 = scmp.eq.s32.totalorder %s21, 1
    %p149 = por %p147, %p148
    %p151 = scmp.ne.s32.totalorder %s136, %s150
    %p152 = scmp.eq.s32.totalorder %s21, 0
    %p153 = por %p151, %p152
    %s155 = sadd.s32 %s154, 1
    %p158 = scmp.eq.s32.totalorder %s15, 1
    %p159 = scmp.ne.s32.totalorder %s154, %s156
    %p160 = scmp.eq.s32.totalorder %s15, 0
    %p161 = por %p159, %p160
    %p162 = scmp.ne.s32.totalorder %s154, %s156
    %p163 = scmp.eq.s32.totalorder %s20, 1
    %p164 = por %p162, %p163
    %p165 = scmp.ne.s32.totalorder %s156, %s157
    %p166 = scmp.eq.s32.totalorder %s20, 0
    %p167 = por %p165, %p166
    %p168 = scmp.ne.s32.totalorder %s156, %s157
    %p169 = scmp.eq.s32.totalorder %s21, 1
    %p170 = por %p168, %p169
    %p172 = scmp.ne.s32.totalorder %s157, %s171
    %p173 = scmp.eq.s32.totalorder %s21, 0
    %p174 = por %p172, %p173
    %s176 = sadd.s32 %s175, 1
    %p179 = scmp.eq.s32.totalorder %s15, 1
    %p180 = scmp.ne.s32.totalorder %s175, %s177
    %p181 = scmp.eq.s32.totalorder %s15, 0
    %p182 = por %p180, %p181
    %p183 = scmp.ne.s32.totalorder %s175, %s177
    %p184 = scmp.eq.s32.totalorder %s20, 1
    %p185 = por %p183, %p184
    %p186 = scmp.ne.s32.totalorder %s177, %s178
    %p187 = scmp.eq.s32.totalorder %s20, 0
    %p188 = por %p186, %p187
    %p189 = scmp.ne.s32.totalorder %s177, %s178
    %p190 = scmp.eq.s32.totalorder %s21, 1
    %p191 = por %p189, %p190
    %p193 = scmp.ne.s32.totalorder %s178, %s192
    %p194 = scmp.eq.s32.totalorder %s21, 0
    %p195 = por %p193, %p194
    %s197 = sadd.s32 %s196, 1
    %p200 = scmp.eq.s32.totalorder %s15, 1
    %p201 = scmp.ne.s32.totalorder %s196, %s198
    %p202 = scmp.eq.s32.totalorder %s15, 0
    %p203 = por %p201, %p202
    %p204 = scmp.ne.s32.totalorder %s196, %s198
    %p205 = scmp.eq.s32.totalorder %s20, 1
    %p206 = por %p204, %p205
    %p207 = scmp.ne.s32.totalorder %s198, %s199
    %p208 = scmp.eq.s32.totalorder %s20, 0
    %p209 = por %p207, %p208
    %p210 = scmp.ne.s32.totalorder %s198, %s199
    %p211 = scmp.eq.s32.totalorder %s21, 1
    %p212 = por %p210, %p211
    %p214 = scmp.ne.s32.totalorder %s199, %s213
    %p215 = scmp.eq.s32.totalorder %s21, 0
    %p216 = por %p214, %p215
    %s217 = ssub.s32 %s15, %s22
    %p218 = scmp.eq.s32.totalorder %s217, 0
    %s220 = sadd.s32 %s219, 1
    %s221 = scalar_select %p218, %s219, %s220
    %p224 = pneg %p218
    %p225 = scmp.eq.s32.totalorder %s15, 1
    %p226 = por %p224, %p225
    %p227 = scmp.ne.s32.totalorder %s219, %s222
    %p228 = scmp.eq.s32.totalorder %s15, 0
    %p229 = por %p227, %p228
    %p230 = scmp.ne.s32.totalorder %s219, %s222
    %p231 = scmp.eq.s32.totalorder %s20, 1
    %p232 = por %p230, %p231
    %p233 = scmp.ne.s32.totalorder %s222, %s223
    %p234 = scmp.eq.s32.totalorder %s20, 0
    %p235 = por %p233, %p234
    %p236 = scmp.ne.s32.totalorder %s222, %s223
    %p237 = scmp.eq.s32.totalorder %s21, 1
    %p238 = por %p236, %p237
    %p240 = scmp.ne.s32.totalorder %s223, %s239
    %p241 = scmp.eq.s32.totalorder %s21, 0
    %p242 = por %p240, %p241
    %p243 = scmp.le.s32.totalorder 1, %s15
    %p244 = scmp.lt.s32.totalorder %s15, 3
    %p245 = pnand %p243, %p244
    %p246 = pneg %p245
    // Predicated region
    $region9: #{nature_cnn_forward.1} parent=5 // pred_check
      _
    $region10: #{nature_cnn_forward.1} parent=5 // pred_check_branch
      %248 = sbr.rel (%p245) target = $region12
    $region11: #{nature_cnn_forward.1} parent=5 // pred_region
      %s249 = ssub.s32 %s15, 1
      // Predicated region
      $region13: #{nature_cnn_forward.1} parent=11 // pred_check
        %p250 = pneg %p62
      $region14: #{nature_cnn_forward.1} parent=11 // pred_check_branch
        %252 = sbr.rel (%p250) target = $region16
      $region15: #{nature_cnn_forward.1} parent=11 // pred_region
        _
      $region16: #{nature_cnn_forward.1} parent=11 // pred_fallthru
        _
      // Predicated region
      $region17: #{nature_cnn_forward.1} parent=11 // pred_check
        %p253 = pneg %p83
      $region18: #{nature_cnn_forward.1} parent=11 // pred_check_branch
        %255 = sbr.rel (%p253) target = $region20
      $region19: #{nature_cnn_forward.1} parent=11 // pred_region
        _
      $region20: #{nature_cnn_forward.1} parent=11 // pred_fallthru
        _
      // Predicated region
      $region21: #{nature_cnn_forward.1} parent=11 // pred_check
        %p256 = pneg %p104
      $region22: #{nature_cnn_forward.1} parent=11 // pred_check_branch
        %258 = sbr.rel (%p256) target = $region24
      $region23: #{nature_cnn_forward.1} parent=11 // pred_region
        _
      $region24: #{nature_cnn_forward.1} parent=11 // pred_fallthru
        _
      // Predicated region
      $region25: #{nature_cnn_forward.1} parent=11 // pred_check
        %p259 = pneg %p125
      $region26: #{nature_cnn_forward.1} parent=11 // pred_check_branch
        %261 = sbr.rel (%p259) target = $region28
      $region27: #{nature_cnn_forward.1} parent=11 // pred_region
        _
      $region28: #{nature_cnn_forward.1} parent=11 // pred_fallthru
        _
      // Predicated region
      $region29: #{nature_cnn_forward.1} parent=11 // pred_check
        %p262 = pneg %p146
      $region30: #{nature_cnn_forward.1} parent=11 // pred_check_branch
        %264 = sbr.rel (%p262) target = $region32
      $region31: #{nature_cnn_forward.1} parent=11 // pred_region
        _
      $region32: #{nature_cnn_forward.1} parent=11 // pred_fallthru
        _
      // Predicated region
      $region33: #{nature_cnn_forward.1} parent=11 // pred_check
        %p265 = pneg %p167
      $region34: #{nature_cnn_forward.1} parent=11 // pred_check_branch
        %267 = sbr.rel (%p265) target = $region36
      $region35: #{nature_cnn_forward.1} parent=11 // pred_region
        _
      $region36: #{nature_cnn_forward.1} parent=11 // pred_fallthru
        _
      // Predicated region
      $region37: #{nature_cnn_forward.1} parent=11 // pred_check
        %p268 = pneg %p188
      $region38: #{nature_cnn_forward.1} parent=11 // pred_check_branch
        %270 = sbr.rel (%p268) target = $region40
      $region39: #{nature_cnn_forward.1} parent=11 // pred_region
        _
      $region40: #{nature_cnn_forward.1} parent=11 // pred_fallthru
        _
      // Predicated region
      $region41: #{nature_cnn_forward.1} parent=11 // pred_check
        %p271 = pneg %p209
      $region42: #{nature_cnn_forward.1} parent=11 // pred_check_branch
        %273 = sbr.rel (%p271) target = $region44
      $region43: #{nature_cnn_forward.1} parent=11 // pred_region
        _
      $region44: #{nature_cnn_forward.1} parent=11 // pred_fallthru
        _
    $region12: #{nature_cnn_forward.1} parent=5 // pred_fallthru
      _
    %p274 = scmp.lt.s32.totalorder %s15, 2
    // Predicated region
    $region45: #{nature_cnn_forward.1} parent=5 // pred_check
      %p275 = pneg %p274
    $region46: #{nature_cnn_forward.1} parent=5 // pred_check_branch
      %277 = sbr.rel (%p275) target = $region48
    $region47: #{nature_cnn_forward.1} parent=5 // pred_region
      // Predicated region
      $region49: #{nature_cnn_forward.1} parent=47 // pred_check
        %p278 = pneg %p35
      $region50: #{nature_cnn_forward.1} parent=47 // pred_check_branch
        %280 = sbr.rel (%p278) target = $region52
      $region51: #{nature_cnn_forward.1} parent=47 // pred_region
        %p281 = scmp.lt.s32.totalorder %s15, 1
        %s282 = scalar_select %p281, %s15, 1
        %s283 = smul.addr %s282, 16
        %s284 = smul.addr %s283, 8
        %s285 = scalar_lea.vmem %s0, %s284
      $region52: #{nature_cnn_forward.1} parent=47 // pred_fallthru
        _
    $region48: #{nature_cnn_forward.1} parent=5 // pred_fallthru
      _
    %p286 = scmp.le.s32.totalorder 1, %s15
    %p287 = scmp.lt.s32.totalorder %s15, 3
    %p288 = pnand %p286, %p287
    %p289 = pneg %p288
    // Predicated region
    $region53: #{nature_cnn_forward.1} parent=5 // pred_check
      _
    $region54: #{nature_cnn_forward.1} parent=5 // pred_check_branch
      %291 = sbr.rel (%p288) target = $region56
    $region55: #{nature_cnn_forward.1} parent=5 // pred_region
      %s292 = ssub.s32 %s15, 1
      %p293 = scmp.lt.s32.totalorder %s20, 1
      %s294 = scalar_select %p293, %s20, 1
      %s295 = smul.addr %s294, 16
      %s296 = smul.addr %s295, 8
      %s297 = scalar_lea.vmem %s0, %s296
      %p298 = pneg %p41
      %p299 = pneg %p38
      %p300 = pneg %p62
      %p301 = pneg %p59
      %p302 = pneg %p83
      %p303 = pneg %p80
      %p304 = pneg %p104
      %p305 = pneg %p101
      %p306 = pneg %p125
      %p307 = pneg %p122
      %p308 = pneg %p146
      %p309 = pneg %p143
      %p310 = pneg %p167
      %p311 = pneg %p164
      %p312 = pneg %p188
      %p313 = pneg %p185
      %p314 = pneg %p209
      %p315 = pneg %p206
      %p316 = pneg %p235
      %p317 = pneg %p232
      %p318 = scmp.lt.s32.totalorder %s20, 1
      %s319 = scalar_select %p318, %s20, 1
      %s320 = smul.addr %s319, 4
      %s321 = scalar_lea.vmem %s9, %s320
      %p322 = scmp.lt.s32.totalorder %s20, 1
      %s323 = scalar_select %p322, %s20, 1
      %s324 = smul.addr %s323, 16
      %s325 = smul.addr %s324, 8
      %s326 = scalar_lea.vmem %s0, %s325
      %p327 = scmp.lt.s32.totalorder %s20, 1
      %s328 = scalar_select %p327, %s20, 1
      %s329 = smul.addr %s328, 4
      %s330 = scalar_lea.vmem %s9, %s329
      %v331 = vld [vmem:[%s326] sm:$0xff]
      %v332 = vld [vmem:[%s326 + $0x8] sm:$0xff]
      %v333 = vld [vmem:[%s326 + $0x10] sm:$0xff]
      %v334 = vld [vmem:[%s326 + $0x18] sm:$0xff]
      %v335 = vld [vmem:[%s326 + $0x20] sm:$0xff]
      %v336 = vld [vmem:[%s326 + $0x28] sm:$0xff]
      %v337 = vld [vmem:[%s326 + $0x30] sm:$0xff]
      %v338 = vld [vmem:[%s326 + $0x38] sm:$0xff]
      %v339 = vld [vmem:[%s326 + $0x40] sm:$0xff]
      %v340 = vld [vmem:[%s326 + $0x48] sm:$0xff]
      %v341 = vld [vmem:[%s326 + $0x50] sm:$0xff]
      %v342 = vld [vmem:[%s326 + $0x58] sm:$0xff]
      %v343 = vld [vmem:[%s326 + $0x60] sm:$0xff]
      %v344 = vld [vmem:[%s326 + $0x68] sm:$0xff]
      %v345 = vld [vmem:[%s326 + $0x70] sm:$0xff]
      %v346 = vld [vmem:[%s326 + $0x78] sm:$0xff]
      %v347 = vld [vmem:[%s1] sm:$0xff]
      %v348 = vld [vmem:[%s1 + $0x8] sm:$0xff]
      %v349 = vld [vmem:[%s1 + $0x10] sm:$0xff]
      %v350 = vld [vmem:[%s1 + $0x18] sm:$0xff]
      %v351 = vld [vmem:[%s1 + $0x20] sm:$0xff]
      %v352 = vld [vmem:[%s1 + $0x28] sm:$0xff]
      %v353 = vld [vmem:[%s1 + $0x30] sm:$0xff]
      %v354 = vld [vmem:[%s1 + $0x38] sm:$0xff]
      %v355 = vld [vmem:[%s1 + $0x40] sm:$0xff]
      %v356 = vld [vmem:[%s1 + $0x48] sm:$0xff]
      %v357 = vld [vmem:[%s1 + $0x50] sm:$0xff]
      %v358 = vld [vmem:[%s1 + $0x58] sm:$0xff]
      %v359 = vld [vmem:[%s1 + $0x60] sm:$0xff]
      %v360 = vld [vmem:[%s1 + $0x68] sm:$0xff]
      %v361 = vld [vmem:[%s1 + $0x70] sm:$0xff]
      %v362 = vld [vmem:[%s1 + $0x78] sm:$0xff]
      %v363 = vld [vmem:[%s1 + $0x80] sm:$0xff]
      %v364 = vld [vmem:[%s1 + $0x88] sm:$0xff]
      %v365 = vld [vmem:[%s1 + $0x90] sm:$0xff]
      %v366 = vld [vmem:[%s1 + $0x98] sm:$0xff]
      %v367 = vld [vmem:[%s1 + $0xa0] sm:$0xff]
      %v368 = vld [vmem:[%s1 + $0xa8] sm:$0xff]
      %v369 = vld [vmem:[%s1 + $0xb0] sm:$0xff]
      %v370 = vld [vmem:[%s1 + $0xb8] sm:$0xff]
      %v371 = vld [vmem:[%s1 + $0xc0] sm:$0xff]
      %v372 = vld [vmem:[%s1 + $0xc8] sm:$0xff]
      %v373 = vld [vmem:[%s1 + $0xd0] sm:$0xff]
      %v374 = vld [vmem:[%s1 + $0xd8] sm:$0xff]
      %v375 = vld [vmem:[%s1 + $0xe0] sm:$0xff]
      %v376 = vld [vmem:[%s1 + $0xe8] sm:$0xff]
      %v377 = vld [vmem:[%s1 + $0xf0] sm:$0xff]
      %v378 = vld [vmem:[%s1 + $0xf8] sm:$0xff]
      %v379 = vld [vmem:[%s2] sm:$0x1]
      %v381 = vlaneseq
      %v382 = vshrl.u32 %v381, 7
      %v383 = vsub.s32 0, %v382
      %v384 = vrot.slane %v379, %v383
      %386 = vmatprep.subr.mxu0 0.0
      %387 = vmatpush1.msra.mxu0 %v347
      %388 = vmatprep.subr.mxu0 0.0
      %389 = vmatpush1.msra.mxu0 %v348
      %390 = vmatprep.subr.mxu0 0.0
      %391 = vmatpush1.msra.mxu0 %v349
      %392 = vmatprep.subr.mxu0 0.0
      %393 = vmatpush1.msra.mxu0 %v350
      %394 = vmatprep.subr.mxu0 0.0
      %395 = vmatpush1.msra.mxu0 %v351
      %396 = vmatprep.subr.mxu0 0.0
      %397 = vmatpush1.msra.mxu0 %v352
      %398 = vmatprep.subr.mxu0 0.0
      %399 = vmatpush1.msra.mxu0 %v353
      %400 = vmatprep.subr.mxu0 0.0
      %401 = vmatpush1.msra.mxu0 %v354
      %402 = vmatprep.subr.mxu0 0.0
      %403 = vmatpush1.msra.mxu0 %v355
      %404 = vmatprep.subr.mxu0 0.0
      %405 = vmatpush1.msra.mxu0 %v356
      %406 = vmatprep.subr.mxu0 0.0
      %407 = vmatpush1.msra.mxu0 %v357
      %408 = vmatprep.subr.mxu0 0.0
      %409 = vmatpush1.msra.mxu0 %v358
      %410 = vmatprep.subr.mxu0 0.0
      %411 = vmatpush1.msra.mxu0 %v359
      %412 = vmatprep.subr.mxu0 0.0
      %413 = vmatpush1.msra.mxu0 %v360
      %414 = vmatprep.subr.mxu0 0.0
      %415 = vmatpush1.msra.mxu0 %v361
      %416 = vmatprep.subr.mxu0 0.0
      %417 = vmatpush1.msra.mxu0 %v362
      %418 = vmatprep.subr.mxu0 0.0
      %419 = vmatpush1.msra.mxu0 %v363
      %420 = vmatprep.subr.mxu0 0.0
      %421 = vmatpush1.msra.mxu0 %v364
      %422 = vmatprep.subr.mxu0 0.0
      %423 = vmatpush1.msra.mxu0 %v365
      %424 = vmatprep.subr.mxu0 0.0
      %425 = vmatpush1.msra.mxu0 %v366
      %426 = vmatprep.subr.mxu0 0.0
      %427 = vmatpush1.msra.mxu0 %v367
      %428 = vmatprep.subr.mxu0 0.0
      %429 = vmatpush1.msra.mxu0 %v368
      %430 = vmatprep.subr.mxu0 0.0
      %431 = vmatpush1.msra.mxu0 %v369
      %432 = vmatprep.subr.mxu0 0.0
      %433 = vmatpush1.msra.mxu0 %v370
      %434 = vmatprep.subr.mxu0 0.0
      %435 = vmatpush1.msra.mxu0 %v371
      %436 = vmatprep.subr.mxu0 0.0
      %437 = vmatpush1.msra.mxu0 %v372
      %438 = vmatprep.subr.mxu0 0.0
      %439 = vmatpush1.msra.mxu0 %v373
      %440 = vmatprep.subr.mxu0 0.0
      %441 = vmatpush1.msra.mxu0 %v374
      %442 = vmatprep.subr.mxu0 0.0
      %443 = vmatpush1.msra.mxu0 %v375
      %444 = vmatprep.subr.mxu0 0.0
      %445 = vmatpush1.msra.mxu0 %v376
      %446 = vmatprep.subr.mxu0 0.0
      %447 = vmatpush1.msra.mxu0 %v377
      %448 = vmatprep.subr.mxu0 0.0
      %449 = vmatpush1.msra.mxu0 %v378
      %450 = vmatprep.mubr.f32.mxu0 %v332
      %451 = vmatmul.mubr.f32.gmra.mrb[0].mxu0 %v331
      %v452 = vpop.f32.mrb[0].mxu0
      %v453 = vadd.f32 %v384, %v452
      %v454 = vpop.f32.mrb[0].mxu0
      %455 = vmatprep.mubr.f32.mxu0 %v334
      %456 = vmatmul.mubr.f32.gmra.mrb[0].mxu0 %v333
      %v457 = vpop.f32.mrb[0].mxu0
      %v458 = vadd.f32 %v384, %v457
      %v459 = vpop.f32.mrb[0].mxu0
      %460 = vmatprep.mubr.f32.mxu0 %v336
      %461 = vmatmul.mubr.f32.gmra.mrb[0].mxu0 %v335
      %v462 = vpop.f32.mrb[0].mxu0
      %v463 = vadd.f32 %v384, %v462
      %v464 = vpop.f32.mrb[0].mxu0
      %465 = vmatprep.mubr.f32.mxu0 %v338
      %466 = vmatmul.mubr.f32.gmra.mrb[0].mxu0 %v337
      %v467 = vpop.f32.mrb[0].mxu0
      %v468 = vadd.f32 %v384, %v467
      %v469 = vpop.f32.mrb[0].mxu0
      %470 = vmatprep.mubr.f32.mxu0 %v340
      %471 = vmatmul.mubr.f32.gmra.mrb[0].mxu0 %v339
      %v472 = vpop.f32.mrb[0].mxu0
      %v473 = vadd.f32 %v384, %v472
      %v474 = vpop.f32.mrb[0].mxu0
      %475 = vmatprep.mubr.f32.mxu0 %v342
      %476 = vmatmul.mubr.f32.gmra.mrb[0].mxu0 %v341
      %v477 = vpop.f32.mrb[0].mxu0
      %v478 = vadd.f32 %v384, %v477
      %v479 = vpop.f32.mrb[0].mxu0
      %480 = vmatprep.mubr.f32.mxu0 %v344
      %481 = vmatmul.mubr.f32.gmra.mrb[0].mxu0 %v343
      %v482 = vpop.f32.mrb[0].mxu0
      %v483 = vadd.f32 %v384, %v482
      %v484 = vpop.f32.mrb[0].mxu0
      %485 = vmatprep.mubr.f32.mxu0 %v346
      %486 = vmatmul.mubr.f32.gmra.mrb[0].mxu0 %v345
      %v487 = vpop.f32.mrb[0].mxu0
      %v488 = vadd.f32 %v384, %v487
      %v489 = vpop.f32.mrb[0].mxu0
      %490 = vdwg.mxu0
      %v491 = vmax.f32 %v453, 0.0
      %v492 = vmax.f32 %v458, 0.0
      %v493 = vmax.f32 %v463, 0.0
      %v494 = vmax.f32 %v468, 0.0
      %v495 = vmax.f32 %v473, 0.0
      %v496 = vmax.f32 %v478, 0.0
      %v497 = vmax.f32 %v483, 0.0
      %v498 = vmax.f32 %v488, 0.0
      %vm499 = vcmask 261120
      %500 = vst.msk [vmem:[#allocation2] sm:$0xff] %vm499, %v491
      %501 = vst.msk [vmem:[#allocation2 + $0x8] sm:$0xff] %vm499, %v492
      %502 = vst.msk [vmem:[#allocation2 + $0x10] sm:$0xff] %vm499, %v493
      %503 = vst.msk [vmem:[#allocation2 + $0x18] sm:$0xff] %vm499, %v494
      %504 = vst.msk [vmem:[#allocation2 + $0x20] sm:$0xff] %vm499, %v495
      %505 = vst.msk [vmem:[#allocation2 + $0x28] sm:$0xff] %vm499, %v496
      %506 = vst.msk [vmem:[#allocation2 + $0x30] sm:$0xff] %vm499, %v497
      %507 = vst.msk [vmem:[#allocation2 + $0x38] sm:$0xff] %vm499, %v498
      %v508 = vld [vmem:[%s4] sm:$0x1]
      %v509 = vld [vmem:[#allocation2] ss:$2 sm:$0x7]
      %v510 = vld [vmem:[%s3] sm:$0xff]
      %v511 = vld [vmem:[%s3 + $0x8] sm:$0xff]
      %v512 = vld [vmem:[%s3 + $0x10] sm:$0xff]
      %v513 = vld [vmem:[%s3 + $0x18] sm:$0xff]
      %s514 = scalar_lea.vmem [#allocation2], 1
      %v515 = vld [vmem:[%s514] ss:$2 sm:$0x7]
      %v516 = vld [vmem:[%s3 + $0x20] sm:$0xff]
      %v517 = vld [vmem:[%s3 + $0x28] sm:$0xff]
      %v518 = vld [vmem:[%s3 + $0x30] sm:$0xff]
      %v519 = vld [vmem:[%s3 + $0x38] sm:$0xff]
      %v521 = vsel %vm499, %v515, 0
      %523 = vmatprep.subr.mxu0 0.0
      %524 = vmatpush1.msra.mxu0 %v516
      %525 = vmatprep.subr.mxu0 0.0
      %526 = vmatpush1.msra.mxu0 %v517
      %527 = vmatprep.subr.mxu0 0.0
      %528 = vmatpush1.msra.mxu0 %v518
      %529 = vmatprep.subr.mxu0 0.0
      %530 = vmatpush1.msra.mxu0 %v519
      %531 = vmatprep.subr.mxu0 0.0
      %532 = vmatpush1.msra.mxu0 0.0
      %533 = vmatprep.subr.mxu0 0.0
      %534 = vmatpush1.msra.mxu0 0.0
      %535 = vmatprep.subr.mxu0 0.0
      %536 = vmatpush1.msra.mxu0 0.0
      %537 = vmatprep.subr.mxu0 0.0
      %538 = vmatpush1.msra.mxu0 0.0
      %539 = vmatprep.subr.mxu0 0.0
      %540 = vmatpush1.msra.mxu0 0.0
      %541 = vmatprep.subr.mxu0 0.0
      %542 = vmatpush1.msra.mxu0 0.0
      %543 = vmatprep.subr.mxu0 0.0
      %544 = vmatpush1.msra.mxu0 0.0
      %545 = vmatprep.subr.mxu0 0.0
      %546 = vmatpush1.msra.mxu0 0.0
      %547 = vmatprep.subr.mxu0 0.0
      %548 = vmatpush1.msra.mxu0 0.0
      %549 = vmatprep.subr.mxu0 0.0
      %550 = vmatpush1.msra.mxu0 0.0
      %551 = vmatprep.subr.mxu0 0.0
      %552 = vmatpush1.msra.mxu0 0.0
      %553 = vmatprep.subr.mxu0 0.0
      %554 = vmatpush1.msra.mxu0 0.0
      %555 = vmatprep.subr.mxu0 0.0
      %556 = vmatpush1.msra.mxu0 0.0
      %557 = vmatprep.subr.mxu0 0.0
      %558 = vmatpush1.msra.mxu0 0.0
      %559 = vmatprep.subr.mxu0 0.0
      %560 = vmatpush1.msra.mxu0 0.0
      %561 = vmatprep.subr.mxu0 0.0
      %562 = vmatpush1.msra.mxu0 0.0
      %563 = vmatprep.subr.mxu0 0.0
      %564 = vmatpush1.msra.mxu0 0.0
      %565 = vmatprep.subr.mxu0 0.0
      %566 = vmatpush1.msra.mxu0 0.0
      %567 = vmatprep.subr.mxu0 0.0
      %568 = vmatpush1.msra.mxu0 0.0
      %569 = vmatprep.subr.mxu0 0.0
      %570 = vmatpush1.msra.mxu0 0.0
      %571 = vmatprep.subr.mxu0 0.0
      %572 = vmatpush1.msra.mxu0 0.0
      %573 = vmatprep.subr.mxu0 0.0
      %574 = vmatpush1.msra.mxu0 0.0
      %575 = vmatprep.subr.mxu0 0.0
      %576 = vmatpush1.msra.mxu0 0.0
      %577 = vmatprep.subr.mxu0 0.0
      %578 = vmatpush1.msra.mxu0 0.0
      %579 = vmatprep.subr.mxu0 0.0
      %580 = vmatpush1.msra.mxu0 0.0
      %581 = vmatprep.subr.mxu0 0.0
      %582 = vmatpush1.msra.mxu0 0.0
      %583 = vmatprep.subr.mxu0 0.0
      %584 = vmatpush1.msra.mxu0 0.0
      %585 = vmatprep.subr.mxu0 0.0
      %586 = vmatpush1.msra.mxu0 0.0
      %587 = vmatprep.mubr.f32.mxu0 0.0
      %588 = vmatmul.mubr.f32.gmra.mrb[0].mxu0 %v521
      %v589 = vpop.f32.mrb[0].mxu0
      %v590 = vadd.f32 0.0, %v589
      %v591 = vpop.f32.mrb[0].mxu0
      %592 = vdwg.mxu0
      %v594 = vsel %vm499, %v509, 0
      %596 = vmatprep.subr.mxu0 0.0
      %597 = vmatpush1.msra.mxu0 %v510
      %598 = vmatprep.subr.mxu0 0.0
      %599 = vmatpush1.msra.mxu0 %v511
      %600 = vmatprep.subr.mxu0 0.0
      %601 = vmatpush1.msra.mxu0 %v512
      %602 = vmatprep.subr.mxu0 0.0
      %603 = vmatpush1.msra.mxu0 %v513
      %604 = vmatprep.subr.mxu0 0.0
      %605 = vmatpush1.msra.mxu0 0.0
      %606 = vmatprep.subr.mxu0 0.0
      %607 = vmatpush1.msra.mxu0 0.0
      %608 = vmatprep.subr.mxu0 0.0
      %609 = vmatpush1.msra.mxu0 0.0
      %610 = vmatprep.subr.mxu0 0.0
      %611 = vmatpush1.msra.mxu0 0.0
      %612 = vmatprep.subr.mxu0 0.0
      %613 = vmatpush1.msra.mxu0 0.0
      %614 = vmatprep.subr.mxu0 0.0
      %615 = vmatpush1.msra.mxu0 0.0
      %616 = vmatprep.subr.mxu0 0.0
      %617 = vmatpush1.msra.mxu0 0.0
      %618 = vmatprep.subr.mxu0 0.0
      %619 = vmatpush1.msra.mxu0 0.0
      %620 = vmatprep.subr.mxu0 0.0
      %621 = vmatpush1.msra.mxu0 0.0
      %622 = vmatprep.subr.mxu0 0.0
      %623 = vmatpush1.msra.mxu0 0.0
      %624 = vmatprep.subr.mxu0 0.0
      %625 = vmatpush1.msra.mxu0 0.0
      %626 = vmatprep.subr.mxu0 0.0
      %627 = vmatpush1.msra.mxu0 0.0
      %628 = vmatprep.subr.mxu0 0.0
      %629 = vmatpush1.msra.mxu0 0.0
      %630 = vmatprep.subr.mxu0 0.0
      %631 = vmatpush1.msra.mxu0 0.0
      %632 = vmatprep.subr.mxu0 0.0
      %633 = vmatpush1.msra.mxu0 0.0
      %634 = vmatprep.subr.mxu0 0.0
      %635 = vmatpush1.msra.mxu0 0.0
      %636 = vmatprep.subr.mxu0 0.0
      %637 = vmatpush1.msra.mxu0 0.0
      %638 = vmatprep.subr.mxu0 0.0
      %639 = vmatpush1.msra.mxu0 0.0
      %640 = vmatprep.subr.mxu0 0.0
      %641 = vmatpush1.msra.mxu0 0.0
      %642 = vmatprep.subr.mxu0 0.0
      %643 = vmatpush1.msra.mxu0 0.0
      %644 = vmatprep.subr.mxu0 0.0
      %645 = vmatpush1.msra.mxu0 0.0
      %646 = vmatprep.subr.mxu0 0.0
      %647 = vmatpush1.msra.mxu0 0.0
      %648 = vmatprep.subr.mxu0 0.0
      %649 = vmatpush1.msra.mxu0 0.0
      %650 = vmatprep.subr.mxu0 0.0
      %651 = vmatpush1.msra.mxu0 0.0
      %652 = vmatprep.subr.mxu0 0.0
      %653 = vmatpush1.msra.mxu0 0.0
      %654 = vmatprep.subr.mxu0 0.0
      %655 = vmatpush1.msra.mxu0 0.0
      %656 = vmatprep.subr.mxu0 0.0
      %657 = vmatpush1.msra.mxu0 0.0
      %658 = vmatprep.subr.mxu0 0.0
      %659 = vmatpush1.msra.mxu0 0.0
      %660 = vmatprep.mubr.f32.mxu0 0.0
      %661 = vmatmul.mubr.f32.gmra.mrb[0].mxu0 %v594
      %v662 = vpop.f32.mrb[0].mxu0
      %v663 = vadd.f32 %v590, %v662
      %v664 = vpop.f32.mrb[0].mxu0
      %665 = vdwg.mxu0
      %s666 = scalar_lea.vmem [#allocation2], 2
      %v667 = vld [vmem:[%s666] ss:$2 sm:$0x7]
      %v668 = vld [vmem:[%s3 + $0x40] sm:$0xff]
      %v669 = vld [vmem:[%s3 + $0x48] sm:$0xff]
      %v670 = vld [vmem:[%s3 + $0x50] sm:$0xff]
      %v671 = vld [vmem:[%s3 + $0x58] sm:$0xff]
      %v673 = vsel %vm499, %v667, 0
      %675 = vmatprep.subr.mxu0 0.0
      %676 = vmatpush1.msra.mxu0 %v668
      %677 = vmatprep.subr.mxu0 0.0
      %678 = vmatpush1.msra.mxu0 %v669
      %679 = vmatprep.subr.mxu0 0.0
      %680 = vmatpush1.msra.mxu0 %v670
      %681 = vmatprep.subr.mxu0 0.0
      %682 = vmatpush1.msra.mxu0 %v671
      %683 = vmatprep.subr.mxu0 0.0
      %684 = vmatpush1.msra.mxu0 0.0
      %685 = vmatprep.subr.mxu0 0.0
      %686 = vmatpush1.msra.mxu0 0.0
      %687 = vmatprep.subr.mxu0 0.0
      %688 = vmatpush1.msra.mxu0 0.0
      %689 = vmatprep.subr.mxu0 0.0
      %690 = vmatpush1.msra.mxu0 0.0
      %691 = vmatprep.subr.mxu0 0.0
      %692 = vmatpush1.msra.mxu0 0.0
      %693 = vmatprep.subr.mxu0 0.0
      %694 = vmatpush1.msra.mxu0 0.0
      %695 = vmatprep.subr.mxu0 0.0
      %696 = vmatpush1.msra.mxu0 0.0
      %697 = vmatprep.subr.mxu0 0.0
      %698 = vmatpush1.msra.mxu0 0.0
      %699 = vmatprep.subr.mxu0 0.0
      %700 = vmatpush1.msra.mxu0 0.0
      %701 = vmatprep.subr.mxu0 0.0
      %702 = vmatpush1.msra.mxu0 0.0
      %703 = vmatprep.subr.mxu0 0.0
      %704 = vmatpush1.msra.mxu0 0.0
      %705 = vmatprep.subr.mxu0 0.0
      %706 = vmatpush1.msra.mxu0 0.0
      %707 = vmatprep.subr.mxu0 0.0
      %708 = vmatpush1.msra.mxu0 0.0
      %709 = vmatprep.subr.mxu0 0.0
      %710 = vmatpush1.msra.mxu0 0.0
      %711 = vmatprep.subr.mxu0 0.0
      %712 = vmatpush1.msra.mxu0 0.0
      %713 = vmatprep.subr.mxu0 0.0
      %714 = vmatpush1.msra.mxu0 0.0
      %715 = vmatprep.subr.mxu0 0.0
      %716 = vmatpush1.msra.mxu0 0.0
      %717 = vmatprep.subr.mxu0 0.0
      %718 = vmatpush1.msra.mxu0 0.0
      %719 = vmatprep.subr.mxu0 0.0
      %720 = vmatpush1.msra.mxu0 0.0
      %721 = vmatprep.subr.mxu0 0.0
      %722 = vmatpush1.msra.mxu0 0.0
      %723 = vmatprep.subr.mxu0 0.0
      %724 = vmatpush1.msra.mxu0 0.0
      %725 = vmatprep.subr.mxu0 0.0
      %726 = vmatpush1.msra.mxu0 0.0
      %727 = vmatprep.subr.mxu0 0.0
      %728 = vmatpush1.msra.mxu0 0.0
      %729 = vmatprep.subr.mxu0 0.0
      %730 = vmatpush1.msra.mxu0 0.0
      %731 = vmatprep.subr.mxu0 0.0
      %732 = vmatpush1.msra.mxu0 0.0
      %733 = vmatprep.subr.mxu0 0.0
      %734 = vmatpush1.msra.mxu0 0.0
      %735 = vmatprep.subr.mxu0 0.0
      %736 = vmatpush1.msra.mxu0 0.0
      %737 = vmatprep.subr.mxu0 0.0
      %738 = vmatpush1.msra.mxu0 0.0
      %739 = vmatprep.mubr.f32.mxu0 0.0
      %740 = vmatmul.mubr.f32.gmra.mrb[0].mxu0 %v673
      %v741 = vpop.f32.mrb[0].mxu0
      %v742 = vadd.f32 0.0, %v741
      %v743 = vpop.f32.mrb[0].mxu0
      %744 = vdwg.mxu0
      %v745 = vadd.f32 %v663, %v742
      %s746 = scalar_lea.vmem [#allocation2], 3
      %v747 = vld [vmem:[%s746] ss:$2 sm:$0x7]
      %v748 = vld [vmem:[%s3 + $0x60] sm:$0xff]
      %v749 = vld [vmem:[%s3 + $0x68] sm:$0xff]
      %v750 = vld [vmem:[%s3 + $0x70] sm:$0xff]
      %v751 = vld [vmem:[%s3 + $0x78] sm:$0xff]
      %v753 = vsel %vm499, %v747, 0
      %755 = vmatprep.subr.mxu0 0.0
      %756 = vmatpush1.msra.mxu0 %v748
      %757 = vmatprep.subr.mxu0 0.0
      %758 = vmatpush1.msra.mxu0 %v749
      %759 = vmatprep.subr.mxu0 0.0
      %760 = vmatpush1.msra.mxu0 %v750
      %761 = vmatprep.subr.mxu0 0.0
      %762 = vmatpush1.msra.mxu0 %v751
      %763 = vmatprep.subr.mxu0 0.0
      %764 = vmatpush1.msra.mxu0 0.0
      %765 = vmatprep.subr.mxu0 0.0
      %766 = vmatpush1.msra.mxu0 0.0
      %767 = vmatprep.subr.mxu0 0.0
      %768 = vmatpush1.msra.mxu0 0.0
      %769 = vmatprep.subr.mxu0 0.0
      %770 = vmatpush1.msra.mxu0 0.0
      %771 = vmatprep.subr.mxu0 0.0
      %772 = vmatpush1.msra.mxu0 0.0
      %773 = vmatprep.subr.mxu0 0.0
      %774 = vmatpush1.msra.mxu0 0.0
      %775 = vmatprep.subr.mxu0 0.0
      %776 = vmatpush1.msra.mxu0 0.0
      %777 = vmatprep.subr.mxu0 0.0
      %778 = vmatpush1.msra.mxu0 0.0
      %779 = vmatprep.subr.mxu0 0.0
      %780 = vmatpush1.msra.mxu0 0.0
      %781 = vmatprep.subr.mxu0 0.0
      %782 = vmatpush1.msra.mxu0 0.0
      %783 = vmatprep.subr.mxu0 0.0
      %784 = vmatpush1.msra.mxu0 0.0
      %785 = vmatprep.subr.mxu0 0.0
      %786 = vmatpush1.msra.mxu0 0.0
      %787 = vmatprep.subr.mxu0 0.0
      %788 = vmatpush1.msra.mxu0 0.0
      %789 = vmatprep.subr.mxu0 0.0
      %790 = vmatpush1.msra.mxu0 0.0
      %791 = vmatprep.subr.mxu0 0.0
      %792 = vmatpush1.msra.mxu0 0.0
      %793 = vmatprep.subr.mxu0 0.0
      %794 = vmatpush1.msra.mxu0 0.0
      %795 = vmatprep.subr.mxu0 0.0
      %796 = vmatpush1.msra.mxu0 0.0
      %797 = vmatprep.subr.mxu0 0.0
      %798 = vmatpush1.msra.mxu0 0.0
      %799 = vmatprep.subr.mxu0 0.0
      %800 = vmatpush1.msra.mxu0 0.0
      %801 = vmatprep.subr.mxu0 0.0
      %802 = vmatpush1.msra.mxu0 0.0
      %803 = vmatprep.subr.mxu0 0.0
      %804 = vmatpush1.msra.mxu0 0.0
      %805 = vmatprep.subr.mxu0 0.0
      %806 = vmatpush1.msra.mxu0 0.0
      %807 = vmatprep.subr.mxu0 0.0
      %808 = vmatpush1.msra.mxu0 0.0
      %809 = vmatprep.subr.mxu0 0.0
      %810 = vmatpush1.msra.mxu0 0.0
      %811 = vmatprep.subr.mxu0 0.0
      %812 = vmatpush1.msra.mxu0 0.0
      %813 = vmatprep.subr.mxu0 0.0
      %814 = vmatpush1.msra.mxu0 0.0
      %815 = vmatprep.subr.mxu0 0.0
      %816 = vmatpush1.msra.mxu0 0.0
      %817 = vmatprep.subr.mxu0 0.0
      %818 = vmatpush1.msra.mxu0 0.0
      %819 = vmatprep.mubr.f32.mxu0 0.0
      %820 = vmatmul.mubr.f32.gmra.mrb[0].mxu0 %v753
      %v821 = vpop.f32.mrb[0].mxu0
      %v822 = vadd.f32 0.0, %v821
      %v823 = vpop.f32.mrb[0].mxu0
      %824 = vdwg.mxu0
      %v825 = vadd.f32 %v745, %v822
      %s826 = scalar_lea.vmem [#allocation2], 8
      %v827 = vld [vmem:[%s826] ss:$2 sm:$0x7]
      %v828 = vld [vmem:[%s3 + $0x80] sm:$0xff]
      %v829 = vld [vmem:[%s3 + $0x88] sm:$0xff]
      %v830 = vld [vmem:[%s3 + $0x90] sm:$0xff]
      %v831 = vld [vmem:[%s3 + $0x98] sm:$0xff]
      %v833 = vsel %vm499, %v827, 0
      %835 = vmatprep.subr.mxu0 0.0
      %836 = vmatpush1.msra.mxu0 %v828
      %837 = vmatprep.subr.mxu0 0.0
      %838 = vmatpush1.msra.mxu0 %v829
      %839 = vmatprep.subr.mxu0 0.0
      %840 = vmatpush1.msra.mxu0 %v830
      %841 = vmatprep.subr.mxu0 0.0
      %842 = vmatpush1.msra.mxu0 %v831
      %843 = vmatprep.subr.mxu0 0.0
      %844 = vmatpush1.msra.mxu0 0.0
      %845 = vmatprep.subr.mxu0 0.0
      %846 = vmatpush1.msra.mxu0 0.0
      %847 = vmatprep.subr.mxu0 0.0
      %848 = vmatpush1.msra.mxu0 0.0
      %849 = vmatprep.subr.mxu0 0.0
      %850 = vmatpush1.msra.mxu0 0.0
      %851 = vmatprep.subr.mxu0 0.0
      %852 = vmatpush1.msra.mxu0 0.0
      %853 = vmatprep.subr.mxu0 0.0
      %854 = vmatpush1.msra.mxu0 0.0
      %855 = vmatprep.subr.mxu0 0.0
      %856 = vmatpush1.msra.mxu0 0.0
      %857 = vmatprep.subr.mxu0 0.0
      %858 = vmatpush1.msra.mxu0 0.0
      %859 = vmatprep.subr.mxu0 0.0
      %860 = vmatpush1.msra.mxu0 0.0
      %861 = vmatprep.subr.mxu0 0.0
      %862 = vmatpush1.msra.mxu0 0.0
      %863 = vmatprep.subr.mxu0 0.0
      %864 = vmatpush1.msra.mxu0 0.0
      %865 = vmatprep.subr.mxu0 0.0
      %866 = vmatpush1.msra.mxu0 0.0
      %867 = vmatprep.subr.mxu0 0.0
      %868 = vmatpush1.msra.mxu0 0.0
      %869 = vmatprep.subr.mxu0 0.0
      %870 = vmatpush1.msra.mxu0 0.0
      %871 = vmatprep.subr.mxu0 0.0
      %872 = vmatpush1.msra.mxu0 0.0
      %873 = vmatprep.subr.mxu0 0.0
      %874 = vmatpush1.msra.mxu0 0.0
      %875 = vmatprep.subr.mxu0 0.0
      %876 = vmatpush1.msra.mxu0 0.0
      %877 = vmatprep.subr.mxu0 0.0
      %878 = vmatpush1.msra.mxu0 0.0
      %879 = vmatprep.subr.mxu0 0.0
      %880 = vmatpush1.msra.mxu0 0.0
      %881 = vmatprep.subr.mxu0 0.0
      %882 = vmatpush1.msra.mxu0 0.0
      %883 = vmatprep.subr.mxu0 0.0
      %884 = vmatpush1.msra.mxu0 0.0
      %885 = vmatprep.subr.mxu0 0.0
      %886 = vmatpush1.msra.mxu0 0.0
      %887 = vmatprep.subr.mxu0 0.0
      %888 = vmatpush1.msra.mxu0 0.0
      %889 = vmatprep.subr.mxu0 0.0
      %890 = vmatpush1.msra.mxu0 0.0
      %891 = vmatprep.subr.mxu0 0.0
      %892 = vmatpush1.msra.mxu0 0.0
      %893 = vmatprep.subr.mxu0 0.0
      %894 = vmatpush1.msra.mxu0 0.0
      %895 = vmatprep.subr.mxu0 0.0
      %896 = vmatpush1.msra.mxu0 0.0
      %897 = vmatprep.subr.mxu0 0.0
      %898 = vmatpush1.msra.mxu0 0.0
      %899 = vmatprep.mubr.f32.mxu0 0.0
      %900 = vmatmul.mubr.f32.gmra.mrb[0].mxu0 %v833
      %v901 = vpop.f32.mrb[0].mxu0
      %v902 = vadd.f32 0.0, %v901
      %v903 = vpop.f32.mrb[0].mxu0
      %904 = vdwg.mxu0
      %v905 = vadd.f32 %v825, %v902
      %s906 = scalar_lea.vmem [#allocation2], 9
      %v907 = vld [vmem:[%s906] ss:$2 sm:$0x7]
      %v908 = vld [vmem:[%s3 + $0xa0] sm:$0xff]
      %v909 = vld [vmem:[%s3 + $0xa8] sm:$0xff]
      %v910 = vld [vmem:[%s3 + $0xb0] sm:$0xff]
      %v911 = vld [vmem:[%s3 + $0xb8] sm:$0xff]
      %v913 = vsel %vm499, %v907, 0
      %915 = vmatprep.subr.mxu0 0.0
      %916 = vmatpush1.msra.mxu0 %v908
      %917 = vmatprep.subr.mxu0 0.0
      %918 = vmatpush1.msra.mxu0 %v909
      %919 = vmatprep.subr.mxu0 0.0
      %920 = vmatpush1.msra.mxu0 %v910
      %921 = vmatprep.subr.mxu0 0.0
      %922 = vmatpush1.msra.mxu0 %v911
      %923 = vmatprep.subr.mxu0 0.0
      %924 = vmatpush1.msra.mxu0 0.0
      %925 = vmatprep.subr.mxu0 0.0
      %926 = vmatpush1.msra.mxu0 0.0
      %927 = vmatprep.subr.mxu0 0.0
      %928 = vmatpush1.msra.mxu0 0.0
      %929 = vmatprep.subr.mxu0 0.0
      %930 = vmatpush1.msra.mxu0 0.0
      %931 = vmatprep.subr.mxu0 0.0
      %932 = vmatpush1.msra.mxu0 0.0
      %933 = vmatprep.subr.mxu0 0.0
      %934 = vmatpush1.msra.mxu0 0.0
      %935 = vmatprep.subr.mxu0 0.0
      %936 = vmatpush1.msra.mxu0 0.0
      %937 = vmatprep.subr.mxu0 0.0
      %938 = vmatpush1.msra.mxu0 0.0
      %939 = vmatprep.subr.mxu0 0.0
      %940 = vmatpush1.msra.mxu0 0.0
      %941 = vmatprep.subr.mxu0 0.0
      %942 = vmatpush1.msra.mxu0 0.0
      %943 = vmatprep.subr.mxu0 0.0
      %944 = vmatpush1.msra.mxu0 0.0
      %945 = vmatprep.subr.mxu0 0.0
      %946 = vmatpush1.msra.mxu0 0.0
      %947 = vmatprep.subr.mxu0 0.0
      %948 = vmatpush1.msra.mxu0 0.0
      %949 = vmatprep.subr.mxu0 0.0
      %950 = vmatpush1.msra.mxu0 0.0
      %951 = vmatprep.subr.mxu0 0.0
      %952 = vmatpush1.msra.mxu0 0.0
      %953 = vmatprep.subr.mxu0 0.0
      %954 = vmatpush1.msra.mxu0 0.0
      %955 = vmatprep.subr.mxu0 0.0
      %956 = vmatpush1.msra.mxu0 0.0
      %957 = vmatprep.subr.mxu0 0.0
      %958 = vmatpush1.msra.mxu0 0.0
      %959 = vmatprep.subr.mxu0 0.0
      %960 = vmatpush1.msra.mxu0 0.0
      %961 = vmatprep.subr.mxu0 0.0
      %962 = vmatpush1.msra.mxu0 0.0
      %963 = vmatprep.subr.mxu0 0.0
      %964 = vmatpush1.msra.mxu0 0.0
      %965 = vmatprep.subr.mxu0 0.0
      %966 = vmatpush1.msra.mxu0 0.0
      %967 = vmatprep.subr.mxu0 0.0
      %968 = vmatpush1.msra.mxu0 0.0
      %969 = vmatprep.subr.mxu0 0.0
      %970 = vmatpush1.msra.mxu0 0.0
      %971 = vmatprep.subr.mxu0 0.0
      %972 = vmatpush1.msra.mxu0 0.0
      %973 = vmatprep.subr.mxu0 0.0
      %974 = vmatpush1.msra.mxu0 0.0
      %975 = vmatprep.subr.mxu0 0.0
      %976 = vmatpush1.msra.mxu0 0.0
      %977 = vmatprep.subr.mxu0 0.0
      %978 = vmatpush1.msra.mxu0 0.0
      %979 = vmatprep.mubr.f32.mxu0 0.0
      %980 = vmatmul.mubr.f32.gmra.mrb[0].mxu0 %v913
      %v981 = vpop.f32.mrb[0].mxu0
      %v982 = vadd.f32 0.0, %v981
      %v983 = vpop.f32.mrb[0].mxu0
      %984 = vdwg.mxu0
      %v985 = vadd.f32 %v905, %v982
      %s986 = scalar_lea.vmem [#allocation2], 10
      %v987 = vld [vmem:[%s986] ss:$2 sm:$0x7]
      %v988 = vld [vmem:[%s3 + $0xc0] sm:$0xff]
      %v989 = vld [vmem:[%s3 + $0xc8] sm:$0xff]
      %v990 = vld [vmem:[%s3 + $0xd0] sm:$0xff]
      %v991 = vld [vmem:[%s3 + $0xd8] sm:$0xff]
      %v993 = vsel %vm499, %v987, 0
      %995 = vmatprep.subr.mxu0 0.0
      %996 = vmatpush1.msra.mxu0 %v988
      %997 = vmatprep.subr.mxu0 0.0
      %998 = vmatpush1.msra.mxu0 %v989
      %999 = vmatprep.subr.mxu0 0.0
      %1000 = vmatpush1.msra.mxu0 %v990
      %1001 = vmatprep.subr.mxu0 0.0
      %1002 = vmatpush1.msra.mxu0 %v991
      %1003 = vmatprep.subr.mxu0 0.0
      %1004 = vmatpush1.msra.mxu0 0.0
      %1005 = vmatprep.subr.mxu0 0.0
      %1006 = vmatpush1.msra.mxu0 0.0
      %1007 = vmatprep.subr.mxu0 0.0
      %1008 = vmatpush1.msra.mxu0 0.0
      %1009 = vmatprep.subr.mxu0 0.0
      %1010 = vmatpush1.msra.mxu0 0.0
      %1011 = vmatprep.subr.mxu0 0.0
      %1012 = vmatpush1.msra.mxu0 0.0
      %1013 = vmatprep.subr.mxu0 0.0
      %1014 = vmatpush1.msra.mxu0 0.0
      %1015 = vmatprep.subr.mxu0 0.0
      %1016 = vmatpush1.msra.mxu0 0.0
      %1017 = vmatprep.subr.mxu0 0.0
      %1018 = vmatpush1.msra.mxu0 0.0
      %1019 = vmatprep.subr.mxu0 0.0
      %1020 = vmatpush1.msra.mxu0 0.0
      %1021 = vmatprep.subr.mxu0 0.0
      %1022 = vmatpush1.msra.mxu0 0.0
      %1023 = vmatprep.subr.mxu0 0.0
      %1024 = vmatpush1.msra.mxu0 0.0
      %1025 = vmatprep.subr.mxu0 0.0
      %1026 = vmatpush1.msra.mxu0 0.0
      %1027 = vmatprep.subr.mxu0 0.0
      %1028 = vmatpush1.msra.mxu0 0.0
      %1029 = vmatprep.subr.mxu0 0.0
      %1030 = vmatpush1.msra.mxu0 0.0
      %1031 = vmatprep.subr.mxu0 0.0
      %1032 = vmatpush1.msra.mxu0 0.0
      %1033 = vmatprep.subr.mxu0 0.0
      %1034 = vmatpush1.msra.mxu0 0.0
      %1035 = vmatprep.subr.mxu0 0.0
      %1036 = vmatpush1.msra.mxu0 0.0
      %1037 = vmatprep.subr.mxu0 0.0
      %1038 = vmatpush1.msra.mxu0 0.0
      %1039 = vmatprep.subr.mxu0 0.0
      %1040 = vmatpush1.msra.mxu0 0.0
      %1041 = vmatprep.subr.mxu0 0.0
      %1042 = vmatpush1.msra.mxu0 0.0
      %1043 = vmatprep.subr.mxu0 0.0
      %1044 = vmatpush1.msra.mxu0 0.0
      %1045 = vmatprep.subr.mxu0 0.0
      %1046 = vmatpush1.msra.mxu0 0.0
      %1047 = vmatprep.subr.mxu0 0.0
      %1048 = vmatpush1.msra.mxu0 0.0
      %1049 = vmatprep.subr.mxu0 0.0
      %1050 = vmatpush1.msra.mxu0 0.0
      %1051 = vmatprep.subr.mxu0 0.0
      %1052 = vmatpush1.msra.mxu0 0.0
      %1053 = vmatprep.subr.mxu0 0.0
      %1054 = vmatpush1.msra.mxu0 0.0
      %1055 = vmatprep.subr.mxu0 0.0
      %1056 = vmatpush1.msra.mxu0 0.0
      %1057 = vmatprep.subr.mxu0 0.0
      %1058 = vmatpush1.msra.mxu0 0.0
      %1059 = vmatprep.mubr.f32.mxu0 0.0
      %1060 = vmatmul.mubr.f32.gmra.mrb[0].mxu0 %v993
      %v1061 = vpop.f32.mrb[0].mxu0
      %v1062 = vadd.f32 0.0, %v1061
      %v1063 = vpop.f32.mrb[0].mxu0
      %1064 = vdwg.mxu0
      %v1065 = vadd.f32 %v985, %v1062
      %s1066 = scalar_lea.vmem [#allocation2], 11
      %v1067 = vld [vmem:[%s1066] ss:$2 sm:$0x7]
      %v1068 = vld [vmem:[%s3 + $0xe0] sm:$0xff]
      %v1069 = vld [vmem:[%s3 + $0xe8] sm:$0xff]
      %v1070 = vld [vmem:[%s3 + $0xf0] sm:$0xff]
      %v1071 = vld [vmem:[%s3 + $0xf8] sm:$0xff]
      %v1073 = vsel %vm499, %v1067, 0
      %1075 = vmatprep.subr.mxu0 0.0
      %1076 = vmatpush1.msra.mxu0 %v1068
      %1077 = vmatprep.subr.mxu0 0.0
      %1078 = vmatpush1.msra.mxu0 %v1069
      %1079 = vmatprep.subr.mxu0 0.0
      %1080 = vmatpush1.msra.mxu0 %v1070
      %1081 = vmatprep.subr.mxu0 0.0
      %1082 = vmatpush1.msra.mxu0 %v1071
      %1083 = vmatprep.subr.mxu0 0.0
      %1084 = vmatpush1.msra.mxu0 0.0
      %1085 = vmatprep.subr.mxu0 0.0
      %1086 = vmatpush1.msra.mxu0 0.0
      %1087 = vmatprep.subr.mxu0 0.0
      %1088 = vmatpush1.msra.mxu0 0.0
      %1089 = vmatprep.subr.mxu0 0.0
      %1090 = vmatpush1.msra.mxu0 0.0
      %1091 = vmatprep.subr.mxu0 0.0
      %1092 = vmatpush1.msra.mxu0 0.0
      %1093 = vmatprep.subr.mxu0 0.0
      %1094 = vmatpush1.msra.mxu0 0.0
      %1095 = vmatprep.subr.mxu0 0.0
      %1096 = vmatpush1.msra.mxu0 0.0
      %1097 = vmatprep.subr.mxu0 0.0
      %1098 = vmatpush1.msra.mxu0 0.0
      %1099 = vmatprep.subr.mxu0 0.0
      %1100 = vmatpush1.msra.mxu0 0.0
      %1101 = vmatprep.subr.mxu0 0.0
      %1102 = vmatpush1.msra.mxu0 0.0
      %1103 = vmatprep.subr.mxu0 0.0
      %1104 = vmatpush1.msra.mxu0 0.0
      %1105 = vmatprep.subr.mxu0 0.0
      %1106 = vmatpush1.msra.mxu0 0.0
      %1107 = vmatprep.subr.mxu0 0.0
      %1108 = vmatpush1.msra.mxu0 0.0
      %1109 = vmatprep.subr.mxu0 0.0
      %1110 = vmatpush1.msra.mxu0 0.0
      %1111 = vmatprep.subr.mxu0 0.0
      %1112 = vmatpush1.msra.mxu0 0.0
      %1113 = vmatprep.subr.mxu0 0.0
      %1114 = vmatpush1.msra.mxu0 0.0
      %1115 = vmatprep.subr.mxu0 0.0
      %1116 = vmatpush1.msra.mxu0 0.0
      %1117 = vmatprep.subr.mxu0 0.0
      %1118 = vmatpush1.msra.mxu0 0.0
      %1119 = vmatprep.subr.mxu0 0.0
      %1120 = vmatpush1.msra.mxu0 0.0
      %1121 = vmatprep.subr.mxu0 0.0
      %1122 = vmatpush1.msra.mxu0 0.0
      %1123 = vmatprep.subr.mxu0 0.0
      %1124 = vmatpush1.msra.mxu0 0.0
      %1125 = vmatprep.subr.mxu0 0.0
      %1126 = vmatpush1.msra.mxu0 0.0
      %1127 = vmatprep.subr.mxu0 0.0
      %1128 = vmatpush1.msra.mxu0 0.0
      %1129 = vmatprep.subr.mxu0 0.0
      %1130 = vmatpush1.msra.mxu0 0.0
      %1131 = vmatprep.subr.mxu0 0.0
      %1132 = vmatpush1.msra.mxu0 0.0
      %1133 = vmatprep.subr.mxu0 0.0
      %1134 = vmatpush1.msra.mxu0 0.0
      %1135 = vmatprep.subr.mxu0 0.0
      %1136 = vmatpush1.msra.mxu0 0.0
      %1137 = vmatprep.subr.mxu0 0.0
      %1138 = vmatpush1.msra.mxu0 0.0
      %1139 = vmatprep.mubr.f32.mxu0 0.0
      %1140 = vmatmul.mubr.f32.gmra.mrb[0].mxu0 %v1073
      %v1141 = vpop.f32.mrb[0].mxu0
      %v1142 = vadd.f32 0.0, %v1141
      %v1143 = vpop.f32.mrb[0].mxu0
      %1144 = vdwg.mxu0
      %v1145 = vadd.f32 %v1065, %v1142
      %s1146 = scalar_lea.vmem [#allocation2], 16
      %v1147 = vld [vmem:[%s1146] ss:$2 sm:$0x7]
      %v1148 = vld [vmem:[%s3 + $0x100] sm:$0xff]
      %v1149 = vld [vmem:[%s3 + $0x108] sm:$0xff]
      %v1150 = vld [vmem:[%s3 + $0x110] sm:$0xff]
      %v1151 = vld [vmem:[%s3 + $0x118] sm:$0xff]
      %v1153 = vsel %vm499, %v1147, 0
      %1155 = vmatprep.subr.mxu0 0.0
      %1156 = vmatpush1.msra.mxu0 %v1148
      %1157 = vmatprep.subr.mxu0 0.0
      %1158 = vmatpush1.msra.mxu0 %v1149
      %1159 = vmatprep.subr.mxu0 0.0
      %1160 = vmatpush1.msra.mxu0 %v1150
      %1161 = vmatprep.subr.mxu0 0.0
      %1162 = vmatpush1.msra.mxu0 %v1151
      %1163 = vmatprep.subr.mxu0 0.0
      %1164 = vmatpush1.msra.mxu0 0.0
      %1165 = vmatprep.subr.mxu0 0.0
      %1166 = vmatpush1.msra.mxu0 0.0
      %1167 = vmatprep.subr.mxu0 0.0
      %1168 = vmatpush1.msra.mxu0 0.0
      %1169 = vmatprep.subr.mxu0 0.0
      %1170 = vmatpush1.msra.mxu0 0.0
      %1171 = vmatprep.subr.mxu0 0.0
      %1172 = vmatpush1.msra.mxu0 0.0
      %1173 = vmatprep.subr.mxu0 0.0
      %1174 = vmatpush1.msra.mxu0 0.0
      %1175 = vmatprep.subr.mxu0 0.0
      %1176 = vmatpush1.msra.mxu0 0.0
      %1177 = vmatprep.subr.mxu0 0.0
      %1178 = vmatpush1.msra.mxu0 0.0
      %1179 = vmatprep.subr.mxu0 0.0
      %1180 = vmatpush1.msra.mxu0 0.0
      %1181 = vmatprep.subr.mxu0 0.0
      %1182 = vmatpush1.msra.mxu0 0.0
      %1183 = vmatprep.subr.mxu0 0.0
      %1184 = vmatpush1.msra.mxu0 0.0
      %1185 = vmatprep.subr.mxu0 0.0
      %1186 = vmatpush1.msra.mxu0 0.0
      %1187 = vmatprep.subr.mxu0 0.0
      %1188 = vmatpush1.msra.mxu0 0.0
      %1189 = vmatprep.subr.mxu0 0.0
      %1190 = vmatpush1.msra.mxu0 0.0
      %1191 = vmatprep.subr.mxu0 0.0
      %1192 = vmatpush1.msra.mxu0 0.0
      %1193 = vmatprep.subr.mxu0 0.0
      %1194 = vmatpush1.msra.mxu0 0.0
      %1195 = vmatprep.subr.mxu0 0.0
      %1196 = vmatpush1.msra.mxu0 0.0
      %1197 = vmatprep.subr.mxu0 0.0
      %1198 = vmatpush1.msra.mxu0 0.0
      %1199 = vmatprep.subr.mxu0 0.0
      %1200 = vmatpush1.msra.mxu0 0.0
      %1201 = vmatprep.subr.mxu0 0.0
      %1202 = vmatpush1.msra.mxu0 0.0
      %1203 = vmatprep.subr.mxu0 0.0
      %1204 = vmatpush1.msra.mxu0 0.0
      %1205 = vmatprep.subr.mxu0 0.0
      %1206 = vmatpush1.msra.mxu0 0.0
      %1207 = vmatprep.subr.mxu0 0.0
      %1208 = vmatpush1.msra.mxu0 0.0
      %1209 = vmatprep.subr.mxu0 0.0
      %1210 = vmatpush1.msra.mxu0 0.0
      %1211 = vmatprep.subr.mxu0 0.0
      %1212 = vmatpush1.msra.mxu0 0.0
      %1213 = vmatprep.subr.mxu0 0.0
      %1214 = vmatpush1.msra.mxu0 0.0
      %1215 = vmatprep.subr.mxu0 0.0
      %1216 = vmatpush1.msra.mxu0 0.0
      %1217 = vmatprep.subr.mxu0 0.0
      %1218 = vmatpush1.msra.mxu0 0.0
      %1219 = vmatprep.mubr.f32.mxu0 0.0
      %1220 = vmatmul.mubr.f32.gmra.mrb[0].mxu0 %v1153
      %v1221 = vpop.f32.mrb[0].mxu0
      %v1222 = vadd.f32 0.0, %v1221
      %v1223 = vpop.f32.mrb[0].mxu0
      %1224 = vdwg.mxu0
      %v1225 = vadd.f32 %v1145, %v1222
      %s1226 = scalar_lea.vmem [#allocation2], 17
      %v1227 = vld [vmem:[%s1226] ss:$2 sm:$0x7]
      %v1228 = vld [vmem:[%s3 + $0x120] sm:$0xff]
      %v1229 = vld [vmem:[%s3 + $0x128] sm:$0xff]
      %v1230 = vld [vmem:[%s3 + $0x130] sm:$0xff]
      %v1231 = vld [vmem:[%s3 + $0x138] sm:$0xff]
      %v1233 = vsel %vm499, %v1227, 0
      %1235 = vmatprep.subr.mxu0 0.0
      %1236 = vmatpush1.msra.mxu0 %v1228
      %1237 = vmatprep.subr.mxu0 0.0
      %1238 = vmatpush1.msra.mxu0 %v1229
      %1239 = vmatprep.subr.mxu0 0.0
      %1240 = vmatpush1.msra.mxu0 %v1230
      %1241 = vmatprep.subr.mxu0 0.0
      %1242 = vmatpush1.msra.mxu0 %v1231
      %1243 = vmatprep.subr.mxu0 0.0
      %1244 = vmatpush1.msra.mxu0 0.0
      %1245 = vmatprep.subr.mxu0 0.0
      %1246 = vmatpush1.msra.mxu0 0.0
      %1247 = vmatprep.subr.mxu0 0.0
      %1248 = vmatpush1.msra.mxu0 0.0
      %1249 = vmatprep.subr.mxu0 0.0
      %1250 = vmatpush1.msra.mxu0 0.0
      %1251 = vmatprep.subr.mxu0 0.0
      %1252 = vmatpush1.msra.mxu0 0.0
      %1253 = vmatprep.subr.mxu0 0.0
      %1254 = vmatpush1.msra.mxu0 0.0
      %1255 = vmatprep.subr.mxu0 0.0
      %1256 = vmatpush1.msra.mxu0 0.0
      %1257 = vmatprep.subr.mxu0 0.0
      %1258 = vmatpush1.msra.mxu0 0.0
      %1259 = vmatprep.subr.mxu0 0.0
      %1260 = vmatpush1.msra.mxu0 0.0
      %1261 = vmatprep.subr.mxu0 0.0
      %1262 = vmatpush1.msra.mxu0 0.0
      %1263 = vmatprep.subr.mxu0 0.0
      %1264 = vmatpush1.msra.mxu0 0.0
      %1265 = vmatprep.subr.mxu0 0.0
      %1266 = vmatpush1.msra.mxu0 0.0
      %1267 = vmatprep.subr.mxu0 0.0
      %1268 = vmatpush1.msra.mxu0 0.0
      %1269 = vmatprep.subr.mxu0 0.0
      %1270 = vmatpush1.msra.mxu0 0.0
      %1271 = vmatprep.subr.mxu0 0.0
      %1272 = vmatpush1.msra.mxu0 0.0
      %1273 = vmatprep.subr.mxu0 0.0
      %1274 = vmatpush1.msra.mxu0 0.0
      %1275 = vmatprep.subr.mxu0 0.0
      %1276 = vmatpush1.msra.mxu0 0.0
      %1277 = vmatprep.subr.mxu0 0.0
      %1278 = vmatpush1.msra.mxu0 0.0
      %1279 = vmatprep.subr.mxu0 0.0
      %1280 = vmatpush1.msra.mxu0 0.0
      %1281 = vmatprep.subr.mxu0 0.0
      %1282 = vmatpush1.msra.mxu0 0.0
      %1283 = vmatprep.subr.mxu0 0.0
      %1284 = vmatpush1.msra.mxu0 0.0
      %1285 = vmatprep.subr.mxu0 0.0
      %1286 = vmatpush1.msra.mxu0 0.0
      %1287 = vmatprep.subr.mxu0 0.0
      %1288 = vmatpush1.msra.mxu0 0.0
      %1289 = vmatprep.subr.mxu0 0.0
      %1290 = vmatpush1.msra.mxu0 0.0
      %1291 = vmatprep.subr.mxu0 0.0
      %1292 = vmatpush1.msra.mxu0 0.0
      %1293 = vmatprep.subr.mxu0 0.0
      %1294 = vmatpush1.msra.mxu0 0.0
      %1295 = vmatprep.subr.mxu0 0.0
      %1296 = vmatpush1.msra.mxu0 0.0
      %1297 = vmatprep.subr.mxu0 0.0
      %1298 = vmatpush1.msra.mxu0 0.0
      %1299 = vmatprep.mubr.f32.mxu0 0.0
      %1300 = vmatmul.mubr.f32.gmra.mrb[0].mxu0 %v1233
      %v1301 = vpop.f32.mrb[0].mxu0
      %v1302 = vadd.f32 0.0, %v1301
      %v1303 = vpop.f32.mrb[0].mxu0
      %1304 = vdwg.mxu0
      %v1305 = vadd.f32 %v1225, %v1302
      %s1306 = scalar_lea.vmem [#allocation2], 18
      %v1307 = vld [vmem:[%s1306] ss:$2 sm:$0x7]
      %v1308 = vld [vmem:[%s3 + $0x140] sm:$0xff]
      %v1309 = vld [vmem:[%s3 + $0x148] sm:$0xff]
      %v1310 = vld [vmem:[%s3 + $0x150] sm:$0xff]
      %v1311 = vld [vmem:[%s3 + $0x158] sm:$0xff]
      %v1313 = vsel %vm499, %v1307, 0
      %1315 = vmatprep.subr.mxu0 0.0
      %1316 = vmatpush1.msra.mxu0 %v1308
      %1317 = vmatprep.subr.mxu0 0.0
      %1318 = vmatpush1.msra.mxu0 %v1309
      %1319 = vmatprep.subr.mxu0 0.0
      %1320 = vmatpush1.msra.mxu0 %v1310
      %1321 = vmatprep.subr.mxu0 0.0
      %1322 = vmatpush1.msra.mxu0 %v1311
      %1323 = vmatprep.subr.mxu0 0.0
      %1324 = vmatpush1.msra.mxu0 0.0
      %1325 = vmatprep.subr.mxu0 0.0
      %1326 = vmatpush1.msra.mxu0 0.0
      %1327 = vmatprep.subr.mxu0 0.0
      %1328 = vmatpush1.msra.mxu0 0.0
      %1329 = vmatprep.subr.mxu0 0.0
      %1330 = vmatpush1.msra.mxu0 0.0
      %1331 = vmatprep.subr.mxu0 0.0
      %1332 = vmatpush1.msra.mxu0 0.0
      %1333 = vmatprep.subr.mxu0 0.0
      %1334 = vmatpush1.msra.mxu0 0.0
      %1335 = vmatprep.subr.mxu0 0.0
      %1336 = vmatpush1.msra.mxu0 0.0
      %1337 = vmatprep.subr.mxu0 0.0
      %1338 = vmatpush1.msra.mxu0 0.0
      %1339 = vmatprep.subr.mxu0 0.0
      %1340 = vmatpush1.msra.mxu0 0.0
      %1341 = vmatprep.subr.mxu0 0.0
      %1342 = vmatpush1.msra.mxu0 0.0
      %1343 = vmatprep.subr.mxu0 0.0
      %1344 = vmatpush1.msra.mxu0 0.0
      %1345 = vmatprep.subr.mxu0 0.0
      %1346 = vmatpush1.msra.mxu0 0.0
      %1347 = vmatprep.subr.mxu0 0.0
      %1348 = vmatpush1.msra.mxu0 0.0
      %1349 = vmatprep.subr.mxu0 0.0
      %1350 = vmatpush1.msra.mxu0 0.0
      %1351 = vmatprep.subr.mxu0 0.0
      %1352 = vmatpush1.msra.mxu0 0.0
      %1353 = vmatprep.subr.mxu0 0.0
      %1354 = vmatpush1.msra.mxu0 0.0
      %1355 = vmatprep.subr.mxu0 0.0
      %1356 = vmatpush1.msra.mxu0 0.0
      %1357 = vmatprep.subr.mxu0 0.0
      %1358 = vmatpush1.msra.mxu0 0.0
      %1359 = vmatprep.subr.mxu0 0.0
      %1360 = vmatpush1.msra.mxu0 0.0
      %1361 = vmatprep.subr.mxu0 0.0
      %1362 = vmatpush1.msra.mxu0 0.0
      %1363 = vmatprep.subr.mxu0 0.0
      %1364 = vmatpush1.msra.mxu0 0.0
      %1365 = vmatprep.subr.mxu0 0.0
      %1366 = vmatpush1.msra.mxu0 0.0
      %1367 = vmatprep.subr.mxu0 0.0
      %1368 = vmatpush1.msra.mxu0 0.0
      %1369 = vmatprep.subr.mxu0 0.0
      %1370 = vmatpush1.msra.mxu0 0.0
      %1371 = vmatprep.subr.mxu0 0.0
      %1372 = vmatpush1.msra.mxu0 0.0
      %1373 = vmatprep.subr.mxu0 0.0
      %1374 = vmatpush1.msra.mxu0 0.0
      %1375 = vmatprep.subr.mxu0 0.0
      %1376 = vmatpush1.msra.mxu0 0.0
      %1377 = vmatprep.subr.mxu0 0.0
      %1378 = vmatpush1.msra.mxu0 0.0
      %1379 = vmatprep.mubr.f32.mxu0 0.0
      %1380 = vmatmul.mubr.f32.gmra.mrb[0].mxu0 %v1313
      %v1381 = vpop.f32.mrb[0].mxu0
      %v1382 = vadd.f32 0.0, %v1381
      %v1383 = vpop.f32.mrb[0].mxu0
      %1384 = vdwg.mxu0
      %v1385 = vadd.f32 %v1305, %v1382
      %s1386 = scalar_lea.vmem [#allocation2], 19
      %v1387 = vld [vmem:[%s1386] ss:$2 sm:$0x7]
      %v1388 = vld [vmem:[%s3 + $0x160] sm:$0xff]
      %v1389 = vld [vmem:[%s3 + $0x168] sm:$0xff]
      %v1390 = vld [vmem:[%s3 + $0x170] sm:$0xff]
      %v1391 = vld [vmem:[%s3 + $0x178] sm:$0xff]
      %v1393 = vsel %vm499, %v1387, 0
      %1395 = vmatprep.subr.mxu0 0.0
      %1396 = vmatpush1.msra.mxu0 %v1388
      %1397 = vmatprep.subr.mxu0 0.0
      %1398 = vmatpush1.msra.mxu0 %v1389
      %1399 = vmatprep.subr.mxu0 0.0
      %1400 = vmatpush1.msra.mxu0 %v1390
      %1401 = vmatprep.subr.mxu0 0.0
      %1402 = vmatpush1.msra.mxu0 %v1391
      %1403 = vmatprep.subr.mxu0 0.0
      %1404 = vmatpush1.msra.mxu0 0.0
      %1405 = vmatprep.subr.mxu0 0.0
      %1406 = vmatpush1.msra.mxu0 0.0
      %1407 = vmatprep.subr.mxu0 0.0
      %1408 = vmatpush1.msra.mxu0 0.0
      %1409 = vmatprep.subr.mxu0 0.0
      %1410 = vmatpush1.msra.mxu0 0.0
      %1411 = vmatprep.subr.mxu0 0.0
      %1412 = vmatpush1.msra.mxu0 0.0
      %1413 = vmatprep.subr.mxu0 0.0
      %1414 = vmatpush1.msra.mxu0 0.0
      %1415 = vmatprep.subr.mxu0 0.0
      %1416 = vmatpush1.msra.mxu0 0.0
      %1417 = vmatprep.subr.mxu0 0.0
      %1418 = vmatpush1.msra.mxu0 0.0
      %1419 = vmatprep.subr.mxu0 0.0
      %1420 = vmatpush1.msra.mxu0 0.0
      %1421 = vmatprep.subr.mxu0 0.0
      %1422 = vmatpush1.msra.mxu0 0.0
      %1423 = vmatprep.subr.mxu0 0.0
      %1424 = vmatpush1.msra.mxu0 0.0
      %1425 = vmatprep.subr.mxu0 0.0
      %1426 = vmatpush1.msra.mxu0 0.0
      %1427 = vmatprep.subr.mxu0 0.0
      %1428 = vmatpush1.msra.mxu0 0.0
      %1429 = vmatprep.subr.mxu0 0.0
      %1430 = vmatpush1.msra.mxu0 0.0
      %1431 = vmatprep.subr.mxu0 0.0
      %1432 = vmatpush1.msra.mxu0 0.0
      %1433 = vmatprep.subr.mxu0 0.0
      %1434 = vmatpush1.msra.mxu0 0.0
      %1435 = vmatprep.subr.mxu0 0.0
      %1436 = vmatpush1.msra.mxu0 0.0
      %1437 = vmatprep.subr.mxu0 0.0
      %1438 = vmatpush1.msra.mxu0 0.0
      %1439 = vmatprep.subr.mxu0 0.0
      %1440 = vmatpush1.msra.mxu0 0.0
      %1441 = vmatprep.subr.mxu0 0.0
      %1442 = vmatpush1.msra.mxu0 0.0
      %1443 = vmatprep.subr.mxu0 0.0
      %1444 = vmatpush1.msra.mxu0 0.0
      %1445 = vmatprep.subr.mxu0 0.0
      %1446 = vmatpush1.msra.mxu0 0.0
      %1447 = vmatprep.subr.mxu0 0.0
      %1448 = vmatpush1.msra.mxu0 0.0
      %1449 = vmatprep.subr.mxu0 0.0
      %1450 = vmatpush1.msra.mxu0 0.0
      %1451 = vmatprep.subr.mxu0 0.0
      %1452 = vmatpush1.msra.mxu0 0.0
      %1453 = vmatprep.subr.mxu0 0.0
      %1454 = vmatpush1.msra.mxu0 0.0
      %1455 = vmatprep.subr.mxu0 0.0
      %1456 = vmatpush1.msra.mxu0 0.0
      %1457 = vmatprep.subr.mxu0 0.0
      %1458 = vmatpush1.msra.mxu0 0.0
      %1459 = vmatprep.mubr.f32.mxu0 0.0
      %1460 = vmatmul.mubr.f32.gmra.mrb[0].mxu0 %v1393
      %v1461 = vpop.f32.mrb[0].mxu0
      %v1462 = vadd.f32 0.0, %v1461
      %v1463 = vpop.f32.mrb[0].mxu0
      %1464 = vdwg.mxu0
      %v1465 = vadd.f32 %v1385, %v1462
      %s1466 = scalar_lea.vmem [#allocation2], 24
      %v1467 = vld [vmem:[%s1466] ss:$2 sm:$0x7]
      %v1468 = vld [vmem:[%s3 + $0x180] sm:$0xff]
      %v1469 = vld [vmem:[%s3 + $0x188] sm:$0xff]
      %v1470 = vld [vmem:[%s3 + $0x190] sm:$0xff]
      %v1471 = vld [vmem:[%s3 + $0x198] sm:$0xff]
      %v1473 = vsel %vm499, %v1467, 0
      %1475 = vmatprep.subr.mxu0 0.0
      %1476 = vmatpush1.msra.mxu0 %v1468
      %1477 = vmatprep.subr.mxu0 0.0
      %1478 = vmatpush1.msra.mxu0 %v1469
      %1479 = vmatprep.subr.mxu0 0.0
      %1480 = vmatpush1.msra.mxu0 %v1470
      %1481 = vmatprep.subr.mxu0 0.0
      %1482 = vmatpush1.msra.mxu0 %v1471
      %1483 = vmatprep.subr.mxu0 0.0
      %1484 = vmatpush1.msra.mxu0 0.0
      %1485 = vmatprep.subr.mxu0 0.0
      %1486 = vmatpush1.msra.mxu0 0.0
      %1487 = vmatprep.subr.mxu0 0.0
      %1488 = vmatpush1.msra.mxu0 0.0
      %1489 = vmatprep.subr.mxu0 0.0
      %1490 = vmatpush1.msra.mxu0 0.0
      %1491 = vmatprep.subr.mxu0 0.0
      %1492 = vmatpush1.msra.mxu0 0.0
      %1493 = vmatprep.subr.mxu0 0.0
      %1494 = vmatpush1.msra.mxu0 0.0
      %1495 = vmatprep.subr.mxu0 0.0
      %1496 = vmatpush1.msra.mxu0 0.0
      %1497 = vmatprep.subr.mxu0 0.0
      %1498 = vmatpush1.msra.mxu0 0.0
      %1499 = vmatprep.subr.mxu0 0.0
      %1500 = vmatpush1.msra.mxu0 0.0
      %1501 = vmatprep.subr.mxu0 0.0
      %1502 = vmatpush1.msra.mxu0 0.0
      %1503 = vmatprep.subr.mxu0 0.0
      %1504 = vmatpush1.msra.mxu0 0.0
      %1505 = vmatprep.subr.mxu0 0.0
      %1506 = vmatpush1.msra.mxu0 0.0
      %1507 = vmatprep.subr.mxu0 0.0
      %1508 = vmatpush1.msra.mxu0 0.0
      %1509 = vmatprep.subr.mxu0 0.0
      %1510 = vmatpush1.msra.mxu0 0.0
      %1511 = vmatprep.subr.mxu0 0.0
      %1512 = vmatpush1.msra.mxu0 0.0
      %1513 = vmatprep.subr.mxu0 0.0
      %1514 = vmatpush1.msra.mxu0 0.0
      %1515 = vmatprep.subr.mxu0 0.0
      %1516 = vmatpush1.msra.mxu0 0.0
      %1517 = vmatprep.subr.mxu0 0.0
      %1518 = vmatpush1.msra.mxu0 0.0
      %1519 = vmatprep.subr.mxu0 0.0
      %1520 = vmatpush1.msra.mxu0 0.0
      %1521 = vmatprep.subr.mxu0 0.0
      %1522 = vmatpush1.msra.mxu0 0.0
      %1523 = vmatprep.subr.mxu0 0.0
      %1524 = vmatpush1.msra.mxu0 0.0
      %1525 = vmatprep.subr.mxu0 0.0
      %1526 = vmatpush1.msra.mxu0 0.0
      %1527 = vmatprep.subr.mxu0 0.0
      %1528 = vmatpush1.msra.mxu0 0.0
      %1529 = vmatprep.subr.mxu0 0.0
      %1530 = vmatpush1.msra.mxu0 0.0
      %1531 = vmatprep.subr.mxu0 0.0
      %1532 = vmatpush1.msra.mxu0 0.0
      %1533 = vmatprep.subr.mxu0 0.0
      %1534 = vmatpush1.msra.mxu0 0.0
      %1535 = vmatprep.subr.mxu0 0.0
      %1536 = vmatpush1.msra.mxu0 0.0
      %1537 = vmatprep.subr.mxu0 0.0
      %1538 = vmatpush1.msra.mxu0 0.0
      %1539 = vmatprep.mubr.f32.mxu0 0.0
      %1540 = vmatmul.mubr.f32.gmra.mrb[0].mxu0 %v1473
      %v1541 = vpop.f32.mrb[0].mxu0
      %v1542 = vadd.f32 0.0, %v1541
      %v1543 = vpop.f32.mrb[0].mxu0
      %1544 = vdwg.mxu0
      %v1545 = vadd.f32 %v1465, %v1542
      %s1546 = scalar_lea.vmem [#allocation2], 25
      %v1547 = vld [vmem:[%s1546] ss:$2 sm:$0x7]
      %v1548 = vld [vmem:[%s3 + $0x1a0] sm:$0xff]
      %v1549 = vld [vmem:[%s3 + $0x1a8] sm:$0xff]
      %v1550 = vld [vmem:[%s3 + $0x1b0] sm:$0xff]
      %v1551 = vld [vmem:[%s3 + $0x1b8] sm:$0xff]
      %v1553 = vsel %vm499, %v1547, 0
      %1555 = vmatprep.subr.mxu0 0.0
      %1556 = vmatpush1.msra.mxu0 %v1548
      %1557 = vmatprep.subr.mxu0 0.0
      %1558 = vmatpush1.msra.mxu0 %v1549
      %1559 = vmatprep.subr.mxu0 0.0
      %1560 = vmatpush1.msra.mxu0 %v1550
      %1561 = vmatprep.subr.mxu0 0.0
      %1562 = vmatpush1.msra.mxu0 %v1551
      %1563 = vmatprep.subr.mxu0 0.0
      %1564 = vmatpush1.msra.mxu0 0.0
      %1565 = vmatprep.subr.mxu0 0.0
      %1566 = vmatpush1.msra.mxu0 0.0
      %1567 = vmatprep.subr.mxu0 0.0
      %1568 = vmatpush1.msra.mxu0 0.0
      %1569 = vmatprep.subr.mxu0 0.0
      %1570 = vmatpush1.msra.mxu0 0.0
      %1571 = vmatprep.subr.mxu0 0.0
      %1572 = vmatpush1.msra.mxu0 0.0
      %1573 = vmatprep.subr.mxu0 0.0
      %1574 = vmatpush1.msra.mxu0 0.0
      %1575 = vmatprep.subr.mxu0 0.0
      %1576 = vmatpush1.msra.mxu0 0.0
      %1577 = vmatprep.subr.mxu0 0.0
      %1578 = vmatpush1.msra.mxu0 0.0
      %1579 = vmatprep.subr.mxu0 0.0
      %1580 = vmatpush1.msra.mxu0 0.0
      %1581 = vmatprep.subr.mxu0 0.0
      %1582 = vmatpush1.msra.mxu0 0.0
      %1583 = vmatprep.subr.mxu0 0.0
      %1584 = vmatpush1.msra.mxu0 0.0
      %1585 = vmatprep.subr.mxu0 0.0
      %1586 = vmatpush1.msra.mxu0 0.0
      %1587 = vmatprep.subr.mxu0 0.0
      %1588 = vmatpush1.msra.mxu0 0.0
      %1589 = vmatprep.subr.mxu0 0.0
      %1590 = vmatpush1.msra.mxu0 0.0
      %1591 = vmatprep.subr.mxu0 0.0
      %1592 = vmatpush1.msra.mxu0 0.0
      %1593 = vmatprep.subr.mxu0 0.0
      %1594 = vmatpush1.msra.mxu0 0.0
      %1595 = vmatprep.subr.mxu0 0.0
      %1596 = vmatpush1.msra.mxu0 0.0
      %1597 = vmatprep.subr.mxu0 0.0
      %1598 = vmatpush1.msra.mxu0 0.0
      %1599 = vmatprep.subr.mxu0 0.0
      %1600 = vmatpush1.msra.mxu0 0.0
      %1601 = vmatprep.subr.mxu0 0.0
      %1602 = vmatpush1.msra.mxu0 0.0
      %1603 = vmatprep.subr.mxu0 0.0
      %1604 = vmatpush1.msra.mxu0 0.0
      %1605 = vmatprep.subr.mxu0 0.0
      %1606 = vmatpush1.msra.mxu0 0.0
      %1607 = vmatprep.subr.mxu0 0.0
      %1608 = vmatpush1.msra.mxu0 0.0
      %1609 = vmatprep.subr.mxu0 0.0
      %1610 = vmatpush1.msra.mxu0 0.0
      %1611 = vmatprep.subr.mxu0 0.0
      %1612 = vmatpush1.msra.mxu0 0.0
      %1613 = vmatprep.subr.mxu0 0.0
      %1614 = vmatpush1.msra.mxu0 0.0
      %1615 = vmatprep.subr.mxu0 0.0
      %1616 = vmatpush1.msra.mxu0 0.0
      %1617 = vmatprep.subr.mxu0 0.0
      %1618 = vmatpush1.msra.mxu0 0.0
      %1619 = vmatprep.mubr.f32.mxu0 0.0
      %1620 = vmatmul.mubr.f32.gmra.mrb[0].mxu0 %v1553
      %v1621 = vpop.f32.mrb[0].mxu0
      %v1622 = vadd.f32 0.0, %v1621
      %v1623 = vpop.f32.mrb[0].mxu0
      %1624 = vdwg.mxu0
      %v1625 = vadd.f32 %v1545, %v1622
      %s1626 = scalar_lea.vmem [#allocation2], 26
      %v1627 = vld [vmem:[%s1626] ss:$2 sm:$0x7]
      %v1628 = vld [vmem:[%s3 + $0x1c0] sm:$0xff]
      %v1629 = vld [vmem:[%s3 + $0x1c8] sm:$0xff]
      %v1630 = vld [vmem:[%s3 + $0x1d0] sm:$0xff]
      %v1631 = vld [vmem:[%s3 + $0x1d8] sm:$0xff]
      %v1633 = vsel %vm499, %v1627, 0
      %1635 = vmatprep.subr.mxu0 0.0
      %1636 = vmatpush1.msra.mxu0 %v1628
      %1637 = vmatprep.subr.mxu0 0.0
      %1638 = vmatpush1.msra.mxu0 %v1629
      %1639 = vmatprep.subr.mxu0 0.0
      %1640 = vmatpush1.msra.mxu0 %v1630
      %1641 = vmatprep.subr.mxu0 0.0
      %1642 = vmatpush1.msra.mxu0 %v1631
      %1643 = vmatprep.subr.mxu0 0.0
      %1644 = vmatpush1.msra.mxu0 0.0
      %1645 = vmatprep.subr.mxu0 0.0
      %1646 = vmatpush1.msra.mxu0 0.0
      %1647 = vmatprep.subr.mxu0 0.0
      %1648 = vmatpush1.msra.mxu0 0.0
      %1649 = vmatprep.subr.mxu0 0.0
      %1650 = vmatpush1.msra.mxu0 0.0
      %1651 = vmatprep.subr.mxu0 0.0
      %1652 = vmatpush1.msra.mxu0 0.0
      %1653 = vmatprep.subr.mxu0 0.0
      %1654 = vmatpush1.msra.mxu0 0.0
      %1655 = vmatprep.subr.mxu0 0.0
      %1656 = vmatpush1.msra.mxu0 0.0
      %1657 = vmatprep.subr.mxu0 0.0
      %1658 = vmatpush1.msra.mxu0 0.0
      %1659 = vmatprep.subr.mxu0 0.0
      %1660 = vmatpush1.msra.mxu0 0.0
      %1661 = vmatprep.subr.mxu0 0.0
      %1662 = vmatpush1.msra.mxu0 0.0
      %1663 = vmatprep.subr.mxu0 0.0
      %1664 = vmatpush1.msra.mxu0 0.0
      %1665 = vmatprep.subr.mxu0 0.0
      %1666 = vmatpush1.msra.mxu0 0.0
      %1667 = vmatprep.subr.mxu0 0.0
      %1668 = vmatpush1.msra.mxu0 0.0
      %1669 = vmatprep.subr.mxu0 0.0
      %1670 = vmatpush1.msra.mxu0 0.0
      %1671 = vmatprep.subr.mxu0 0.0
      %1672 = vmatpush1.msra.mxu0 0.0
      %1673 = vmatprep.subr.mxu0 0.0
      %1674 = vmatpush1.msra.mxu0 0.0
      %1675 = vmatprep.subr.mxu0 0.0
      %1676 = vmatpush1.msra.mxu0 0.0
      %1677 = vmatprep.subr.mxu0 0.0
      %1678 = vmatpush1.msra.mxu0 0.0
      %1679 = vmatprep.subr.mxu0 0.0
      %1680 = vmatpush1.msra.mxu0 0.0
      %1681 = vmatprep.subr.mxu0 0.0
      %1682 = vmatpush1.msra.mxu0 0.0
      %1683 = vmatprep.subr.mxu0 0.0
      %1684 = vmatpush1.msra.mxu0 0.0
      %1685 = vmatprep.subr.mxu0 0.0
      %1686 = vmatpush1.msra.mxu0 0.0
      %1687 = vmatprep.subr.mxu0 0.0
      %1688 = vmatpush1.msra.mxu0 0.0
      %1689 = vmatprep.subr.mxu0 0.0
      %1690 = vmatpush1.msra.mxu0 0.0
      %1691 = vmatprep.subr.mxu0 0.0
      %1692 = vmatpush1.msra.mxu0 0.0
      %1693 = vmatprep.subr.mxu0 0.0
      %1694 = vmatpush1.msra.mxu0 0.0
      %1695 = vmatprep.subr.mxu0 0.0
      %1696 = vmatpush1.msra.mxu0 0.0
      %1697 = vmatprep.subr.mxu0 0.0
      %1698 = vmatpush1.msra.mxu0 0.0
      %1699 = vmatprep.mubr.f32.mxu0 0.0
      %1700 = vmatmul.mubr.f32.gmra.mrb[0].mxu0 %v1633
      %v1701 = vpop.f32.mrb[0].mxu0
      %v1702 = vadd.f32 0.0, %v1701
      %v1703 = vpop.f32.mrb[0].mxu0
      %1704 = vdwg.mxu0
      %v1705 = vadd.f32 %v1625, %v1702
      %s1706 = scalar_lea.vmem [#allocation2], 27
      %v1707 = vld [vmem:[%s1706] ss:$2 sm:$0x7]
      %v1708 = vld [vmem:[%s3 + $0x1e0] sm:$0xff]
      %v1709 = vld [vmem:[%s3 + $0x1e8] sm:$0xff]
      %v1710 = vld [vmem:[%s3 + $0x1f0] sm:$0xff]
      %v1711 = vld [vmem:[%s3 + $0x1f8] sm:$0xff]
      %v1713 = vsel %vm499, %v1707, 0
      %1715 = vmatprep.subr.mxu0 0.0
      %1716 = vmatpush1.msra.mxu0 %v1708
      %1717 = vmatprep.subr.mxu0 0.0
      %1718 = vmatpush1.msra.mxu0 %v1709
      %1719 = vmatprep.subr.mxu0 0.0
      %1720 = vmatpush1.msra.mxu0 %v1710
      %1721 = vmatprep.subr.mxu0 0.0
      %1722 = vmatpush1.msra.mxu0 %v1711
      %1723 = vmatprep.subr.mxu0 0.0
      %1724 = vmatpush1.msra.mxu0 0.0
      %1725 = vmatprep.subr.mxu0 0.0
      %1726 = vmatpush1.msra.mxu0 0.0
      %1727 = vmatprep.subr.mxu0 0.0
      %1728 = vmatpush1.msra.mxu0 0.0
      %1729 = vmatprep.subr.mxu0 0.0
      %1730 = vmatpush1.msra.mxu0 0.0
      %1731 = vmatprep.subr.mxu0 0.0
      %1732 = vmatpush1.msra.mxu0 0.0
      %1733 = vmatprep.subr.mxu0 0.0
      %1734 = vmatpush1.msra.mxu0 0.0
      %1735 = vmatprep.subr.mxu0 0.0
      %1736 = vmatpush1.msra.mxu0 0.0
      %1737 = vmatprep.subr.mxu0 0.0
      %1738 = vmatpush1.msra.mxu0 0.0
      %1739 = vmatprep.subr.mxu0 0.0
      %1740 = vmatpush1.msra.mxu0 0.0
      %1741 = vmatprep.subr.mxu0 0.0
      %1742 = vmatpush1.msra.mxu0 0.0
      %1743 = vmatprep.subr.mxu0 0.0
      %1744 = vmatpush1.msra.mxu0 0.0
      %1745 = vmatprep.subr.mxu0 0.0
      %1746 = vmatpush1.msra.mxu0 0.0
      %1747 = vmatprep.subr.mxu0 0.0
      %1748 = vmatpush1.msra.mxu0 0.0
      %1749 = vmatprep.subr.mxu0 0.0
      %1750 = vmatpush1.msra.mxu0 0.0
      %1751 = vmatprep.subr.mxu0 0.0
      %1752 = vmatpush1.msra.mxu0 0.0
      %1753 = vmatprep.subr.mxu0 0.0
      %1754 = vmatpush1.msra.mxu0 0.0
      %1755 = vmatprep.subr.mxu0 0.0
      %1756 = vmatpush1.msra.mxu0 0.0
      %1757 = vmatprep.subr.mxu0 0.0
      %1758 = vmatpush1.msra.mxu0 0.0
      %1759 = vmatprep.subr.mxu0 0.0
      %1760 = vmatpush1.msra.mxu0 0.0
      %1761 = vmatprep.subr.mxu0 0.0
      %1762 = vmatpush1.msra.mxu0 0.0
      %1763 = vmatprep.subr.mxu0 0.0
      %1764 = vmatpush1.msra.mxu0 0.0
      %1765 = vmatprep.subr.mxu0 0.0
      %1766 = vmatpush1.msra.mxu0 0.0
      %1767 = vmatprep.subr.mxu0 0.0
      %1768 = vmatpush1.msra.mxu0 0.0
      %1769 = vmatprep.subr.mxu0 0.0
      %1770 = vmatpush1.msra.mxu0 0.0
      %1771 = vmatprep.subr.mxu0 0.0
      %1772 = vmatpush1.msra.mxu0 0.0
      %1773 = vmatprep.subr.mxu0 0.0
      %1774 = vmatpush1.msra.mxu0 0.0
      %1775 = vmatprep.subr.mxu0 0.0
      %1776 = vmatpush1.msra.mxu0 0.0
      %1777 = vmatprep.subr.mxu0 0.0
      %1778 = vmatpush1.msra.mxu0 0.0
      %1779 = vmatprep.mubr.f32.mxu0 0.0
      %1780 = vmatmul.mubr.f32.gmra.mrb[0].mxu0 %v1713
      %v1781 = vpop.f32.mrb[0].mxu0
      %v1782 = vadd.f32 0.0, %v1781
      %v1783 = vpop.f32.mrb[0].mxu0
      %1784 = vdwg.mxu0
      %v1785 = vadd.f32 %v1705, %v1782
      %v1787 = vlaneseq
      %v1788 = vshrl.u32 %v1787, 7
      %v1789 = vsub.s32 0, %v1788
      %v1790 = vrot.slane %v508, %v1789
      %v1792 = vadd.f32 %v1785, %v1790
      %v1793 = vmax.f32 %v1792, 0.0
      %vm1794 = vcmask 518144
      %1795 = vst.msk [vmem:[#allocation3] sm:$0x7] %vm1794, %v1793
      %v1796 = vld [vmem:[%s1146] ss:$2 sm:$0x7]
      %v1797 = vld [vmem:[%s3] sm:$0xff]
      %v1798 = vld [vmem:[%s3 + $0x8] sm:$0xff]
      %v1799 = vld [vmem:[%s3 + $0x10] sm:$0xff]
      %v1800 = vld [vmem:[%s3 + $0x18] sm:$0xff]
      %v1801 = vld [vmem:[%s1226] ss:$2 sm:$0x7]
      %v1802 = vld [vmem:[%s3 + $0x20] sm:$0xff]
      %v1803 = vld [vmem:[%s3 + $0x28] sm:$0xff]
      %v1804 = vld [vmem:[%s3 + $0x30] sm:$0xff]
      %v1805 = vld [vmem:[%s3 + $0x38] sm:$0xff]
      %v1807 = vsel %vm499, %v1801, 0
      %1809 = vmatprep.subr.mxu0 0.0
      %1810 = vmatpush1.msra.mxu0 %v1802
      %1811 = vmatprep.subr.mxu0 0.0
      %1812 = vmatpush1.msra.mxu0 %v1803
      %1813 = vmatprep.subr.mxu0 0.0
      %1814 = vmatpush1.msra.mxu0 %v1804
      %1815 = vmatprep.subr.mxu0 0.0
      %1816 = vmatpush1.msra.mxu0 %v1805
      %1817 = vmatprep.subr.mxu0 0.0
      %1818 = vmatpush1.msra.mxu0 0.0
      %1819 = vmatprep.subr.mxu0 0.0
      %1820 = vmatpush1.msra.mxu0 0.0
      %1821 = vmatprep.subr.mxu0 0.0
      %1822 = vmatpush1.msra.mxu0 0.0
      %1823 = vmatprep.subr.mxu0 0.0
      %1824 = vmatpush1.msra.mxu0 0.0
      %1825 = vmatprep.subr.mxu0 0.0
      %1826 = vmatpush1.msra.mxu0 0.0
      %1827 = vmatprep.subr.mxu0 0.0
      %1828 = vmatpush1.msra.mxu0 0.0
      %1829 = vmatprep.subr.mxu0 0.0
      %1830 = vmatpush1.msra.mxu0 0.0
      %1831 = vmatprep.subr.mxu0 0.0
      %1832 = vmatpush1.msra.mxu0 0.0
      %1833 = vmatprep.subr.mxu0 0.0
      %1834 = vmatpush1.msra.mxu0 0.0
      %1835 = vmatprep.subr.mxu0 0.0
      %1836 = vmatpush1.msra.mxu0 0.0
      %1837 = vmatprep.subr.mxu0 0.0
      %1838 = vmatpush1.msra.mxu0 0.0
      %1839 = vmatprep.subr.mxu0 0.0
      %1840 = vmatpush1.msra.mxu0 0.0
      %1841 = vmatprep.subr.mxu0 0.0
      %1842 = vmatpush1.msra.mxu0 0.0
      %1843 = vmatprep.subr.mxu0 0.0
      %1844 = vmatpush1.msra.mxu0 0.0
      %1845 = vmatprep.subr.mxu0 0.0
      %1846 = vmatpush1.msra.mxu0 0.0
      %1847 = vmatprep.subr.mxu0 0.0
      %1848 = vmatpush1.msra.mxu0 0.0
      %1849 = vmatprep.subr.mxu0 0.0
      %1850 = vmatpush1.msra.mxu0 0.0
      %1851 = vmatprep.subr.mxu0 0.0
      %1852 = vmatpush1.msra.mxu0 0.0
      %1853 = vmatprep.subr.mxu0 0.0
      %1854 = vmatpush1.msra.mxu0 0.0
      %1855 = vmatprep.subr.mxu0 0.0
      %1856 = vmatpush1.msra.mxu0 0.0
      %1857 = vmatprep.subr.mxu0 0.0
      %1858 = vmatpush1.msra.mxu0 0.0
      %1859 = vmatprep.subr.mxu0 0.0
      %1860 = vmatpush1.msra.mxu0 0.0
      %1861 = vmatprep.subr.mxu0 0.0
      %1862 = vmatpush1.msra.mxu0 0.0
      %1863 = vmatprep.subr.mxu0 0.0
      %1864 = vmatpush1.msra.mxu0 0.0
      %1865 = vmatprep.subr.mxu0 0.0
      %1866 = vmatpush1.msra.mxu0 0.0
      %1867 = vmatprep.subr.mxu0 0.0
      %1868 = vmatpush1.msra.mxu0 0.0
      %1869 = vmatprep.subr.mxu0 0.0
      %1870 = vmatpush1.msra.mxu0 0.0
      %1871 = vmatprep.subr.mxu0 0.0
      %1872 = vmatpush1.msra.mxu0 0.0
      %1873 = vmatprep.mubr.f32.mxu0 0.0
      %1874 = vmatmul.mubr.f32.gmra.mrb[0].mxu0 %v1807
      %v1875 = vpop.f32.mrb[0].mxu0
      %v1876 = vadd.f32 0.0, %v1875
      %v1877 = vpop.f32.mrb[0].mxu0
      %1878 = vdwg.mxu0
      %v1880 = vsel %vm499, %v1796, 0
      %1882 = vmatprep.subr.mxu0 0.0
      %1883 = vmatpush1.msra.mxu0 %v1797
      %1884 = vmatprep.subr.mxu0 0.0
      %1885 = vmatpush1.msra.mxu0 %v1798
      %1886 = vmatprep.subr.mxu0 0.0
      %1887 = vmatpush1.msra.mxu0 %v1799
      %1888 = vmatprep.subr.mxu0 0.0
      %1889 = vmatpush1.msra.mxu0 %v1800
      %1890 = vmatprep.subr.mxu0 0.0
      %1891 = vmatpush1.msra.mxu0 0.0
      %1892 = vmatprep.subr.mxu0 0.0
      %1893 = vmatpush1.msra.mxu0 0.0
      %1894 = vmatprep.subr.mxu0 0.0
      %1895 = vmatpush1.msra.mxu0 0.0
      %1896 = vmatprep.subr.mxu0 0.0
      %1897 = vmatpush1.msra.mxu0 0.0
      %1898 = vmatprep.subr.mxu0 0.0
      %1899 = vmatpush1.msra.mxu0 0.0
      %1900 = vmatprep.subr.mxu0 0.0
      %1901 = vmatpush1.msra.mxu0 0.0
      %1902 = vmatprep.subr.mxu0 0.0
      %1903 = vmatpush1.msra.mxu0 0.0
      %1904 = vmatprep.subr.mxu0 0.0
      %1905 = vmatpush1.msra.mxu0 0.0
      %1906 = vmatprep.subr.mxu0 0.0
      %1907 = vmatpush1.msra.mxu0 0.0
      %1908 = vmatprep.subr.mxu0 0.0
      %1909 = vmatpush1.msra.mxu0 0.0
      %1910 = vmatprep.subr.mxu0 0.0
      %1911 = vmatpush1.msra.mxu0 0.0
      %1912 = vmatprep.subr.mxu0 0.0
      %1913 = vmatpush1.msra.mxu0 0.0
      %1914 = vmatprep.subr.mxu0 0.0
      %1915 = vmatpush1.msra.mxu0 0.0
      %1916 = vmatprep.subr.mxu0 0.0
      %1917 = vmatpush1.msra.mxu0 0.0
      %1918 = vmatprep.subr.mxu0 0.0
      %1919 = vmatpush1.msra.mxu0 0.0
      %1920 = vmatprep.subr.mxu0 0.0
      %1921 = vmatpush1.msra.mxu0 0.0
      %1922 = vmatprep.subr.mxu0 0.0
      %1923 = vmatpush1.msra.mxu0 0.0
      %1924 = vmatprep.subr.mxu0 0.0
      %1925 = vmatpush1.msra.mxu0 0.0
      %1926 = vmatprep.subr.mxu0 0.0
      %1927 = vmatpush1.msra.mxu0 0.0
      %1928 = vmatprep.subr.mxu0 0.0
      %1929 = vmatpush1.msra.mxu0 0.0
      %1930 = vmatprep.subr.mxu0 0.0
      %1931 = vmatpush1.msra.mxu0 0.0
      %1932 = vmatprep.subr.mxu0 0.0
      %1933 = vmatpush1.msra.mxu0 0.0
      %1934 = vmatprep.subr.mxu0 0.0
      %1935 = vmatpush1.msra.mxu0 0.0
      %1936 = vmatprep.subr.mxu0 0.0
      %1937 = vmatpush1.msra.mxu0 0.0
      %1938 = vmatprep.subr.mxu0 0.0
      %1939 = vmatpush1.msra.mxu0 0.0
      %1940 = vmatprep.subr.mxu0 0.0
      %1941 = vmatpush1.msra.mxu0 0.0
      %1942 = vmatprep.subr.mxu0 0.0
      %1943 = vmatpush1.msra.mxu0 0.0
      %1944 = vmatprep.subr.mxu0 0.0
      %1945 = vmatpush1.msra.mxu0 0.0
      %1946 = vmatprep.mubr.f32.mxu0 0.0
      %1947 = vmatmul.mubr.f32.gmra.mrb[0].mxu0 %v1880
      %v1948 = vpop.f32.mrb[0].mxu0
      %v1949 = vadd.f32 %v1876, %v1948
      %v1950 = vpop.f32.mrb[0].mxu0
      %1951 = vdwg.mxu0
      %v1952 = vld [vmem:[%s1306] ss:$2 sm:$0x7]
      %v1953 = vld [vmem:[%s3 + $0x40] sm:$0xff]
      %v1954 = vld [vmem:[%s3 + $0x48] sm:$0xff]
      %v1955 = vld [vmem:[%s3 + $0x50] sm:$0xff]
      %v1956 = vld [vmem:[%s3 + $0x58] sm:$0xff]
      %v1958 = vsel %vm499, %v1952, 0
      %1960 = vmatprep.subr.mxu0 0.0
      %1961 = vmatpush1.msra.mxu0 %v1953
      %1962 = vmatprep.subr.mxu0 0.0
      %1963 = vmatpush1.msra.mxu0 %v1954
      %1964 = vmatprep.subr.mxu0 0.0
      %1965 = vmatpush1.msra.mxu0 %v1955
      %1966 = vmatprep.subr.mxu0 0.0
      %1967 = vmatpush1.msra.mxu0 %v1956
      %1968 = vmatprep.subr.mxu0 0.0
      %1969 = vmatpush1.msra.mxu0 0.0
      %1970 = vmatprep.subr.mxu0 0.0
      %1971 = vmatpush1.msra.mxu0 0.0
      %1972 = vmatprep.subr.mxu0 0.0
      %1973 = vmatpush1.msra.mxu0 0.0
      %1974 = vmatprep.subr.mxu0 0.0
      %1975 = vmatpush1.msra.mxu0 0.0
      %1976 = vmatprep.subr.mxu0 0.0
      %1977 = vmatpush1.msra.mxu0 0.0
      %1978 = vmatprep.subr.mxu0 0.0
      %1979 = vmatpush1.msra.mxu0 0.0
      %1980 = vmatprep.subr.mxu0 0.0
      %1981 = vmatpush1.msra.mxu0 0.0
      %1982 = vmatprep.subr.mxu0 0.0
      %1983 = vmatpush1.msra.mxu0 0.0
      %1984 = vmatprep.subr.mxu0 0.0
      %1985 = vmatpush1.msra.mxu0 0.0
      %1986 = vmatprep.subr.mxu0 0.0
      %1987 = vmatpush1.msra.mxu0 0.0
      %1988 = vmatprep.subr.mxu0 0.0
      %1989 = vmatpush1.msra.mxu0 0.0
      %1990 = vmatprep.subr.mxu0 0.0
      %1991 = vmatpush1.msra.mxu0 0.0
      %1992 = vmatprep.subr.mxu0 0.0
      %1993 = vmatpush1.msra.mxu0 0.0
      %1994 = vmatprep.subr.mxu0 0.0
      %1995 = vmatpush1.msra.mxu0 0.0
      %1996 = vmatprep.subr.mxu0 0.0
      %1997 = vmatpush1.msra.mxu0 0.0
      %1998 = vmatprep.subr.mxu0 0.0
      %1999 = vmatpush1.msra.mxu0 0.0
      %2000 = vmatprep.subr.mxu0 0.0
      %2001 = vmatpush1.msra.mxu0 0.0
      %2002 = vmatprep.subr.mxu0 0.0
      %2003 = vmatpush1.msra.mxu0 0.0
      %2004 = vmatprep.subr.mxu0 0.0
      %2005 = vmatpush1.msra.mxu0 0.0
      %2006 = vmatprep.subr.mxu0 0.0
      %2007 = vmatpush1.msra.mxu0 0.0
      %2008 = vmatprep.subr.mxu0 0.0
      %2009 = vmatpush1.msra.mxu0 0.0
      %2010 = vmatprep.subr.mxu0 0.0
      %2011 = vmatpush1.msra.mxu0 0.0
      %2012 = vmatprep.subr.mxu0 0.0
      %2013 = vmatpush1.msra.mxu0 0.0
      %2014 = vmatprep.subr.mxu0 0.0
      %2015 = vmatpush1.msra.mxu0 0.0
      %2016 = vmatprep.subr.mxu0 0.0
      %2017 = vmatpush1.msra.mxu0 0.0
      %2018 = vmatprep.subr.mxu0 0.0
      %2019 = vmatpush1.msra.mxu0 0.0
      %2020 = vmatprep.subr.mxu0 0.0
      %2021 = vmatpush1.msra.mxu0 0.0
      %2022 = vmatprep.subr.mxu0 0.0
      %2023 = vmatpush1.msra.mxu0 0.0
      %2024 = vmatprep.mubr.f32.mxu0 0.0
      %2025 = vmatmul.mubr.f32.gmra.mrb[0].mxu0 %v1958
      %v2026 = vpop.f32.mrb[0].mxu0
      %v2027 = vadd.f32 0.0, %v2026
      %v2028 = vpop.f32.mrb[0].mxu0
      %2029 = vdwg.mxu0
      %v2030 = vadd.f32 %v1949, %v2027
      %v2031 = vld [vmem:[%s1386] ss:$2 sm:$0x7]
      %v2032 = vld [vmem:[%s3 + $0x60] sm:$0xff]
      %v2033 = vld [vmem:[%s3 + $0x68] sm:$0xff]
      %v2034 = vld [vmem:[%s3 + $0x70] sm:$0xff]
      %v2035 = vld [vmem:[%s3 + $0x78] sm:$0xff]
      %v2037 = vsel %vm499, %v2031, 0
      %2039 = vmatprep.subr.mxu0 0.0
      %2040 = vmatpush1.msra.mxu0 %v2032
      %2041 = vmatprep.subr.mxu0 0.0
      %2042 = vmatpush1.msra.mxu0 %v2033
      %2043 = vmatprep.subr.mxu0 0.0
      %2044 = vmatpush1.msra.mxu0 %v2034
      %2045 = vmatprep.subr.mxu0 0.0
      %2046 = vmatpush1.msra.mxu0 %v2035
      %2047 = vmatprep.subr.mxu0 0.0
      %2048 = vmatpush1.msra.mxu0 0.0
      %2049 = vmatprep.subr.mxu0 0.0
      %2050 = vmatpush1.msra.mxu0 0.0
      %2051 = vmatprep.subr.mxu0 0.0
      %2052 = vmatpush1.msra.mxu0 0.0
      %2053 = vmatprep.subr.mxu0 0.0
      %2054 = vmatpush1.msra.mxu0 0.0
      %2055 = vmatprep.subr.mxu0 0.0
      %2056 = vmatpush1.msra.mxu0 0.0
      %2057 = vmatprep.subr.mxu0 0.0
      %2058 = vmatpush1.msra.mxu0 0.0
      %2059 = vmatprep.subr.mxu0 0.0
      %2060 = vmatpush1.msra.mxu0 0.0
      %2061 = vmatprep.subr.mxu0 0.0
      %2062 = vmatpush1.msra.mxu0 0.0
      %2063 = vmatprep.subr.mxu0 0.0
      %2064 = vmatpush1.msra.mxu0 0.0
      %2065 = vmatprep.subr.mxu0 0.0
      %2066 = vmatpush1.msra.mxu0 0.0
      %2067 = vmatprep.subr.mxu0 0.0
      %2068 = vmatpush1.msra.mxu0 0.0
      %2069 = vmatprep.subr.mxu0 0.0
      %2070 = vmatpush1.msra.mxu0 0.0
      %2071 = vmatprep.subr.mxu0 0.0
      %2072 = vmatpush1.msra.mxu0 0.0
      %2073 = vmatprep.subr.mxu0 0.0
      %2074 = vmatpush1.msra.mxu0 0.0
      %2075 = vmatprep.subr.mxu0 0.0
      %2076 = vmatpush1.msra.mxu0 0.0
      %2077 = vmatprep.subr.mxu0 0.0
      %2078 = vmatpush1.msra.mxu0 0.0
      %2079 = vmatprep.subr.mxu0 0.0
      %2080 = vmatpush1.msra.mxu0 0.0
      %2081 = vmatprep.subr.mxu0 0.0
      %2082 = vmatpush1.msra.mxu0 0.0
      %2083 = vmatprep.subr.mxu0 0.0
      %2084 = vmatpush1.msra.mxu0 0.0
      %2085 = vmatprep.subr.mxu0 0.0
      %2086 = vmatpush1.msra.mxu0 0.0
      %2087 = vmatprep.subr.mxu0 0.0
      %2088 = vmatpush1.msra.mxu0 0.0
      %2089 = vmatprep.subr.mxu0 0.0
      %2090 = vmatpush1.msra.mxu0 0.0
      %2091 = vmatprep.subr.mxu0 0.0
      %2092 = vmatpush1.msra.mxu0 0.0
      %2093 = vmatprep.subr.mxu0 0.0
      %2094 = vmatpush1.msra.mxu0 0.0
      %2095 = vmatprep.subr.mxu0 0.0
      %2096 = vmatpush1.msra.mxu0 0.0
      %2097 = vmatprep.subr.mxu0 0.0
      %2098 = vmatpush1.msra.mxu0 0.0
      %2099 = vmatprep.subr.mxu0 0.0
      %2100 = vmatpush1.msra.mxu0 0.0
      %2101 = vmatprep.subr.mxu0 0.0
      %2102 = vmatpush1.msra.mxu0 0.0
      %2103 = vmatprep.mubr.f32.mxu0 0.0
      %2104 = vmatmul.mubr.f32.gmra.mrb[0].mxu0 %v2037
      %v2105 = vpop.f32.mrb[0].mxu0
      %v2106 = vadd.f32 0.0, %v2105
      %v2107 = vpop.f32.mrb[0].mxu0
      %2108 = vdwg.mxu0
      %v2109 = vadd.f32 %v2030, %v2106
      %v2110 = vld [vmem:[%s1466] ss:$2 sm:$0x7]
      %v2111 = vld [vmem:[%s3 + $0x80] sm:$0xff]
      %v2112 = vld [vmem:[%s3 + $0x88] sm:$0xff]
      %v2113 = vld [vmem:[%s3 + $0x90] sm:$0xff]
      %v2114 = vld [vmem:[%s3 + $0x98] sm:$0xff]
      %v2116 = vsel %vm499, %v2110, 0
      %2118 = vmatprep.subr.mxu0 0.0
      %2119 = vmatpush1.msra.mxu0 %v2111
      %2120 = vmatprep.subr.mxu0 0.0
      %2121 = vmatpush1.msra.mxu0 %v2112
      %2122 = vmatprep.subr.mxu0 0.0
      %2123 = vmatpush1.msra.mxu0 %v2113
      %2124 = vmatprep.subr.mxu0 0.0
      %2125 = vmatpush1.msra.mxu0 %v2114
      %2126 = vmatprep.subr.mxu0 0.0
      %2127 = vmatpush1.msra.mxu0 0.0
      %2128 = vmatprep.subr.mxu0 0.0
      %2129 = vmatpush1.msra.mxu0 0.0
      %2130 = vmatprep.subr.mxu0 0.0
      %2131 = vmatpush1.msra.mxu0 0.0
      %2132 = vmatprep.subr.mxu0 0.0
      %2133 = vmatpush1.msra.mxu0 0.0
      %2134 = vmatprep.subr.mxu0 0.0
      %2135 = vmatpush1.msra.mxu0 0.0
      %2136 = vmatprep.subr.mxu0 0.0
      %2137 = vmatpush1.msra.mxu0 0.0
      %2138 = vmatprep.subr.mxu0 0.0
      %2139 = vmatpush1.msra.mxu0 0.0
      %2140 = vmatprep.subr.mxu0 0.0
      %2141 = vmatpush1.msra.mxu0 0.0
      %2142 = vmatprep.subr.mxu0 0.0
      %2143 = vmatpush1.msra.mxu0 0.0
      %2144 = vmatprep.subr.mxu0 0.0
      %2145 = vmatpush1.msra.mxu0 0.0
      %2146 = vmatprep.subr.mxu0 0.0
      %2147 = vmatpush1.msra.mxu0 0.0
      %2148 = vmatprep.subr.mxu0 0.0
      %2149 = vmatpush1.msra.mxu0 0.0
      %2150 = vmatprep.subr.mxu0 0.0
      %2151 = vmatpush1.msra.mxu0 0.0
      %2152 = vmatprep.subr.mxu0 0.0
      %2153 = vmatpush1.msra.mxu0 0.0
      %2154 = vmatprep.subr.mxu0 0.0
      %2155 = vmatpush1.msra.mxu0 0.0
      %2156 = vmatprep.subr.mxu0 0.0
      %2157 = vmatpush1.msra.mxu0 0.0
      %2158 = vmatprep.subr.mxu0 0.0
      %2159 = vmatpush1.msra.mxu0 0.0
      %2160 = vmatprep.subr.mxu0 0.0
      %2161 = vmatpush1.msra.mxu0 0.0
      %2162 = vmatprep.subr.mxu0 0.0
      %2163 = vmatpush1.msra.mxu0 0.0
      %2164 = vmatprep.subr.mxu0 0.0
      %2165 = vmatpush1.msra.mxu0 0.0
      %2166 = vmatprep.subr.mxu0 0.0
      %2167 = vmatpush1.msra.mxu0 0.0
      %2168 = vmatprep.subr.mxu0 0.0
      %2169 = vmatpush1.msra.mxu0 0.0
      %2170 = vmatprep.subr.mxu0 0.0
      %2171 = vmatpush1.msra.mxu0 0.0
      %2172 = vmatprep.subr.mxu0 0.0
      %2173 = vmatpush1.msra.mxu0 0.0
      %2174 = vmatprep.subr.mxu0 0.0
      %2175 = vmatpush1.msra.mxu0 0.0
      %2176 = vmatprep.subr.mxu0 0.0
      %2177 = vmatpush1.msra.mxu0 0.0
      %2178 = vmatprep.subr.mxu0 0.0
      %2179 = vmatpush1.msra.mxu0 0.0
      %2180 = vmatprep.subr.mxu0 0.0
      %2181 = vmatpush1.msra.mxu0 0.0
      %2182 = vmatprep.mubr.f32.mxu0 0.0
      %2183 = vmatmul.mubr.f32.gmra.mrb[0].mxu0 %v2116
      %v2184 = vpop.f32.mrb[0].mxu0
      %v2185 = vadd.f32 0.0, %v2184
      %v2186 = vpop.f32.mrb[0].mxu0
      %2187 = vdwg.mxu0
      %v2188 = vadd.f32 %v2109, %v2185
      %v2189 = vld [vmem:[%s1546] ss:$2 sm:$0x7]
      %v2190 = vld [vmem:[%s3 + $0xa0] sm:$0xff]
      %v2191 = vld [vmem:[%s3 + $0xa8] sm:$0xff]
      %v2192 = vld [vmem:[%s3 + $0xb0] sm:$0xff]
      %v2193 = vld [vmem:[%s3 + $0xb8] sm:$0xff]
      %v2195 = vsel %vm499, %v2189, 0
      %2197 = vmatprep.subr.mxu0 0.0
      %2198 = vmatpush1.msra.mxu0 %v2190
      %2199 = vmatprep.subr.mxu0 0.0
      %2200 = vmatpush1.msra.mxu0 %v2191
      %2201 = vmatprep.subr.mxu0 0.0
      %2202 = vmatpush1.msra.mxu0 %v2192
      %2203 = vmatprep.subr.mxu0 0.0
      %2204 = vmatpush1.msra.mxu0 %v2193
      %2205 = vmatprep.subr.mxu0 0.0
      %2206 = vmatpush1.msra.mxu0 0.0
      %2207 = vmatprep.subr.mxu0 0.0
      %2208 = vmatpush1.msra.mxu0 0.0
      %2209 = vmatprep.subr.mxu0 0.0
      %2210 = vmatpush1.msra.mxu0 0.0
      %2211 = vmatprep.subr.mxu0 0.0
      %2212 = vmatpush1.msra.mxu0 0.0
      %2213 = vmatprep.subr.mxu0 0.0
      %2214 = vmatpush1.msra.mxu0 0.0
      %2215 = vmatprep.subr.mxu0 0.0
      %2216 = vmatpush1.msra.mxu0 0.0
      %2217 = vmatprep.subr.mxu0 0.0
      %2218 = vmatpush1.msra.mxu0 0.0
      %2219 = vmatprep.subr.mxu0 0.0
      %2220 = vmatpush1.msra.mxu0 0.0
      %2221 = vmatprep.subr.mxu0 0.0
      %2222 = vmatpush1.msra.mxu0 0.0
      %2223 = vmatprep.subr.mxu0 0.0
      %2224 = vmatpush1.msra.mxu0 0.0
      %2225 = vmatprep.subr.mxu0 0.0
      %2226 = vmatpush1.msra.mxu0 0.0
      %2227 = vmatprep.subr.mxu0 0.0
      %2228 = vmatpush1.msra.mxu0 0.0
      %2229 = vmatprep.subr.mxu0 0.0
      %2230 = vmatpush1.msra.mxu0 0.0
      %2231 = vmatprep.subr.mxu0 0.0
      %2232 = vmatpush1.msra.mxu0 0.0
      %2233 = vmatprep.subr.mxu0 0.0
      %2234 = vmatpush1.msra.mxu0 0.0
      %2235 = vmatprep.subr.mxu0 0.0
      %2236 = vmatpush1.msra.mxu0 0.0
      %2237 = vmatprep.subr.mxu0 0.0
      %2238 = vmatpush1.msra.mxu0 0.0
      %2239 = vmatprep.subr.mxu0 0.0
      %2240 = vmatpush1.msra.mxu0 0.0
      %2241 = vmatprep.subr.mxu0 0.0
      %2242 = vmatpush1.msra.mxu0 0.0
      %2243 = vmatprep.subr.mxu0 0.0
      %2244 = vmatpush1.msra.mxu0 0.0
      %2245 = vmatprep.subr.mxu0 0.0
      %2246 = vmatpush1.msra.mxu0 0.0
      %2247 = vmatprep.subr.mxu0 0.0
      %2248 = vmatpush1.msra.mxu0 0.0
      %2249 = vmatprep.subr.mxu0 0.0
      %2250 = vmatpush1.msra.mxu0 0.0
      %2251 = vmatprep.subr.mxu0 0.0
      %2252 = vmatpush1.msra.mxu0 0.0
      %2253 = vmatprep.subr.mxu0 0.0
      %2254 = vmatpush1.msra.mxu0 0.0
      %2255 = vmatprep.subr.mxu0 0.0
      %2256 = vmatpush1.msra.mxu0 0.0
      %2257 = vmatprep.subr.mxu0 0.0
      %2258 = vmatpush1.msra.mxu0 0.0
      %2259 = vmatprep.subr.mxu0 0.0
      %2260 = vmatpush1.msra.mxu0 0.0
      %2261 = vmatprep.mubr.f32.mxu0 0.0
      %2262 = vmatmul.mubr.f32.gmra.mrb[0].mxu0 %v2195
      %v2263 = vpop.f32.mrb[0].mxu0
      %v2264 = vadd.f32 0.0, %v2263
      %v2265 = vpop.f32.mrb[0].mxu0
      %2266 = vdwg.mxu0
      %v2267 = vadd.f32 %v2188, %v2264
      %v2268 = vld [vmem:[%s1626] ss:$2 sm:$0x7]
      %v2269 = vld [vmem:[%s3 + $0xc0] sm:$0xff]
      %v2270 = vld [vmem:[%s3 + $0xc8] sm:$0xff]
      %v2271 = vld [vmem:[%s3 + $0xd0] sm:$0xff]
      %v2272 = vld [vmem:[%s3 + $0xd8] sm:$0xff]
      %v2274 = vsel %vm499, %v2268, 0
      %2276 = vmatprep.subr.mxu0 0.0
      %2277 = vmatpush1.msra.mxu0 %v2269
      %2278 = vmatprep.subr.mxu0 0.0
      %2279 = vmatpush1.msra.mxu0 %v2270
      %2280 = vmatprep.subr.mxu0 0.0
      %2281 = vmatpush1.msra.mxu0 %v2271
      %2282 = vmatprep.subr.mxu0 0.0
      %2283 = vmatpush1.msra.mxu0 %v2272
      %2284 = vmatprep.subr.mxu0 0.0
      %2285 = vmatpush1.msra.mxu0 0.0
      %2286 = vmatprep.subr.mxu0 0.0
      %2287 = vmatpush1.msra.mxu0 0.0
      %2288 = vmatprep.subr.mxu0 0.0
      %2289 = vmatpush1.msra.mxu0 0.0
      %2290 = vmatprep.subr.mxu0 0.0
      %2291 = vmatpush1.msra.mxu0 0.0
      %2292 = vmatprep.subr.mxu0 0.0
      %2293 = vmatpush1.msra.mxu0 0.0
      %2294 = vmatprep.subr.mxu0 0.0
      %2295 = vmatpush1.msra.mxu0 0.0
      %2296 = vmatprep.subr.mxu0 0.0
      %2297 = vmatpush1.msra.mxu0 0.0
      %2298 = vmatprep.subr.mxu0 0.0
      %2299 = vmatpush1.msra.mxu0 0.0
      %2300 = vmatprep.subr.mxu0 0.0
      %2301 = vmatpush1.msra.mxu0 0.0
      %2302 = vmatprep.subr.mxu0 0.0
      %2303 = vmatpush1.msra.mxu0 0.0
      %2304 = vmatprep.subr.mxu0 0.0
      %2305 = vmatpush1.msra.mxu0 0.0
      %2306 = vmatprep.subr.mxu0 0.0
      %2307 = vmatpush1.msra.mxu0 0.0
      %2308 = vmatprep.subr.mxu0 0.0
      %2309 = vmatpush1.msra.mxu0 0.0
      %2310 = vmatprep.subr.mxu0 0.0
      %2311 = vmatpush1.msra.mxu0 0.0
      %2312 = vmatprep.subr.mxu0 0.0
      %2313 = vmatpush1.msra.mxu0 0.0
      %2314 = vmatprep.subr.mxu0 0.0
      %2315 = vmatpush1.msra.mxu0 0.0
      %2316 = vmatprep.subr.mxu0 0.0
      %2317 = vmatpush1.msra.mxu0 0.0
      %2318 = vmatprep.subr.mxu0 0.0
      %2319 = vmatpush1.msra.mxu0 0.0
      %2320 = vmatprep.subr.mxu0 0.0
      %2321 = vmatpush1.msra.mxu0 0.0
      %2322 = vmatprep.subr.mxu0 0.0
      %2323 = vmatpush1.msra.mxu0 0.0
      %2324 = vmatprep.subr.mxu0 0.0
      %2325 = vmatpush1.msra.mxu0 0.0
      %2326 = vmatprep.subr.mxu0 0.0
      %2327 = vmatpush1.msra.mxu0 0.0
      %2328 = vmatprep.subr.mxu0 0.0
      %2329 = vmatpush1.msra.mxu0 0.0
      %2330 = vmatprep.subr.mxu0 0.0
      %2331 = vmatpush1.msra.mxu0 0.0
      %2332 = vmatprep.subr.mxu0 0.0
      %2333 = vmatpush1.msra.mxu0 0.0
      %2334 = vmatprep.subr.mxu0 0.0
      %2335 = vmatpush1.msra.mxu0 0.0
      %2336 = vmatprep.subr.mxu0 0.0
      %2337 = vmatpush1.msra.mxu0 0.0
      %2338 = vmatprep.subr.mxu0 0.0
      %2339 = vmatpush1.msra.mxu0 0.0
      %2340 = vmatprep.mubr.f32.mxu0 0.0
      %2341 = vmatmul.mubr.f32.gmra.mrb[0].mxu0 %v2274
      %v2342 = vpop.f32.mrb[0].mxu0
      %v2343 = vadd.f32 0.0, %v2342
      %v2344 = vpop.f32.mrb[0].mxu0
      %2345 = vdwg.mxu0
      %v2346 = vadd.f32 %v2267, %v2343
      %v2347 = vld [vmem:[%s1706] ss:$2 sm:$0x7]
      %v2348 = vld [vmem:[%s3 + $0xe0] sm:$0xff]
      %v2349 = vld [vmem:[%s3 + $0xe8] sm:$0xff]
      %v2350 = vld [vmem:[%s3 + $0xf0] sm:$0xff]
      %v2351 = vld [vmem:[%s3 + $0xf8] sm:$0xff]
      %v2353 = vsel %vm499, %v2347, 0
      %2355 = vmatprep.subr.mxu0 0.0
      %2356 = vmatpush1.msra.mxu0 %v2348
      %2357 = vmatprep.subr.mxu0 0.0
      %2358 = vmatpush1.msra.mxu0 %v2349
      %2359 = vmatprep.subr.mxu0 0.0
      %2360 = vmatpush1.msra.mxu0 %v2350
      %2361 = vmatprep.subr.mxu0 0.0
      %2362 = vmatpush1.msra.mxu0 %v2351
      %2363 = vmatprep.subr.mxu0 0.0
      %2364 = vmatpush1.msra.mxu0 0.0
      %2365 = vmatprep.subr.mxu0 0.0
      %2366 = vmatpush1.msra.mxu0 0.0
      %2367 = vmatprep.subr.mxu0 0.0
      %2368 = vmatpush1.msra.mxu0 0.0
      %2369 = vmatprep.subr.mxu0 0.0
      %2370 = vmatpush1.msra.mxu0 0.0
      %2371 = vmatprep.subr.mxu0 0.0
      %2372 = vmatpush1.msra.mxu0 0.0
      %2373 = vmatprep.subr.mxu0 0.0
      %2374 = vmatpush1.msra.mxu0 0.0
      %2375 = vmatprep.subr.mxu0 0.0
      %2376 = vmatpush1.msra.mxu0 0.0
      %2377 = vmatprep.subr.mxu0 0.0
      %2378 = vmatpush1.msra.mxu0 0.0
      %2379 = vmatprep.subr.mxu0 0.0
      %2380 = vmatpush1.msra.mxu0 0.0
      %2381 = vmatprep.subr.mxu0 0.0
      %2382 = vmatpush1.msra.mxu0 0.0
      %2383 = vmatprep.subr.mxu0 0.0
      %2384 = vmatpush1.msra.mxu0 0.0
      %2385 = vmatprep.subr.mxu0 0.0
      %2386 = vmatpush1.msra.mxu0 0.0
      %2387 = vmatprep.subr.mxu0 0.0
      %2388 = vmatpush1.msra.mxu0 0.0
      %2389 = vmatprep.subr.mxu0 0.0
      %2390 = vmatpush1.msra.mxu0 0.0
      %2391 = vmatprep.subr.mxu0 0.0
      %2392 = vmatpush1.msra.mxu0 0.0
      %2393 = vmatprep.subr.mxu0 0.0
      %2394 = vmatpush1.msra.mxu0 0.0
      %2395 = vmatprep.subr.mxu0 0.0
      %2396 = vmatpush1.msra.mxu0 0.0
      %2397 = vmatprep.subr.mxu0 0.0
      %2398 = vmatpush1.msra.mxu0 0.0
      %2399 = vmatprep.subr.mxu0 0.0
      %2400 = vmatpush1.msra.mxu0 0.0
      %2401 = vmatprep.subr.mxu0 0.0
      %2402 = vmatpush1.msra.mxu0 0.0
      %2403 = vmatprep.subr.mxu0 0.0
      %2404 = vmatpush1.msra.mxu0 0.0
      %2405 = vmatprep.subr.mxu0 0.0
      %2406 = vmatpush1.msra.mxu0 0.0
      %2407 = vmatprep.subr.mxu0 0.0
      %2408 = vmatpush1.msra.mxu0 0.0
      %2409 = vmatprep.subr.mxu0 0.0
      %2410 = vmatpush1.msra.mxu0 0.0
      %2411 = vmatprep.subr.mxu0 0.0
      %2412 = vmatpush1.msra.mxu0 0.0
      %2413 = vmatprep.subr.mxu0 0.0
      %2414 = vmatpush1.msra.mxu0 0.0
      %2415 = vmatprep.subr.mxu0 0.0
      %2416 = vmatpush1.msra.mxu0 0.0
      %2417 = vmatprep.subr.mxu0 0.0
      %2418 = vmatpush1.msra.mxu0 0.0
      %2419 = vmatprep.mubr.f32.mxu0 0.0
      %2420 = vmatmul.mubr.f32.gmra.mrb[0].mxu0 %v2353
      %v2421 = vpop.f32.mrb[0].mxu0
      %v2422 = vadd.f32 0.0, %v2421
      %v2423 = vpop.f32.mrb[0].mxu0
      %2424 = vdwg.mxu0
      %v2425 = vadd.f32 %v2346, %v2422
      %s2426 = scalar_lea.vmem [#allocation2], 32
      %v2427 = vld [vmem:[%s2426] ss:$2 sm:$0x7]
      %v2428 = vld [vmem:[%s3 + $0x100] sm:$0xff]
      %v2429 = vld [vmem:[%s3 + $0x108] sm:$0xff]
      %v2430 = vld [vmem:[%s3 + $0x110] sm:$0xff]
      %v2431 = vld [vmem:[%s3 + $0x118] sm:$0xff]
      %v2433 = vsel %vm499, %v2427, 0
      %2435 = vmatprep.subr.mxu0 0.0
      %2436 = vmatpush1.msra.mxu0 %v2428
      %2437 = vmatprep.subr.mxu0 0.0
      %2438 = vmatpush1.msra.mxu0 %v2429
      %2439 = vmatprep.subr.mxu0 0.0
      %2440 = vmatpush1.msra.mxu0 %v2430
      %2441 = vmatprep.subr.mxu0 0.0
      %2442 = vmatpush1.msra.mxu0 %v2431
      %2443 = vmatprep.subr.mxu0 0.0
      %2444 = vmatpush1.msra.mxu0 0.0
      %2445 = vmatprep.subr.mxu0 0.0
      %2446 = vmatpush1.msra.mxu0 0.0
      %2447 = vmatprep.subr.mxu0 0.0
      %2448 = vmatpush1.msra.mxu0 0.0
      %2449 = vmatprep.subr.mxu0 0.0
      %2450 = vmatpush1.msra.mxu0 0.0
      %2451 = vmatprep.subr.mxu0 0.0
      %2452 = vmatpush1.msra.mxu0 0.0
      %2453 = vmatprep.subr.mxu0 0.0
      %2454 = vmatpush1.msra.mxu0 0.0
      %2455 = vmatprep.subr.mxu0 0.0
      %2456 = vmatpush1.msra.mxu0 0.0
      %2457 = vmatprep.subr.mxu0 0.0
      %2458 = vmatpush1.msra.mxu0 0.0
      %2459 = vmatprep.subr.mxu0 0.0
      %2460 = vmatpush1.msra.mxu0 0.0
      %2461 = vmatprep.subr.mxu0 0.0
      %2462 = vmatpush1.msra.mxu0 0.0
      %2463 = vmatprep.subr.mxu0 0.0
      %2464 = vmatpush1.msra.mxu0 0.0
      %2465 = vmatprep.subr.mxu0 0.0
      %2466 = vmatpush1.msra.mxu0 0.0
      %2467 = vmatprep.subr.mxu0 0.0
      %2468 = vmatpush1.msra.mxu0 0.0
      %2469 = vmatprep.subr.mxu0 0.0
      %2470 = vmatpush1.msra.mxu0 0.0
      %2471 = vmatprep.subr.mxu0 0.0
      %2472 = vmatpush1.msra.mxu0 0.0
      %2473 = vmatprep.subr.mxu0 0.0
      %2474 = vmatpush1.msra.mxu0 0.0
      %2475 = vmatprep.subr.mxu0 0.0
      %2476 = vmatpush1.msra.mxu0 0.0
      %2477 = vmatprep.subr.mxu0 0.0
      %2478 = vmatpush1.msra.mxu0 0.0
      %2479 = vmatprep.subr.mxu0 0.0
      %2480 = vmatpush1.msra.mxu0 0.0
      %2481 = vmatprep.subr.mxu0 0.0
      %2482 = vmatpush1.msra.mxu0 0.0
      %2483 = vmatprep.subr.mxu0 0.0
      %2484 = vmatpush1.msra.mxu0 0.0
      %2485 = vmatprep.subr.mxu0 0.0
      %2486 = vmatpush1.msra.mxu0 0.0
      %2487 = vmatprep.subr.mxu0 0.0
      %2488 = vmatpush1.msra.mxu0 0.0
      %2489 = vmatprep.subr.mxu0 0.0
      %2490 = vmatpush1.msra.mxu0 0.0
      %2491 = vmatprep.subr.mxu0 0.0
      %2492 = vmatpush1.msra.mxu0 0.0
      %2493 = vmatprep.subr.mxu0 0.0
      %2494 = vmatpush1.msra.mxu0 0.0
      %2495 = vmatprep.subr.mxu0 0.0
      %2496 = vmatpush1.msra.mxu0 0.0
      %2497 = vmatprep.subr.mxu0 0.0
      %2498 = vmatpush1.msra.mxu0 0.0
      %2499 = vmatprep.mubr.f32.mxu0 0.0
      %2500 = vmatmul.mubr.f32.gmra.mrb[0].mxu0 %v2433
      %v2501 = vpop.f32.mrb[0].mxu0
      %v2502 = vadd.f32 0.0, %v2501
      %v2503 = vpop.f32.mrb[0].mxu0
      %2504 = vdwg.mxu0
      %v2505 = vadd.f32 %v2425, %v2502
      %s2506 = scalar_lea.vmem [#allocation2], 33
      %v2507 = vld [vmem:[%s2506] ss:$2 sm:$0x7]
      %v2508 = vld [vmem:[%s3 + $0x120] sm:$0xff]
      %v2509 = vld [vmem:[%s3 + $0x128] sm:$0xff]
      %v2510 = vld [vmem:[%s3 + $0x130] sm:$0xff]
      %v2511 = vld [vmem:[%s3 + $0x138] sm:$0xff]
      %v2513 = vsel %vm499, %v2507, 0
      %2515 = vmatprep.subr.mxu0 0.0
      %2516 = vmatpush1.msra.mxu0 %v2508
      %2517 = vmatprep.subr.mxu0 0.0
      %2518 = vmatpush1.msra.mxu0 %v2509
      %2519 = vmatprep.subr.mxu0 0.0
      %2520 = vmatpush1.msra.mxu0 %v2510
      %2521 = vmatprep.subr.mxu0 0.0
      %2522 = vmatpush1.msra.mxu0 %v2511
      %2523 = vmatprep.subr.mxu0 0.0
      %2524 = vmatpush1.msra.mxu0 0.0
      %2525 = vmatprep.subr.mxu0 0.0
      %2526 = vmatpush1.msra.mxu0 0.0
      %2527 = vmatprep.subr.mxu0 0.0
      %2528 = vmatpush1.msra.mxu0 0.0
      %2529 = vmatprep.subr.mxu0 0.0
      %2530 = vmatpush1.msra.mxu0 0.0
      %2531 = vmatprep.subr.mxu0 0.0
      %2532 = vmatpush1.msra.mxu0 0.0
      %2533 = vmatprep.subr.mxu0 0.0
      %2534 = vmatpush1.msra.mxu0 0.0
      %2535 = vmatprep.subr.mxu0 0.0
      %2536 = vmatpush1.msra.mxu0 0.0
      %2537 = vmatprep.subr.mxu0 0.0
      %2538 = vmatpush1.msra.mxu0 0.0
      %2539 = vmatprep.subr.mxu0 0.0
      %2540 = vmatpush1.msra.mxu0 0.0
      %2541 = vmatprep.subr.mxu0 0.0
      %2542 = vmatpush1.msra.mxu0 0.0
      %2543 = vmatprep.subr.mxu0 0.0
      %2544 = vmatpush1.msra.mxu0 0.0
      %2545 = vmatprep.subr.mxu0 0.0
      %2546 = vmatpush1.msra.mxu0 0.0
      %2547 = vmatprep.subr.mxu0 0.0
      %2548 = vmatpush1.msra.mxu0 0.0
      %2549 = vmatprep.subr.mxu0 0.0
      %2550 = vmatpush1.msra.mxu0 0.0
      %2551 = vmatprep.subr.mxu0 0.0
      %2552 = vmatpush1.msra.mxu0 0.0
      %2553 = vmatprep.subr.mxu0 0.0
      %2554 = vmatpush1.msra.mxu0 0.0
      %2555 = vmatprep.subr.mxu0 0.0
      %2556 = vmatpush1.msra.mxu0 0.0
      %2557 = vmatprep.subr.mxu0 0.0
      %2558 = vmatpush1.msra.mxu0 0.0
      %2559 = vmatprep.subr.mxu0 0.0
      %2560 = vmatpush1.msra.mxu0 0.0
      %2561 = vmatprep.subr.mxu0 0.0
      %2562 = vmatpush1.msra.mxu0 0.0
      %2563 = vmatprep.subr.mxu0 0.0
      %2564 = vmatpush1.msra.mxu0 0.0
      %2565 = vmatprep.subr.mxu0 0.0
      %2566 = vmatpush1.msra.mxu0 0.0
      %2567 = vmatprep.subr.mxu0 0.0
      %2568 = vmatpush1.msra.mxu0 0.0
      %2569 = vmatprep.subr.mxu0 0.0
      %2570 = vmatpush1.msra.mxu0 0.0
      %2571 = vmatprep.subr.mxu0 0.0
      %2572 = vmatpush1.msra.mxu0 0.0
      %2573 = vmatprep.subr.mxu0 0.0
      %2574 = vmatpush1.msra.mxu0 0.0
      %2575 = vmatprep.subr.mxu0 0.0
      %2576 = vmatpush1.msra.mxu0 0.0
      %2577 = vmatprep.subr.mxu0 0.0
      %2578 = vmatpush1.msra.mxu0 0.0
      %2579 = vmatprep.mubr.f32.mxu0 0.0
      %2580 = vmatmul.mubr.f32.gmra.mrb[0].mxu0 %v2513
      %v2581 = vpop.f32.mrb[0].mxu0
      %v2582 = vadd.f32 0.0, %v2581
      %v2583 = vpop.f32.mrb[0].mxu0
      %2584 = vdwg.mxu0
      %v2585 = vadd.f32 %v2505, %v2582
      %s2586 = scalar_lea.vmem [#allocation2], 34
      %v2587 = vld [vmem:[%s2586] ss:$2 sm:$0x7]
      %v2588 = vld [vmem:[%s3 + $0x140] sm:$0xff]
      %v2589 = vld [vmem:[%s3 + $0x148] sm:$0xff]
      %v2590 = vld [vmem:[%s3 + $0x150] sm:$0xff]
      %v2591 = vld [vmem:[%s3 + $0x158] sm:$0xff]
      %v2593 = vsel %vm499, %v2587, 0
      %2595 = vmatprep.subr.mxu0 0.0
      %2596 = vmatpush1.msra.mxu0 %v2588
      %2597 = vmatprep.subr.mxu0 0.0
      %2598 = vmatpush1.msra.mxu0 %v2589
      %2599 = vmatprep.subr.mxu0 0.0
      %2600 = vmatpush1.msra.mxu0 %v2590
      %2601 = vmatprep.subr.mxu0 0.0
      %2602 = vmatpush1.msra.mxu0 %v2591
      %2603 = vmatprep.subr.mxu0 0.0
      %2604 = vmatpush1.msra.mxu0 0.0
      %2605 = vmatprep.subr.mxu0 0.0
      %2606 = vmatpush1.msra.mxu0 0.0
      %2607 = vmatprep.subr.mxu0 0.0
      %2608 = vmatpush1.msra.mxu0 0.0
      %2609 = vmatprep.subr.mxu0 0.0
      %2610 = vmatpush1.msra.mxu0 0.0
      %2611 = vmatprep.subr.mxu0 0.0
      %2612 = vmatpush1.msra.mxu0 0.0
      %2613 = vmatprep.subr.mxu0 0.0
      %2614 = vmatpush1.msra.mxu0 0.0
      %2615 = vmatprep.subr.mxu0 0.0
      %2616 = vmatpush1.msra.mxu0 0.0
      %2617 = vmatprep.subr.mxu0 0.0
      %2618 = vmatpush1.msra.mxu0 0.0
      %2619 = vmatprep.subr.mxu0 0.0
      %2620 = vmatpush1.msra.mxu0 0.0
      %2621 = vmatprep.subr.mxu0 0.0
      %2622 = vmatpush1.msra.mxu0 0.0
      %2623 = vmatprep.subr.mxu0 0.0
      %2624 = vmatpush1.msra.mxu0 0.0
      %2625 = vmatprep.subr.mxu0 0.0
      %2626 = vmatpush1.msra.mxu0 0.0
      %2627 = vmatprep.subr.mxu0 0.0
      %2628 = vmatpush1.msra.mxu0 0.0
      %2629 = vmatprep.subr.mxu0 0.0
      %2630 = vmatpush1.msra.mxu0 0.0
      %2631 = vmatprep.subr.mxu0 0.0
      %2632 = vmatpush1.msra.mxu0 0.0
      %2633 = vmatprep.subr.mxu0 0.0
      %2634 = vmatpush1.msra.mxu0 0.0
      %2635 = vmatprep.subr.mxu0 0.0
      %2636 = vmatpush1.msra.mxu0 0.0
      %2637 = vmatprep.subr.mxu0 0.0
      %2638 = vmatpush1.msra.mxu0 0.0
      %2639 = vmatprep.subr.mxu0 0.0
      %2640 = vmatpush1.msra.mxu0 0.0
      %2641 = vmatprep.subr.mxu0 0.0
      %2642 = vmatpush1.msra.mxu0 0.0
      %2643 = vmatprep.subr.mxu0 0.0
      %2644 = vmatpush1.msra.mxu0 0.0
      %2645 = vmatprep.subr.mxu0 0.0
      %2646 = vmatpush1.msra.mxu0 0.0
      %2647 = vmatprep.subr.mxu0 0.0
      %2648 = vmatpush1.msra.mxu0 0.0
      %2649 = vmatprep.subr.mxu0 0.0
      %2650 = vmatpush1.msra.mxu0 0.0
      %2651 = vmatprep.subr.mxu0 0.0
      %2652 = vmatpush1.msra.mxu0 0.0
      %2653 = vmatprep.subr.mxu0 0.0
      %2654 = vmatpush1.msra.mxu0 0.0
      %2655 = vmatprep.subr.mxu0 0.0
      %2656 = vmatpush1.msra.mxu0 0.0
      %2657 = vmatprep.subr.mxu0 0.0
      %2658 = vmatpush1.msra.mxu0 0.0
      %2659 = vmatprep.mubr.f32.mxu0 0.0
      %2660 = vmatmul.mubr.f32.gmra.mrb[0].mxu0 %v2593
      %v2661 = vpop.f32.mrb[0].mxu0
      %v2662 = vadd.f32 0.0, %v2661
      %v2663 = vpop.f32.mrb[0].mxu0
      %2664 = vdwg.mxu0
      %v2665 = vadd.f32 %v2585, %v2662
      %s2666 = scalar_lea.vmem [#allocation2], 35
      %v2667 = vld [vmem:[%s2666] ss:$2 sm:$0x7]
      %v2668 = vld [vmem:[%s3 + $0x160] sm:$0xff]
      %v2669 = vld [vmem:[%s3 + $0x168] sm:$0xff]
      %v2670 = vld [vmem:[%s3 + $0x170] sm:$0xff]
      %v2671 = vld [vmem:[%s3 + $0x178] sm:$0xff]
      %v2673 = vsel %vm499, %v2667, 0
      %2675 = vmatprep.subr.mxu0 0.0
      %2676 = vmatpush1.msra.mxu0 %v2668
      %2677 = vmatprep.subr.mxu0 0.0
      %2678 = vmatpush1.msra.mxu0 %v2669
      %2679 = vmatprep.subr.mxu0 0.0
      %2680 = vmatpush1.msra.mxu0 %v2670
      %2681 = vmatprep.subr.mxu0 0.0
      %2682 = vmatpush1.msra.mxu0 %v2671
      %2683 = vmatprep.subr.mxu0 0.0
      %2684 = vmatpush1.msra.mxu0 0.0
      %2685 = vmatprep.subr.mxu0 0.0
      %2686 = vmatpush1.msra.mxu0 0.0
      %2687 = vmatprep.subr.mxu0 0.0
      %2688 = vmatpush1.msra.mxu0 0.0
      %2689 = vmatprep.subr.mxu0 0.0
      %2690 = vmatpush1.msra.mxu0 0.0
      %2691 = vmatprep.subr.mxu0 0.0
      %2692 = vmatpush1.msra.mxu0 0.0
      %2693 = vmatprep.subr.mxu0 0.0
      %2694 = vmatpush1.msra.mxu0 0.0
      %2695 = vmatprep.subr.mxu0 0.0
      %2696 = vmatpush1.msra.mxu0 0.0
      %2697 = vmatprep.subr.mxu0 0.0
      %2698 = vmatpush1.msra.mxu0 0.0
      %2699 = vmatprep.subr.mxu0 0.0
      %2700 = vmatpush1.msra.mxu0 0.0
      %2701 = vmatprep.subr.mxu0 0.0
      %2702 = vmatpush1.msra.mxu0 0.0
      %2703 = vmatprep.subr.mxu0 0.0
      %2704 = vmatpush1.msra.mxu0 0.0
      %2705 = vmatprep.subr.mxu0 0.0
      %2706 = vmatpush1.msra.mxu0 0.0
      %2707 = vmatprep.subr.mxu0 0.0
      %2708 = vmatpush1.msra.mxu0 0.0
      %2709 = vmatprep.subr.mxu0 0.0
      %2710 = vmatpush1.msra.mxu0 0.0
      %2711 = vmatprep.subr.mxu0 0.0
      %2712 = vmatpush1.msra.mxu0 0.0
      %2713 = vmatprep.subr.mxu0 0.0
      %2714 = vmatpush1.msra.mxu0 0.0
      %2715 = vmatprep.subr.mxu0 0.0
      %2716 = vmatpush1.msra.mxu0 0.0
      %2717 = vmatprep.subr.mxu0 0.0
      %2718 = vmatpush1.msra.mxu0 0.0
      %2719 = vmatprep.subr.mxu0 0.0
      %2720 = vmatpush1.msra.mxu0 0.0
      %2721 = vmatprep.subr.mxu0 0.0
      %2722 = vmatpush1.msra.mxu0 0.0
      %2723 = vmatprep.subr.mxu0 0.0
      %2724 = vmatpush1.msra.mxu0 0.0
      %2725 = vmatprep.subr.mxu0 0.0
      %2726 = vmatpush1.msra.mxu0 0.0
      %2727 = vmatprep.subr.mxu0 0.0
      %2728 = vmatpush1.msra.mxu0 0.0
      %2729 = vmatprep.subr.mxu0 0.0
      %2730 = vmatpush1.msra.mxu0 0.0
      %2731 = vmatprep.subr.mxu0 0.0
      %2732 = vmatpush1.msra.mxu0 0.0
      %2733 = vmatprep.subr.mxu0 0.0
      %2734 = vmatpush1.msra.mxu0 0.0
      %2735 = vmatprep.subr.mxu0 0.0
      %2736 = vmatpush1.msra.mxu0 0.0
      %2737 = vmatprep.subr.mxu0 0.0
      %2738 = vmatpush1.msra.mxu0 0.0
      %2739 = vmatprep.mubr.f32.mxu0 0.0
      %2740 = vmatmul.mubr.f32.gmra.mrb[0].mxu0 %v2673
      %v2741 = vpop.f32.mrb[0].mxu0
      %v2742 = vadd.f32 0.0, %v2741
      %v2743 = vpop.f32.mrb[0].mxu0
      %2744 = vdwg.mxu0
      %v2745 = vadd.f32 %v2665, %v2742
      %s2746 = scalar_lea.vmem [#allocation2], 40
      %v2747 = vld [vmem:[%s2746] ss:$2 sm:$0x7]
      %v2748 = vld [vmem:[%s3 + $0x180] sm:$0xff]
      %v2749 = vld [vmem:[%s3 + $0x188] sm:$0xff]
      %v2750 = vld [vmem:[%s3 + $0x190] sm:$0xff]
      %v2751 = vld [vmem:[%s3 + $0x198] sm:$0xff]
      %v2753 = vsel %vm499, %v2747, 0
      %2755 = vmatprep.subr.mxu0 0.0
      %2756 = vmatpush1.msra.mxu0 %v2748
      %2757 = vmatprep.subr.mxu0 0.0
      %2758 = vmatpush1.msra.mxu0 %v2749
      %2759 = vmatprep.subr.mxu0 0.0
      %2760 = vmatpush1.msra.mxu0 %v2750
      %2761 = vmatprep.subr.mxu0 0.0
      %2762 = vmatpush1.msra.mxu0 %v2751
      %2763 = vmatprep.subr.mxu0 0.0
      %2764 = vmatpush1.msra.mxu0 0.0
      %2765 = vmatprep.subr.mxu0 0.0
      %2766 = vmatpush1.msra.mxu0 0.0
      %2767 = vmatprep.subr.mxu0 0.0
      %2768 = vmatpush1.msra.mxu0 0.0
      %2769 = vmatprep.subr.mxu0 0.0
      %2770 = vmatpush1.msra.mxu0 0.0
      %2771 = vmatprep.subr.mxu0 0.0
      %2772 = vmatpush1.msra.mxu0 0.0
      %2773 = vmatprep.subr.mxu0 0.0
      %2774 = vmatpush1.msra.mxu0 0.0
      %2775 = vmatprep.subr.mxu0 0.0
      %2776 = vmatpush1.msra.mxu0 0.0
      %2777 = vmatprep.subr.mxu0 0.0
      %2778 = vmatpush1.msra.mxu0 0.0
      %2779 = vmatprep.subr.mxu0 0.0
      %2780 = vmatpush1.msra.mxu0 0.0
      %2781 = vmatprep.subr.mxu0 0.0
      %2782 = vmatpush1.msra.mxu0 0.0
      %2783 = vmatprep.subr.mxu0 0.0
      %2784 = vmatpush1.msra.mxu0 0.0
      %2785 = vmatprep.subr.mxu0 0.0
      %2786 = vmatpush1.msra.mxu0 0.0
      %2787 = vmatprep.subr.mxu0 0.0
      %2788 = vmatpush1.msra.mxu0 0.0
      %2789 = vmatprep.subr.mxu0 0.0
      %2790 = vmatpush1.msra.mxu0 0.0
      %2791 = vmatprep.subr.mxu0 0.0
      %2792 = vmatpush1.msra.mxu0 0.0
      %2793 = vmatprep.subr.mxu0 0.0
      %2794 = vmatpush1.msra.mxu0 0.0
      %2795 = vmatprep.subr.mxu0 0.0
      %2796 = vmatpush1.msra.mxu0 0.0
      %2797 = vmatprep.subr.mxu0 0.0
      %2798 = vmatpush1.msra.mxu0 0.0
      %2799 = vmatprep.subr.mxu0 0.0
      %2800 = vmatpush1.msra.mxu0 0.0
      %2801 = vmatprep.subr.mxu0 0.0
      %2802 = vmatpush1.msra.mxu0 0.0
      %2803 = vmatprep.subr.mxu0 0.0
      %2804 = vmatpush1.msra.mxu0 0.0
      %2805 = vmatprep.subr.mxu0 0.0
      %2806 = vmatpush1.msra.mxu0 0.0
      %2807 = vmatprep.subr.mxu0 0.0
      %2808 = vmatpush1.msra.mxu0 0.0
      %2809 = vmatprep.subr.mxu0 0.0
      %2810 = vmatpush1.msra.mxu0 0.0
      %2811 = vmatprep.subr.mxu0 0.0
      %2812 = vmatpush1.msra.mxu0 0.0
      %2813 = vmatprep.subr.mxu0 0.0
      %2814 = vmatpush1.msra.mxu0 0.0
      %2815 = vmatprep.subr.mxu0 0.0
      %2816 = vmatpush1.msra.mxu0 0.0
      %2817 = vmatprep.subr.mxu0 0.0
      %2818 = vmatpush1.msra.mxu0 0.0
      %2819 = vmatprep.mubr.f32.mxu0 0.0
      %2820 = vmatmul.mubr.f32.gmra.mrb[0].mxu0 %v2753
      %v2821 = vpop.f32.mrb[0].mxu0
      %v2822 = vadd.f32 0.0, %v2821
      %v2823 = vpop.f32.mrb[0].mxu0
      %2824 = vdwg.mxu0
      %v2825 = vadd.f32 %v2745, %v2822
      %s2826 = scalar_lea.vmem [#allocation2], 41
      %v2827 = vld [vmem:[%s2826] ss:$2 sm:$0x7]
      %v2828 = vld [vmem:[%s3 + $0x1a0] sm:$0xff]
      %v2829 = vld [vmem:[%s3 + $0x1a8] sm:$0xff]
      %v2830 = vld [vmem:[%s3 + $0x1b0] sm:$0xff]
      %v2831 = vld [vmem:[%s3 + $0x1b8] sm:$0xff]
      %v2833 = vsel %vm499, %v2827, 0
      %2835 = vmatprep.subr.mxu0 0.0
      %2836 = vmatpush1.msra.mxu0 %v2828
      %2837 = vmatprep.subr.mxu0 0.0
      %2838 = vmatpush1.msra.mxu0 %v2829
      %2839 = vmatprep.subr.mxu0 0.0
      %2840 = vmatpush1.msra.mxu0 %v2830
      %2841 = vmatprep.subr.mxu0 0.0
      %2842 = vmatpush1.msra.mxu0 %v2831
      %2843 = vmatprep.subr.mxu0 0.0
      %2844 = vmatpush1.msra.mxu0 0.0
      %2845 = vmatprep.subr.mxu0 0.0
      %2846 = vmatpush1.msra.mxu0 0.0
      %2847 = vmatprep.subr.mxu0 0.0
      %2848 = vmatpush1.msra.mxu0 0.0
      %2849 = vmatprep.subr.mxu0 0.0
      %2850 = vmatpush1.msra.mxu0 0.0
      %2851 = vmatprep.subr.mxu0 0.0
      %2852 = vmatpush1.msra.mxu0 0.0
      %2853 = vmatprep.subr.mxu0 0.0
      %2854 = vmatpush1.msra.mxu0 0.0
      %2855 = vmatprep.subr.mxu0 0.0
      %2856 = vmatpush1.msra.mxu0 0.0
      %2857 = vmatprep.subr.mxu0 0.0
      %2858 = vmatpush1.msra.mxu0 0.0
      %2859 = vmatprep.subr.mxu0 0.0
      %2860 = vmatpush1.msra.mxu0 0.0
      %2861 = vmatprep.subr.mxu0 0.0
      %2862 = vmatpush1.msra.mxu0 0.0
      %2863 = vmatprep.subr.mxu0 0.0
      %2864 = vmatpush1.msra.mxu0 0.0
      %2865 = vmatprep.subr.mxu0 0.0
      %2866 = vmatpush1.msra.mxu0 0.0
      %2867 = vmatprep.subr.mxu0 0.0
      %2868 = vmatpush1.msra.mxu0 0.0
      %2869 = vmatprep.subr.mxu0 0.0
      %2870 = vmatpush1.msra.mxu0 0.0
      %2871 = vmatprep.subr.mxu0 0.0
      %2872 = vmatpush1.msra.mxu0 0.0
      %2873 = vmatprep.subr.mxu0 0.0
      %2874 = vmatpush1.msra.mxu0 0.0
      %2875 = vmatprep.subr.mxu0 0.0
      %2876 = vmatpush1.msra.mxu0 0.0
      %2877 = vmatprep.subr.mxu0 0.0
      %2878 = vmatpush1.msra.mxu0 0.0
      %2879 = vmatprep.subr.mxu0 0.0
      %2880 = vmatpush1.msra.mxu0 0.0
      %2881 = vmatprep.subr.mxu0 0.0
      %2882 = vmatpush1.msra.mxu0 0.0
      %2883 = vmatprep.subr.mxu0 0.0
      %2884 = vmatpush1.msra.mxu0 0.0
      %2885 = vmatprep.subr.mxu0 0.0
      %2886 = vmatpush1.msra.mxu0 0.0
      %2887 = vmatprep.subr.mxu0 0.0
      %2888 = vmatpush1.msra.mxu0 0.0
      %2889 = vmatprep.subr.mxu0 0.0
      %2890 = vmatpush1.msra.mxu0 0.0
      %2891 = vmatprep.subr.mxu0 0.0
      %2892 = vmatpush1.msra.mxu0 0.0
      %2893 = vmatprep.subr.mxu0 0.0
      %2894 = vmatpush1.msra.mxu0 0.0
      %2895 = vmatprep.subr.mxu0 0.0
      %2896 = vmatpush1.msra.mxu0 0.0
      %2897 = vmatprep.subr.mxu0 0.0
      %2898 = vmatpush1.msra.mxu0 0.0
      %2899 = vmatprep.mubr.f32.mxu0 0.0
      %2900 = vmatmul.mubr.f32.gmra.mrb[0].mxu0 %v2833
      %v2901 = vpop.f32.mrb[0].mxu0
      %v2902 = vadd.f32 0.0, %v2901
      %v2903 = vpop.f32.mrb[0].mxu0
      %2904 = vdwg.mxu0
      %v2905 = vadd.f32 %v2825, %v2902
      %s2906 = scalar_lea.vmem [#allocation2], 42
      %v2907 = vld [vmem:[%s2906] ss:$2 sm:$0x7]
      %v2908 = vld [vmem:[%s3 + $0x1c0] sm:$0xff]
      %v2909 = vld [vmem:[%s3 + $0x1c8] sm:$0xff]
      %v2910 = vld [vmem:[%s3 + $0x1d0] sm:$0xff]
      %v2911 = vld [vmem:[%s3 + $0x1d8] sm:$0xff]
      %v2913 = vsel %vm499, %v2907, 0
      %2915 = vmatprep.subr.mxu0 0.0
      %2916 = vmatpush1.msra.mxu0 %v2908
      %2917 = vmatprep.subr.mxu0 0.0
      %2918 = vmatpush1.msra.mxu0 %v2909
      %2919 = vmatprep.subr.mxu0 0.0
      %2920 = vmatpush1.msra.mxu0 %v2910
      %2921 = vmatprep.subr.mxu0 0.0
      %2922 = vmatpush1.msra.mxu0 %v2911
      %2923 = vmatprep.subr.mxu0 0.0
      %2924 = vmatpush1.msra.mxu0 0.0
      %2925 = vmatprep.subr.mxu0 0.0
      %2926 = vmatpush1.msra.mxu0 0.0
      %2927 = vmatprep.subr.mxu0 0.0
      %2928 = vmatpush1.msra.mxu0 0.0
      %2929 = vmatprep.subr.mxu0 0.0
      %2930 = vmatpush1.msra.mxu0 0.0
      %2931 = vmatprep.subr.mxu0 0.0
      %2932 = vmatpush1.msra.mxu0 0.0
      %2933 = vmatprep.subr.mxu0 0.0
      %2934 = vmatpush1.msra.mxu0 0.0
      %2935 = vmatprep.subr.mxu0 0.0
      %2936 = vmatpush1.msra.mxu0 0.0
      %2937 = vmatprep.subr.mxu0 0.0
      %2938 = vmatpush1.msra.mxu0 0.0
      %2939 = vmatprep.subr.mxu0 0.0
      %2940 = vmatpush1.msra.mxu0 0.0
      %2941 = vmatprep.subr.mxu0 0.0
      %2942 = vmatpush1.msra.mxu0 0.0
      %2943 = vmatprep.subr.mxu0 0.0
      %2944 = vmatpush1.msra.mxu0 0.0
      %2945 = vmatprep.subr.mxu0 0.0
      %2946 = vmatpush1.msra.mxu0 0.0
      %2947 = vmatprep.subr.mxu0 0.0
      %2948 = vmatpush1.msra.mxu0 0.0
      %2949 = vmatprep.subr.mxu0 0.0
      %2950 = vmatpush1.msra.mxu0 0.0
      %2951 = vmatprep.subr.mxu0 0.0
      %2952 = vmatpush1.msra.mxu0 0.0
      %2953 = vmatprep.subr.mxu0 0.0
      %2954 = vmatpush1.msra.mxu0 0.0
      %2955 = vmatprep.subr.mxu0 0.0
      %2956 = vmatpush1.msra.mxu0 0.0
      %2957 = vmatprep.subr.mxu0 0.0
      %2958 = vmatpush1.msra.mxu0 0.0
      %2959 = vmatprep.subr.mxu0 0.0
      %2960 = vmatpush1.msra.mxu0 0.0
      %2961 = vmatprep.subr.mxu0 0.0
      %2962 = vmatpush1.msra.mxu0 0.0
      %2963 = vmatprep.subr.mxu0 0.0
      %2964 = vmatpush1.msra.mxu0 0.0
      %2965 = vmatprep.subr.mxu0 0.0
      %2966 = vmatpush1.msra.mxu0 0.0
      %2967 = vmatprep.subr.mxu0 0.0
      %2968 = vmatpush1.msra.mxu0 0.0
      %2969 = vmatprep.subr.mxu0 0.0
      %2970 = vmatpush1.msra.mxu0 0.0
      %2971 = vmatprep.subr.mxu0 0.0
      %2972 = vmatpush1.msra.mxu0 0.0
      %2973 = vmatprep.subr.mxu0 0.0
      %2974 = vmatpush1.msra.mxu0 0.0
      %2975 = vmatprep.subr.mxu0 0.0
      %2976 = vmatpush1.msra.mxu0 0.0
      %2977 = vmatprep.subr.mxu0 0.0
      %2978 = vmatpush1.msra.mxu0 0.0
      %2979 = vmatprep.mubr.f32.mxu0 0.0
      %2980 = vmatmul.mubr.f32.gmra.mrb[0].mxu0 %v2913
      %v2981 = vpop.f32.mrb[0].mxu0
      %v2982 = vadd.f32 0.0, %v2981
      %v2983 = vpop.f32.mrb[0].mxu0
      %2984 = vdwg.mxu0
      %v2985 = vadd.f32 %v2905, %v2982
      %s2986 = scalar_lea.vmem [#allocation2], 43
      %v2987 = vld [vmem:[%s2986] ss:$2 sm:$0x7]
      %v2988 = vld [vmem:[%s3 + $0x1e0] sm:$0xff]
      %v2989 = vld [vmem:[%s3 + $0x1e8] sm:$0xff]
      %v2990 = vld [vmem:[%s3 + $0x1f0] sm:$0xff]
      %v2991 = vld [vmem:[%s3 + $0x1f8] sm:$0xff]
      %v2993 = vsel %vm499, %v2987, 0
      %2995 = vmatprep.subr.mxu0 0.0
      %2996 = vmatpush1.msra.mxu0 %v2988
      %2997 = vmatprep.subr.mxu0 0.0
      %2998 = vmatpush1.msra.mxu0 %v2989
      %2999 = vmatprep.subr.mxu0 0.0
      %3000 = vmatpush1.msra.mxu0 %v2990
      %3001 = vmatprep.subr.mxu0 0.0
      %3002 = vmatpush1.msra.mxu0 %v2991
      %3003 = vmatprep.subr.mxu0 0.0
      %3004 = vmatpush1.msra.mxu0 0.0
      %3005 = vmatprep.subr.mxu0 0.0
      %3006 = vmatpush1.msra.mxu0 0.0
      %3007 = vmatprep.subr.mxu0 0.0
      %3008 = vmatpush1.msra.mxu0 0.0
      %3009 = vmatprep.subr.mxu0 0.0
      %3010 = vmatpush1.msra.mxu0 0.0
      %3011 = vmatprep.subr.mxu0 0.0
      %3012 = vmatpush1.msra.mxu0 0.0
      %3013 = vmatprep.subr.mxu0 0.0
      %3014 = vmatpush1.msra.mxu0 0.0
      %3015 = vmatprep.subr.mxu0 0.0
      %3016 = vmatpush1.msra.mxu0 0.0
      %3017 = vmatprep.subr.mxu0 0.0
      %3018 = vmatpush1.msra.mxu0 0.0
      %3019 = vmatprep.subr.mxu0 0.0
      %3020 = vmatpush1.msra.mxu0 0.0
      %3021 = vmatprep.subr.mxu0 0.0
      %3022 = vmatpush1.msra.mxu0 0.0
      %3023 = vmatprep.subr.mxu0 0.0
      %3024 = vmatpush1.msra.mxu0 0.0
      %3025 = vmatprep.subr.mxu0 0.0
      %3026 = vmatpush1.msra.mxu0 0.0
      %3027 = vmatprep.subr.mxu0 0.0
      %3028 = vmatpush1.msra.mxu0 0.0
      %3029 = vmatprep.subr.mxu0 0.0
      %3030 = vmatpush1.msra.mxu0 0.0
      %3031 = vmatprep.subr.mxu0 0.0
      %3032 = vmatpush1.msra.mxu0 0.0
      %3033 = vmatprep.subr.mxu0 0.0
      %3034 = vmatpush1.msra.mxu0 0.0
      %3035 = vmatprep.subr.mxu0 0.0
      %3036 = vmatpush1.msra.mxu0 0.0
      %3037 = vmatprep.subr.mxu0 0.0
      %3038 = vmatpush1.msra.mxu0 0.0
      %3039 = vmatprep.subr.mxu0 0.0
      %3040 = vmatpush1.msra.mxu0 0.0
      %3041 = vmatprep.subr.mxu0 0.0
      %3042 = vmatpush1.msra.mxu0 0.0
      %3043 = vmatprep.subr.mxu0 0.0
      %3044 = vmatpush1.msra.mxu0 0.0
      %3045 = vmatprep.subr.mxu0 0.0
      %3046 = vmatpush1.msra.mxu0 0.0
      %3047 = vmatprep.subr.mxu0 0.0
      %3048 = vmatpush1.msra.mxu0 0.0
      %3049 = vmatprep.subr.mxu0 0.0
      %3050 = vmatpush1.msra.mxu0 0.0
      %3051 = vmatprep.subr.mxu0 0.0
      %3052 = vmatpush1.msra.mxu0 0.0
      %3053 = vmatprep.subr.mxu0 0.0
      %3054 = vmatpush1.msra.mxu0 0.0
      %3055 = vmatprep.subr.mxu0 0.0
      %3056 = vmatpush1.msra.mxu0 0.0
      %3057 = vmatprep.subr.mxu0 0.0
      %3058 = vmatpush1.msra.mxu0 0.0
      %3059 = vmatprep.mubr.f32.mxu0 0.0
      %3060 = vmatmul.mubr.f32.gmra.mrb[0].mxu0 %v2993
      %v3061 = vpop.f32.mrb[0].mxu0
      %v3062 = vadd.f32 0.0, %v3061
      %v3063 = vpop.f32.mrb[0].mxu0
      %3064 = vdwg.mxu0
      %v3065 = vadd.f32 %v2985, %v3062
      %v3066 = vadd.f32 %v3065, %v1790
      %v3067 = vmax.f32 %v3066, 0.0
      %3068 = vst.msk [vmem:[#allocation3 + $0x3] sm:$0x7] %vm1794, %v3067
      %v3069 = vld [vmem:[%s2426] ss:$2 sm:$0x7]
      %v3070 = vld [vmem:[%s3] sm:$0xff]
      %v3071 = vld [vmem:[%s3 + $0x8] sm:$0xff]
      %v3072 = vld [vmem:[%s3 + $0x10] sm:$0xff]
      %v3073 = vld [vmem:[%s3 + $0x18] sm:$0xff]
      %v3074 = vld [vmem:[%s2506] ss:$2 sm:$0x7]
      %v3075 = vld [vmem:[%s3 + $0x20] sm:$0xff]
      %v3076 = vld [vmem:[%s3 + $0x28] sm:$0xff]
      %v3077 = vld [vmem:[%s3 + $0x30] sm:$0xff]
      %v3078 = vld [vmem:[%s3 + $0x38] sm:$0xff]
      %v3080 = vsel %vm499, %v3074, 0
      %3082 = vmatprep.subr.mxu0 0.0
      %3083 = vmatpush1.msra.mxu0 %v3075
      %3084 = vmatprep.subr.mxu0 0.0
      %3085 = vmatpush1.msra.mxu0 %v3076
      %3086 = vmatprep.subr.mxu0 0.0
      %3087 = vmatpush1.msra.mxu0 %v3077
      %3088 = vmatprep.subr.mxu0 0.0
      %3089 = vmatpush1.msra.mxu0 %v3078
      %3090 = vmatprep.subr.mxu0 0.0
      %3091 = vmatpush1.msra.mxu0 0.0
      %3092 = vmatprep.subr.mxu0 0.0
      %3093 = vmatpush1.msra.mxu0 0.0
      %3094 = vmatprep.subr.mxu0 0.0
      %3095 = vmatpush1.msra.mxu0 0.0
      %3096 = vmatprep.subr.mxu0 0.0
      %3097 = vmatpush1.msra.mxu0 0.0
      %3098 = vmatprep.subr.mxu0 0.0
      %3099 = vmatpush1.msra.mxu0 0.0
      %3100 = vmatprep.subr.mxu0 0.0
      %3101 = vmatpush1.msra.mxu0 0.0
      %3102 = vmatprep.subr.mxu0 0.0
      %3103 = vmatpush1.msra.mxu0 0.0
      %3104 = vmatprep.subr.mxu0 0.0
      %3105 = vmatpush1.msra.mxu0 0.0
      %3106 = vmatprep.subr.mxu0 0.0
      %3107 = vmatpush1.msra.mxu0 0.0
      %3108 = vmatprep.subr.mxu0 0.0
      %3109 = vmatpush1.msra.mxu0 0.0
      %3110 = vmatprep.subr.mxu0 0.0
      %3111 = vmatpush1.msra.mxu0 0.0
      %3112 = vmatprep.subr.mxu0 0.0
      %3113 = vmatpush1.msra.mxu0 0.0
      %3114 = vmatprep.subr.mxu0 0.0
      %3115 = vmatpush1.msra.mxu0 0.0
      %3116 = vmatprep.subr.mxu0 0.0
      %3117 = vmatpush1.msra.mxu0 0.0
      %3118 = vmatprep.subr.mxu0 0.0
      %3119 = vmatpush1.msra.mxu0 0.0
      %3120 = vmatprep.subr.mxu0 0.0
      %3121 = vmatpush1.msra.mxu0 0.0
      %3122 = vmatprep.subr.mxu0 0.0
      %3123 = vmatpush1.msra.mxu0 0.0
      %3124 = vmatprep.subr.mxu0 0.0
      %3125 = vmatpush1.msra.mxu0 0.0
      %3126 = vmatprep.subr.mxu0 0.0
      %3127 = vmatpush1.msra.mxu0 0.0
      %3128 = vmatprep.subr.mxu0 0.0
      %3129 = vmatpush1.msra.mxu0 0.0
      %3130 = vmatprep.subr.mxu0 0.0
      %3131 = vmatpush1.msra.mxu0 0.0
      %3132 = vmatprep.subr.mxu0 0.0
      %3133 = vmatpush1.msra.mxu0 0.0
      %3134 = vmatprep.subr.mxu0 0.0
      %3135 = vmatpush1.msra.mxu0 0.0
      %3136 = vmatprep.subr.mxu0 0.0
      %3137 = vmatpush1.msra.mxu0 0.0
      %3138 = vmatprep.subr.mxu0 0.0
      %3139 = vmatpush1.msra.mxu0 0.0
      %3140 = vmatprep.subr.mxu0 0.0
      %3141 = vmatpush1.msra.mxu0 0.0
      %3142 = vmatprep.subr.mxu0 0.0
      %3143 = vmatpush1.msra.mxu0 0.0
      %3144 = vmatprep.subr.mxu0 0.0
      %3145 = vmatpush1.msra.mxu0 0.0
      %3146 = vmatprep.mubr.f32.mxu0 0.0
      %3147 = vmatmul.mubr.f32.gmra.mrb[0].mxu0 %v3080
      %v3148 = vpop.f32.mrb[0].mxu0
      %v3149 = vadd.f32 0.0, %v3148
      %v3150 = vpop.f32.mrb[0].mxu0
      %3151 = vdwg.mxu0
      %v3153 = vsel %vm499, %v3069, 0
      %3155 = vmatprep.subr.mxu0 0.0
      %3156 = vmatpush1.msra.mxu0 %v3070
      %3157 = vmatprep.subr.mxu0 0.0
      %3158 = vmatpush1.msra.mxu0 %v3071
      %3159 = vmatprep.subr.mxu0 0.0
      %3160 = vmatpush1.msra.mxu0 %v3072
      %3161 = vmatprep.subr.mxu0 0.0
      %3162 = vmatpush1.msra.mxu0 %v3073
      %3163 = vmatprep.subr.mxu0 0.0
      %3164 = vmatpush1.msra.mxu0 0.0
      %3165 = vmatprep.subr.mxu0 0.0
      %3166 = vmatpush1.msra.mxu0 0.0
      %3167 = vmatprep.subr.mxu0 0.0
      %3168 = vmatpush1.msra.mxu0 0.0
      %3169 = vmatprep.subr.mxu0 0.0
      %3170 = vmatpush1.msra.mxu0 0.0
      %3171 = vmatprep.subr.mxu0 0.0
      %3172 = vmatpush1.msra.mxu0 0.0
      %3173 = vmatprep.subr.mxu0 0.0
      %3174 = vmatpush1.msra.mxu0 0.0
      %3175 = vmatprep.subr.mxu0 0.0
      %3176 = vmatpush1.msra.mxu0 0.0
      %3177 = vmatprep.subr.mxu0 0.0
      %3178 = vmatpush1.msra.mxu0 0.0
      %3179 = vmatprep.subr.mxu0 0.0
      %3180 = vmatpush1.msra.mxu0 0.0
      %3181 = vmatprep.subr.mxu0 0.0
      %3182 = vmatpush1.msra.mxu0 0.0
      %3183 = vmatprep.subr.mxu0 0.0
      %3184 = vmatpush1.msra.mxu0 0.0
      %3185 = vmatprep.subr.mxu0 0.0
      %3186 = vmatpush1.msra.mxu0 0.0
      %3187 = vmatprep.subr.mxu0 0.0
      %3188 = vmatpush1.msra.mxu0 0.0
      %3189 = vmatprep.subr.mxu0 0.0
      %3190 = vmatpush1.msra.mxu0 0.0
      %3191 = vmatprep.subr.mxu0 0.0
      %3192 = vmatpush1.msra.mxu0 0.0
      %3193 = vmatprep.subr.mxu0 0.0
      %3194 = vmatpush1.msra.mxu0 0.0
      %3195 = vmatprep.subr.mxu0 0.0
      %3196 = vmatpush1.msra.mxu0 0.0
      %3197 = vmatprep.subr.mxu0 0.0
      %3198 = vmatpush1.msra.mxu0 0.0
      %3199 = vmatprep.subr.mxu0 0.0
      %3200 = vmatpush1.msra.mxu0 0.0
      %3201 = vmatprep.subr.mxu0 0.0
      %3202 = vmatpush1.msra.mxu0 0.0
      %3203 = vmatprep.subr.mxu0 0.0
      %3204 = vmatpush1.msra.mxu0 0.0
      %3205 = vmatprep.subr.mxu0 0.0
      %3206 = vmatpush1.msra.mxu0 0.0
      %3207 = vmatprep.subr.mxu0 0.0
      %3208 = vmatpush1.msra.mxu0 0.0
      %3209 = vmatprep.subr.mxu0 0.0
      %3210 = vmatpush1.msra.mxu0 0.0
      %3211 = vmatprep.subr.mxu0 0.0
      %3212 = vmatpush1.msra.mxu0 0.0
      %3213 = vmatprep.subr.mxu0 0.0
      %3214 = vmatpush1.msra.mxu0 0.0
      %3215 = vmatprep.subr.mxu0 0.0
      %3216 = vmatpush1.msra.mxu0 0.0
      %3217 = vmatprep.subr.mxu0 0.0
      %3218 = vmatpush1.msra.mxu0 0.0
      %3219 = vmatprep.mubr.f32.mxu0 0.0
      %3220 = vmatmul.mubr.f32.gmra.mrb[0].mxu0 %v3153
      %v3221 = vpop.f32.mrb[0].mxu0
      %v3222 = vadd.f32 %v3149, %v3221
      %v3223 = vpop.f32.mrb[0].mxu0
      %3224 = vdwg.mxu0
      %v3225 = vld [vmem:[%s2586] ss:$2 sm:$0x7]
      %v3226 = vld [vmem:[%s3 + $0x40] sm:$0xff]
      %v3227 = vld [vmem:[%s3 + $0x48] sm:$0xff]
      %v3228 = vld [vmem:[%s3 + $0x50] sm:$0xff]
      %v3229 = vld [vmem:[%s3 + $0x58] sm:$0xff]
      %v3231 = vsel %vm499, %v3225, 0
      %3233 = vmatprep.subr.mxu0 0.0
      %3234 = vmatpush1.msra.mxu0 %v3226
      %3235 = vmatprep.subr.mxu0 0.0
      %3236 = vmatpush1.msra.mxu0 %v3227
      %3237 = vmatprep.subr.mxu0 0.0
      %3238 = vmatpush1.msra.mxu0 %v3228
      %3239 = vmatprep.subr.mxu0 0.0
      %3240 = vmatpush1.msra.mxu0 %v3229
      %3241 = vmatprep.subr.mxu0 0.0
      %3242 = vmatpush1.msra.mxu0 0.0
      %3243 = vmatprep.subr.mxu0 0.0
      %3244 = vmatpush1.msra.mxu0 0.0
      %3245 = vmatprep.subr.mxu0 0.0
      %3246 = vmatpush1.msra.mxu0 0.0
      %3247 = vmatprep.subr.mxu0 0.0
      %3248 = vmatpush1.msra.mxu0 0.0
      %3249 = vmatprep.subr.mxu0 0.0
      %3250 = vmatpush1.msra.mxu0 0.0
      %3251 = vmatprep.subr.mxu0 0.0
      %3252 = vmatpush1.msra.mxu0 0.0
      %3253 = vmatprep.subr.mxu0 0.0
      %3254 = vmatpush1.msra.mxu0 0.0
      %3255 = vmatprep.subr.mxu0 0.0
      %3256 = vmatpush1.msra.mxu0 0.0
      %3257 = vmatprep.subr.mxu0 0.0
      %3258 = vmatpush1.msra.mxu0 0.0
      %3259 = vmatprep.subr.mxu0 0.0
      %3260 = vmatpush1.msra.mxu0 0.0
      %3261 = vmatprep.subr.mxu0 0.0
      %3262 = vmatpush1.msra.mxu0 0.0
      %3263 = vmatprep.subr.mxu0 0.0
      %3264 = vmatpush1.msra.mxu0 0.0
      %3265 = vmatprep.subr.mxu0 0.0
      %3266 = vmatpush1.msra.mxu0 0.0
      %3267 = vmatprep.subr.mxu0 0.0
      %3268 = vmatpush1.msra.mxu0 0.0
      %3269 = vmatprep.subr.mxu0 0.0
      %3270 = vmatpush1.msra.mxu0 0.0
      %3271 = vmatprep.subr.mxu0 0.0
      %3272 = vmatpush1.msra.mxu0 0.0
      %3273 = vmatprep.subr.mxu0 0.0
      %3274 = vmatpush1.msra.mxu0 0.0
      %3275 = vmatprep.subr.mxu0 0.0
      %3276 = vmatpush1.msra.mxu0 0.0
      %3277 = vmatprep.subr.mxu0 0.0
      %3278 = vmatpush1.msra.mxu0 0.0
      %3279 = vmatprep.subr.mxu0 0.0
      %3280 = vmatpush1.msra.mxu0 0.0
      %3281 = vmatprep.subr.mxu0 0.0
      %3282 = vmatpush1.msra.mxu0 0.0
      %3283 = vmatprep.subr.mxu0 0.0
      %3284 = vmatpush1.msra.mxu0 0.0
      %3285 = vmatprep.subr.mxu0 0.0
      %3286 = vmatpush1.msra.mxu0 0.0
      %3287 = vmatprep.subr.mxu0 0.0
      %3288 = vmatpush1.msra.mxu0 0.0
      %3289 = vmatprep.subr.mxu0 0.0
      %3290 = vmatpush1.msra.mxu0 0.0
      %3291 = vmatprep.subr.mxu0 0.0
      %3292 = vmatpush1.msra.mxu0 0.0
      %3293 = vmatprep.subr.mxu0 0.0
      %3294 = vmatpush1.msra.mxu0 0.0
      %3295 = vmatprep.subr.mxu0 0.0
      %3296 = vmatpush1.msra.mxu0 0.0
      %3297 = vmatprep.mubr.f32.mxu0 0.0
      %3298 = vmatmul.mubr.f32.gmra.mrb[0].mxu0 %v3231
      %v3299 = vpop.f32.mrb[0].mxu0
      %v3300 = vadd.f32 0.0, %v3299
      %v3301 = vpop.f32.mrb[0].mxu0
      %3302 = vdwg.mxu0
      %v3303 = vadd.f32 %v3222, %v3300
      %v3304 = vld [vmem:[%s2666] ss:$2 sm:$0x7]
      %v3305 = vld [vmem:[%s3 + $0x60] sm:$0xff]
      %v3306 = vld [vmem:[%s3 + $0x68] sm:$0xff]
      %v3307 = vld [vmem:[%s3 + $0x70] sm:$0xff]
      %v3308 = vld [vmem:[%s3 + $0x78] sm:$0xff]
      %v3310 = vsel %vm499, %v3304, 0
      %3312 = vmatprep.subr.mxu0 0.0
      %3313 = vmatpush1.msra.mxu0 %v3305
      %3314 = vmatprep.subr.mxu0 0.0
      %3315 = vmatpush1.msra.mxu0 %v3306
      %3316 = vmatprep.subr.mxu0 0.0
      %3317 = vmatpush1.msra.mxu0 %v3307
      %3318 = vmatprep.subr.mxu0 0.0
      %3319 = vmatpush1.msra.mxu0 %v3308
      %3320 = vmatprep.subr.mxu0 0.0
      %3321 = vmatpush1.msra.mxu0 0.0
      %3322 = vmatprep.subr.mxu0 0.0
      %3323 = vmatpush1.msra.mxu0 0.0
      %3324 = vmatprep.subr.mxu0 0.0
      %3325 = vmatpush1.msra.mxu0 0.0
      %3326 = vmatprep.subr.mxu0 0.0
      %3327 = vmatpush1.msra.mxu0 0.0
      %3328 = vmatprep.subr.mxu0 0.0
      %3329 = vmatpush1.msra.mxu0 0.0
      %3330 = vmatprep.subr.mxu0 0.0
      %3331 = vmatpush1.msra.mxu0 0.0
      %3332 = vmatprep.subr.mxu0 0.0
      %3333 = vmatpush1.msra.mxu0 0.0
      %3334 = vmatprep.subr.mxu0 0.0
      %3335 = vmatpush1.msra.mxu0 0.0
      %3336 = vmatprep.subr.mxu0 0.0
      %3337 = vmatpush1.msra.mxu0 0.0
      %3338 = vmatprep.subr.mxu0 0.0
      %3339 = vmatpush1.msra.mxu0 0.0
      %3340 = vmatprep.subr.mxu0 0.0
      %3341 = vmatpush1.msra.mxu0 0.0
      %3342 = vmatprep.subr.mxu0 0.0
      %3343 = vmatpush1.msra.mxu0 0.0
      %3344 = vmatprep.subr.mxu0 0.0
      %3345 = vmatpush1.msra.mxu0 0.0
      %3346 = vmatprep.subr.mxu0 0.0
      %3347 = vmatpush1.msra.mxu0 0.0
      %3348 = vmatprep.subr.mxu0 0.0
      %3349 = vmatpush1.msra.mxu0 0.0
      %3350 = vmatprep.subr.mxu0 0.0
      %3351 = vmatpush1.msra.mxu0 0.0
      %3352 = vmatprep.subr.mxu0 0.0
      %3353 = vmatpush1.msra.mxu0 0.0
      %3354 = vmatprep.subr.mxu0 0.0
      %3355 = vmatpush1.msra.mxu0 0.0
      %3356 = vmatprep.subr.mxu0 0.0
      %3357 = vmatpush1.msra.mxu0 0.0
      %3358 = vmatprep.subr.mxu0 0.0
      %3359 = vmatpush1.msra.mxu0 0.0
      %3360 = vmatprep.subr.mxu0 0.0
      %3361 = vmatpush1.msra.mxu0 0.0
      %3362 = vmatprep.subr.mxu0 0.0
      %3363 = vmatpush1.msra.mxu0 0.0
      %3364 = vmatprep.subr.mxu0 0.0
      %3365 = vmatpush1.msra.mxu0 0.0
      %3366 = vmatprep.subr.mxu0 0.0
      %3367 = vmatpush1.msra.mxu0 0.0
      %3368 = vmatprep.subr.mxu0 0.0
      %3369 = vmatpush1.msra.mxu0 0.0
      %3370 = vmatprep.subr.mxu0 0.0
      %3371 = vmatpush1.msra.mxu0 0.0
      %3372 = vmatprep.subr.mxu0 0.0
      %3373 = vmatpush1.msra.mxu0 0.0
      %3374 = vmatprep.subr.mxu0 0.0
      %3375 = vmatpush1.msra.mxu0 0.0
      %3376 = vmatprep.mubr.f32.mxu0 0.0
      %3377 = vmatmul.mubr.f32.gmra.mrb[0].mxu0 %v3310
      %v3378 = vpop.f32.mrb[0].mxu0
      %v3379 = vadd.f32 0.0, %v3378
      %v3380 = vpop.f32.mrb[0].mxu0
      %3381 = vdwg.mxu0
      %v3382 = vadd.f32 %v3303, %v3379
      %v3383 = vld [vmem:[%s2746] ss:$2 sm:$0x7]
      %v3384 = vld [vmem:[%s3 + $0x80] sm:$0xff]
      %v3385 = vld [vmem:[%s3 + $0x88] sm:$0xff]
      %v3386 = vld [vmem:[%s3 + $0x90] sm:$0xff]
      %v3387 = vld [vmem:[%s3 + $0x98] sm:$0xff]
      %v3389 = vsel %vm499, %v3383, 0
      %3391 = vmatprep.subr.mxu0 0.0
      %3392 = vmatpush1.msra.mxu0 %v3384
      %3393 = vmatprep.subr.mxu0 0.0
      %3394 = vmatpush1.msra.mxu0 %v3385
      %3395 = vmatprep.subr.mxu0 0.0
      %3396 = vmatpush1.msra.mxu0 %v3386
      %3397 = vmatprep.subr.mxu0 0.0
      %3398 = vmatpush1.msra.mxu0 %v3387
      %3399 = vmatprep.subr.mxu0 0.0
      %3400 = vmatpush1.msra.mxu0 0.0
      %3401 = vmatprep.subr.mxu0 0.0
      %3402 = vmatpush1.msra.mxu0 0.0
      %3403 = vmatprep.subr.mxu0 0.0
      %3404 = vmatpush1.msra.mxu0 0.0
      %3405 = vmatprep.subr.mxu0 0.0
      %3406 = vmatpush1.msra.mxu0 0.0
      %3407 = vmatprep.subr.mxu0 0.0
      %3408 = vmatpush1.msra.mxu0 0.0
      %3409 = vmatprep.subr.mxu0 0.0
      %3410 = vmatpush1.msra.mxu0 0.0
      %3411 = vmatprep.subr.mxu0 0.0
      %3412 = vmatpush1.msra.mxu0 0.0
      %3413 = vmatprep.subr.mxu0 0.0
      %3414 = vmatpush1.msra.mxu0 0.0
      %3415 = vmatprep.subr.mxu0 0.0
      %3416 = vmatpush1.msra.mxu0 0.0
      %3417 = vmatprep.subr.mxu0 0.0
      %3418 = vmatpush1.msra.mxu0 0.0
      %3419 = vmatprep.subr.mxu0 0.0
      %3420 = vmatpush1.msra.mxu0 0.0
      %3421 = vmatprep.subr.mxu0 0.0
      %3422 = vmatpush1.msra.mxu0 0.0
      %3423 = vmatprep.subr.mxu0 0.0
      %3424 = vmatpush1.msra.mxu0 0.0
      %3425 = vmatprep.subr.mxu0 0.0
      %3426 = vmatpush1.msra.mxu0 0.0
      %3427 = vmatprep.subr.mxu0 0.0
      %3428 = vmatpush1.msra.mxu0 0.0
      %3429 = vmatprep.subr.mxu0 0.0
      %3430 = vmatpush1.msra.mxu0 0.0
      %3431 = vmatprep.subr.mxu0 0.0
      %3432 = vmatpush1.msra.mxu0 0.0
      %3433 = vmatprep.subr.mxu0 0.0
      %3434 = vmatpush1.msra.mxu0 0.0
      %3435 = vmatprep.subr.mxu0 0.0
      %3436 = vmatpush1.msra.mxu0 0.0
      %3437 = vmatprep.subr.mxu0 0.0
      %3438 = vmatpush1.msra.mxu0 0.0
      %3439 = vmatprep.subr.mxu0 0.0
      %3440 = vmatpush1.msra.mxu0 0.0
      %3441 = vmatprep.subr.mxu0 0.0
      %3442 = vmatpush1.msra.mxu0 0.0
      %3443 = vmatprep.subr.mxu0 0.0
      %3444 = vmatpush1.msra.mxu0 0.0
      %3445 = vmatprep.subr.mxu0 0.0
      %3446 = vmatpush1.msra.mxu0 0.0
      %3447 = vmatprep.subr.mxu0 0.0
      %3448 = vmatpush1.msra.mxu0 0.0
      %3449 = vmatprep.subr.mxu0 0.0
      %3450 = vmatpush1.msra.mxu0 0.0
      %3451 = vmatprep.subr.mxu0 0.0
      %3452 = vmatpush1.msra.mxu0 0.0
      %3453 = vmatprep.subr.mxu0 0.0
      %3454 = vmatpush1.msra.mxu0 0.0
      %3455 = vmatprep.mubr.f32.mxu0 0.0
      %3456 = vmatmul.mubr.f32.gmra.mrb[0].mxu0 %v3389
      %v3457 = vpop.f32.mrb[0].mxu0
      %v3458 = vadd.f32 0.0, %v3457
      %v3459 = vpop.f32.mrb[0].mxu0
      %3460 = vdwg.mxu0
      %v3461 = vadd.f32 %v3382, %v3458
      %v3462 = vld [vmem:[%s2826] ss:$2 sm:$0x7]
      %v3463 = vld [vmem:[%s3 + $0xa0] sm:$0xff]
      %v3464 = vld [vmem:[%s3 + $0xa8] sm:$0xff]
      %v3465 = vld [vmem:[%s3 + $0xb0] sm:$0xff]
      %v3466 = vld [vmem:[%s3 + $0xb8] sm:$0xff]
      %v3468 = vsel %vm499, %v3462, 0
      %3470 = vmatprep.subr.mxu0 0.0
      %3471 = vmatpush1.msra.mxu0 %v3463
      %3472 = vmatprep.subr.mxu0 0.0
      %3473 = vmatpush1.msra.mxu0 %v3464
      %3474 = vmatprep.subr.mxu0 0.0
      %3475 = vmatpush1.msra.mxu0 %v3465
      %3476 = vmatprep.subr.mxu0 0.0
      %3477 = vmatpush1.msra.mxu0 %v3466
      %3478 = vmatprep.subr.mxu0 0.0
      %3479 = vmatpush1.msra.mxu0 0.0
      %3480 = vmatprep.subr.mxu0 0.0
      %3481 = vmatpush1.msra.mxu0 0.0
      %3482 = vmatprep.subr.mxu0 0.0
      %3483 = vmatpush1.msra.mxu0 0.0
      %3484 = vmatprep.subr.mxu0 0.0
      %3485 = vmatpush1.msra.mxu0 0.0
      %3486 = vmatprep.subr.mxu0 0.0
      %3487 = vmatpush1.msra.mxu0 0.0
      %3488 = vmatprep.subr.mxu0 0.0
      %3489 = vmatpush1.msra.mxu0 0.0
      %3490 = vmatprep.subr.mxu0 0.0
      %3491 = vmatpush1.msra.mxu0 0.0
      %3492 = vmatprep.subr.mxu0 0.0
      %3493 = vmatpush1.msra.mxu0 0.0
      %3494 = vmatprep.subr.mxu0 0.0
      %3495 = vmatpush1.msra.mxu0 0.0
      %3496 = vmatprep.subr.mxu0 0.0
      %3497 = vmatpush1.msra.mxu0 0.0
      %3498 = vmatprep.subr.mxu0 0.0
      %3499 = vmatpush1.msra.mxu0 0.0
      %3500 = vmatprep.subr.mxu0 0.0
      %3501 = vmatpush1.msra.mxu0 0.0
      %3502 = vmatprep.subr.mxu0 0.0
      %3503 = vmatpush1.msra.mxu0 0.0
      %3504 = vmatprep.subr.mxu0 0.0
      %3505 = vmatpush1.msra.mxu0 0.0
      %3506 = vmatprep.subr.mxu0 0.0
      %3507 = vmatpush1.msra.mxu0 0.0
      %3508 = vmatprep.subr.mxu0 0.0
      %3509 = vmatpush1.msra.mxu0 0.0
      %3510 = vmatprep.subr.mxu0 0.0
      %3511 = vmatpush1.msra.mxu0 0.0
      %3512 = vmatprep.subr.mxu0 0.0
      %3513 = vmatpush1.msra.mxu0 0.0
      %3514 = vmatprep.subr.mxu0 0.0
      %3515 = vmatpush1.msra.mxu0 0.0
      %3516 = vmatprep.subr.mxu0 0.0
      %3517 = vmatpush1.msra.mxu0 0.0
      %3518 = vmatprep.subr.mxu0 0.0
      %3519 = vmatpush1.msra.mxu0 0.0
      %3520 = vmatprep.subr.mxu0 0.0
      %3521 = vmatpush1.msra.mxu0 0.0
      %3522 = vmatprep.subr.mxu0 0.0
      %3523 = vmatpush1.msra.mxu0 0.0
      %3524 = vmatprep.subr.mxu0 0.0
      %3525 = vmatpush1.msra.mxu0 0.0
      %3526 = vmatprep.subr.mxu0 0.0
      %3527 = vmatpush1.msra.mxu0 0.0
      %3528 = vmatprep.subr.mxu0 0.0
      %3529 = vmatpush1.msra.mxu0 0.0
      %3530 = vmatprep.subr.mxu0 0.0
      %3531 = vmatpush1.msra.mxu0 0.0
      %3532 = vmatprep.subr.mxu0 0.0
      %3533 = vmatpush1.msra.mxu0 0.0
      %3534 = vmatprep.mubr.f32.mxu0 0.0
      %3535 = vmatmul.mubr.f32.gmra.mrb[0].mxu0 %v3468
      %v3536 = vpop.f32.mrb[0].mxu0
      %v3537 = vadd.f32 0.0, %v3536
      %v3538 = vpop.f32.mrb[0].mxu0
      %3539 = vdwg.mxu0
      %v3540 = vadd.f32 %v3461, %v3537
      %v3541 = vld [vmem:[%s2906] ss:$2 sm:$0x7]
      %v3542 = vld [vmem:[%s3 + $0xc0] sm:$0xff]
      %v3543 = vld [vmem:[%s3 + $0xc8] sm:$0xff]
      %v3544 = vld [vmem:[%s3 + $0xd0] sm:$0xff]
      %v3545 = vld [vmem:[%s3 + $0xd8] sm:$0xff]
      %v3547 = vsel %vm499, %v3541, 0
      %3549 = vmatprep.subr.mxu0 0.0
      %3550 = vmatpush1.msra.mxu0 %v3542
      %3551 = vmatprep.subr.mxu0 0.0
      %3552 = vmatpush1.msra.mxu0 %v3543
      %3553 = vmatprep.subr.mxu0 0.0
      %3554 = vmatpush1.msra.mxu0 %v3544
      %3555 = vmatprep.subr.mxu0 0.0
      %3556 = vmatpush1.msra.mxu0 %v3545
      %3557 = vmatprep.subr.mxu0 0.0
      %3558 = vmatpush1.msra.mxu0 0.0
      %3559 = vmatprep.subr.mxu0 0.0
      %3560 = vmatpush1.msra.mxu0 0.0
      %3561 = vmatprep.subr.mxu0 0.0
      %3562 = vmatpush1.msra.mxu0 0.0
      %3563 = vmatprep.subr.mxu0 0.0
      %3564 = vmatpush1.msra.mxu0 0.0
      %3565 = vmatprep.subr.mxu0 0.0
      %3566 = vmatpush1.msra.mxu0 0.0
      %3567 = vmatprep.subr.mxu0 0.0
      %3568 = vmatpush1.msra.mxu0 0.0
      %3569 = vmatprep.subr.mxu0 0.0
      %3570 = vmatpush1.msra.mxu0 0.0
      %3571 = vmatprep.subr.mxu0 0.0
      %3572 = vmatpush1.msra.mxu0 0.0
      %3573 = vmatprep.subr.mxu0 0.0
      %3574 = vmatpush1.msra.mxu0 0.0
      %3575 = vmatprep.subr.mxu0 0.0
      %3576 = vmatpush1.msra.mxu0 0.0
      %3577 = vmatprep.subr.mxu0 0.0
      %3578 = vmatpush1.msra.mxu0 0.0
      %3579 = vmatprep.subr.mxu0 0.0
      %3580 = vmatpush1.msra.mxu0 0.0
      %3581 = vmatprep.subr.mxu0 0.0
      %3582 = vmatpush1.msra.mxu0 0.0
      %3583 = vmatprep.subr.mxu0 0.0
      %3584 = vmatpush1.msra.mxu0 0.0
      %3585 = vmatprep.subr.mxu0 0.0
      %3586 = vmatpush1.msra.mxu0 0.0
      %3587 = vmatprep.subr.mxu0 0.0
      %3588 = vmatpush1.msra.mxu0 0.0
      %3589 = vmatprep.subr.mxu0 0.0
      %3590 = vmatpush1.msra.mxu0 0.0
      %3591 = vmatprep.subr.mxu0 0.0
      %3592 = vmatpush1.msra.mxu0 0.0
      %3593 = vmatprep.subr.mxu0 0.0
      %3594 = vmatpush1.msra.mxu0 0.0
      %3595 = vmatprep.subr.mxu0 0.0
      %3596 = vmatpush1.msra.mxu0 0.0
      %3597 = vmatprep.subr.mxu0 0.0
      %3598 = vmatpush1.msra.mxu0 0.0
      %3599 = vmatprep.subr.mxu0 0.0
      %3600 = vmatpush1.msra.mxu0 0.0
      %3601 = vmatprep.subr.mxu0 0.0
      %3602 = vmatpush1.msra.mxu0 0.0
      %3603 = vmatprep.subr.mxu0 0.0
      %3604 = vmatpush1.msra.mxu0 0.0
      %3605 = vmatprep.subr.mxu0 0.0
      %3606 = vmatpush1.msra.mxu0 0.0
      %3607 = vmatprep.subr.mxu0 0.0
      %3608 = vmatpush1.msra.mxu0 0.0
      %3609 = vmatprep.subr.mxu0 0.0
      %3610 = vmatpush1.msra.mxu0 0.0
      %3611 = vmatprep.subr.mxu0 0.0
      %3612 = vmatpush1.msra.mxu0 0.0
      %3613 = vmatprep.mubr.f32.mxu0 0.0
      %3614 = vmatmul.mubr.f32.gmra.mrb[0].mxu0 %v3547
      %v3615 = vpop.f32.mrb[0].mxu0
      %v3616 = vadd.f32 0.0, %v3615
      %v3617 = vpop.f32.mrb[0].mxu0
      %3618 = vdwg.mxu0
      %v3619 = vadd.f32 %v3540, %v3616
      %v3620 = vld [vmem:[%s2986] ss:$2 sm:$0x7]
      %v3621 = vld [vmem:[%s3 + $0xe0] sm:$0xff]
      %v3622 = vld [vmem:[%s3 + $0xe8] sm:$0xff]
      %v3623 = vld [vmem:[%s3 + $0xf0] sm:$0xff]
      %v3624 = vld [vmem:[%s3 + $0xf8] sm:$0xff]
      %v3626 = vsel %vm499, %v3620, 0
      %3628 = vmatprep.subr.mxu0 0.0
      %3629 = vmatpush1.msra.mxu0 %v3621
      %3630 = vmatprep.subr.mxu0 0.0
      %3631 = vmatpush1.msra.mxu0 %v3622
      %3632 = vmatprep.subr.mxu0 0.0
      %3633 = vmatpush1.msra.mxu0 %v3623
      %3634 = vmatprep.subr.mxu0 0.0
      %3635 = vmatpush1.msra.mxu0 %v3624
      %3636 = vmatprep.subr.mxu0 0.0
      %3637 = vmatpush1.msra.mxu0 0.0
      %3638 = vmatprep.subr.mxu0 0.0
      %3639 = vmatpush1.msra.mxu0 0.0
      %3640 = vmatprep.subr.mxu0 0.0
      %3641 = vmatpush1.msra.mxu0 0.0
      %3642 = vmatprep.subr.mxu0 0.0
      %3643 = vmatpush1.msra.mxu0 0.0
      %3644 = vmatprep.subr.mxu0 0.0
      %3645 = vmatpush1.msra.mxu0 0.0
      %3646 = vmatprep.subr.mxu0 0.0
      %3647 = vmatpush1.msra.mxu0 0.0
      %3648 = vmatprep.subr.mxu0 0.0
      %3649 = vmatpush1.msra.mxu0 0.0
      %3650 = vmatprep.subr.mxu0 0.0
      %3651 = vmatpush1.msra.mxu0 0.0
      %3652 = vmatprep.subr.mxu0 0.0
      %3653 = vmatpush1.msra.mxu0 0.0
      %3654 = vmatprep.subr.mxu0 0.0
      %3655 = vmatpush1.msra.mxu0 0.0
      %3656 = vmatprep.subr.mxu0 0.0
      %3657 = vmatpush1.msra.mxu0 0.0
      %3658 = vmatprep.subr.mxu0 0.0
      %3659 = vmatpush1.msra.mxu0 0.0
      %3660 = vmatprep.subr.mxu0 0.0
      %3661 = vmatpush1.msra.mxu0 0.0
      %3662 = vmatprep.subr.mxu0 0.0
      %3663 = vmatpush1.msra.mxu0 0.0
      %3664 = vmatprep.subr.mxu0 0.0
      %3665 = vmatpush1.msra.mxu0 0.0
      %3666 = vmatprep.subr.mxu0 0.0
      %3667 = vmatpush1.msra.mxu0 0.0
      %3668 = vmatprep.subr.mxu0 0.0
      %3669 = vmatpush1.msra.mxu0 0.0
      %3670 = vmatprep.subr.mxu0 0.0
      %3671 = vmatpush1.msra.mxu0 0.0
      %3672 = vmatprep.subr.mxu0 0.0
      %3673 = vmatpush1.msra.mxu0 0.0
      %3674 = vmatprep.subr.mxu0 0.0
      %3675 = vmatpush1.msra.mxu0 0.0
      %3676 = vmatprep.subr.mxu0 0.0
      %3677 = vmatpush1.msra.mxu0 0.0
      %3678 = vmatprep.subr.mxu0 0.0
      %3679 = vmatpush1.msra.mxu0 0.0
      %3680 = vmatprep.subr.mxu0 0.0
      %3681 = vmatpush1.msra.mxu0 0.0
      %3682 = vmatprep.subr.mxu0 0.0
      %3683 = vmatpush1.msra.mxu0 0.0
      %3684 = vmatprep.subr.mxu0 0.0
      %3685 = vmatpush1.msra.mxu0 0.0
      %3686 = vmatprep.subr.mxu0 0.0
      %3687 = vmatpush1.msra.mxu0 0.0
      %3688 = vmatprep.subr.mxu0 0.0
      %3689 = vmatpush1.msra.mxu0 0.0
      %3690 = vmatprep.subr.mxu0 0.0
      %3691 = vmatpush1.msra.mxu0 0.0
      %3692 = vmatprep.mubr.f32.mxu0 0.0
      %3693 = vmatmul.mubr.f32.gmra.mrb[0].mxu0 %v3626
      %v3694 = vpop.f32.mrb[0].mxu0
      %v3695 = vadd.f32 0.0, %v3694
      %v3696 = vpop.f32.mrb[0].mxu0
      %3697 = vdwg.mxu0
      %v3698 = vadd.f32 %v3619, %v3695
      %s3699 = scalar_lea.vmem [#allocation2], 48
      %v3700 = vld [vmem:[%s3699] ss:$2 sm:$0x7]
      %v3701 = vld [vmem:[%s3 + $0x100] sm:$0xff]
      %v3702 = vld [vmem:[%s3 + $0x108] sm:$0xff]
      %v3703 = vld [vmem:[%s3 + $0x110] sm:$0xff]
      %v3704 = vld [vmem:[%s3 + $0x118] sm:$0xff]
      %v3706 = vsel %vm499, %v3700, 0
      %3708 = vmatprep.subr.mxu0 0.0
      %3709 = vmatpush1.msra.mxu0 %v3701
      %3710 = vmatprep.subr.mxu0 0.0
      %3711 = vmatpush1.msra.mxu0 %v3702
      %3712 = vmatprep.subr.mxu0 0.0
      %3713 = vmatpush1.msra.mxu0 %v3703
      %3714 = vmatprep.subr.mxu0 0.0
      %3715 = vmatpush1.msra.mxu0 %v3704
      %3716 = vmatprep.subr.mxu0 0.0
      %3717 = vmatpush1.msra.mxu0 0.0
      %3718 = vmatprep.subr.mxu0 0.0
      %3719 = vmatpush1.msra.mxu0 0.0
      %3720 = vmatprep.subr.mxu0 0.0
      %3721 = vmatpush1.msra.mxu0 0.0
      %3722 = vmatprep.subr.mxu0 0.0
      %3723 = vmatpush1.msra.mxu0 0.0
      %3724 = vmatprep.subr.mxu0 0.0
      %3725 = vmatpush1.msra.mxu0 0.0
      %3726 = vmatprep.subr.mxu0 0.0
      %3727 = vmatpush1.msra.mxu0 0.0
      %3728 = vmatprep.subr.mxu0 0.0
      %3729 = vmatpush1.msra.mxu0 0.0
      %3730 = vmatprep.subr.mxu0 0.0
      %3731 = vmatpush1.msra.mxu0 0.0
      %3732 = vmatprep.subr.mxu0 0.0
      %3733 = vmatpush1.msra.mxu0 0.0
      %3734 = vmatprep.subr.mxu0 0.0
      %3735 = vmatpush1.msra.mxu0 0.0
      %3736 = vmatprep.subr.mxu0 0.0
      %3737 = vmatpush1.msra.mxu0 0.0
      %3738 = vmatprep.subr.mxu0 0.0
      %3739 = vmatpush1.msra.mxu0 0.0
      %3740 = vmatprep.subr.mxu0 0.0
      %3741 = vmatpush1.msra.mxu0 0.0
      %3742 = vmatprep.subr.mxu0 0.0
      %3743 = vmatpush1.msra.mxu0 0.0
      %3744 = vmatprep.subr.mxu0 0.0
      %3745 = vmatpush1.msra.mxu0 0.0
      %3746 = vmatprep.subr.mxu0 0.0
      %3747 = vmatpush1.msra.mxu0 0.0
      %3748 = vmatprep.subr.mxu0 0.0
      %3749 = vmatpush1.msra.mxu0 0.0
      %3750 = vmatprep.subr.mxu0 0.0
      %3751 = vmatpush1.msra.mxu0 0.0
      %3752 = vmatprep.subr.mxu0 0.0
      %3753 = vmatpush1.msra.mxu0 0.0
      %3754 = vmatprep.subr.mxu0 0.0
      %3755 = vmatpush1.msra.mxu0 0.0
      %3756 = vmatprep.subr.mxu0 0.0
      %3757 = vmatpush1.msra.mxu0 0.0
      %3758 = vmatprep.subr.mxu0 0.0
      %3759 = vmatpush1.msra.mxu0 0.0
      %3760 = vmatprep.subr.mxu0 0.0
      %3761 = vmatpush1.msra.mxu0 0.0
      %3762 = vmatprep.subr.mxu0 0.0
      %3763 = vmatpush1.msra.mxu0 0.0
      %3764 = vmatprep.subr.mxu0 0.0
      %3765 = vmatpush1.msra.mxu0 0.0
      %3766 = vmatprep.subr.mxu0 0.0
      %3767 = vmatpush1.msra.mxu0 0.0
      %3768 = vmatprep.subr.mxu0 0.0
      %3769 = vmatpush1.msra.mxu0 0.0
      %3770 = vmatprep.subr.mxu0 0.0
      %3771 = vmatpush1.msra.mxu0 0.0
      %3772 = vmatprep.mubr.f32.mxu0 0.0
      %3773 = vmatmul.mubr.f32.gmra.mrb[0].mxu0 %v3706
      %v3774 = vpop.f32.mrb[0].mxu0
      %v3775 = vadd.f32 0.0, %v3774
      %v3776 = vpop.f32.mrb[0].mxu0
      %3777 = vdwg.mxu0
      %v3778 = vadd.f32 %v3698, %v3775
      %s3779 = scalar_lea.vmem [#allocation2], 49
      %v3780 = vld [vmem:[%s3779] ss:$2 sm:$0x7]
      %v3781 = vld [vmem:[%s3 + $0x120] sm:$0xff]
      %v3782 = vld [vmem:[%s3 + $0x128] sm:$0xff]
      %v3783 = vld [vmem:[%s3 + $0x130] sm:$0xff]
      %v3784 = vld [vmem:[%s3 + $0x138] sm:$0xff]
      %v3786 = vsel %vm499, %v3780, 0
      %3788 = vmatprep.subr.mxu0 0.0
      %3789 = vmatpush1.msra.mxu0 %v3781
      %3790 = vmatprep.subr.mxu0 0.0
      %3791 = vmatpush1.msra.mxu0 %v3782
      %3792 = vmatprep.subr.mxu0 0.0
      %3793 = vmatpush1.msra.mxu0 %v3783
      %3794 = vmatprep.subr.mxu0 0.0
      %3795 = vmatpush1.msra.mxu0 %v3784
      %3796 = vmatprep.subr.mxu0 0.0
      %3797 = vmatpush1.msra.mxu0 0.0
      %3798 = vmatprep.subr.mxu0 0.0
      %3799 = vmatpush1.msra.mxu0 0.0
      %3800 = vmatprep.subr.mxu0 0.0
      %3801 = vmatpush1.msra.mxu0 0.0
      %3802 = vmatprep.subr.mxu0 0.0
      %3803 = vmatpush1.msra.mxu0 0.0
      %3804 = vmatprep.subr.mxu0 0.0
      %3805 = vmatpush1.msra.mxu0 0.0
      %3806 = vmatprep.subr.mxu0 0.0
      %3807 = vmatpush1.msra.mxu0 0.0
      %3808 = vmatprep.subr.mxu0 0.0
      %3809 = vmatpush1.msra.mxu0 0.0
      %3810 = vmatprep.subr.mxu0 0.0
      %3811 = vmatpush1.msra.mxu0 0.0
      %3812 = vmatprep.subr.mxu0 0.0
      %3813 = vmatpush1.msra.mxu0 0.0
      %3814 = vmatprep.subr.mxu0 0.0
      %3815 = vmatpush1.msra.mxu0 0.0
      %3816 = vmatprep.subr.mxu0 0.0
      %3817 = vmatpush1.msra.mxu0 0.0
      %3818 = vmatprep.subr.mxu0 0.0
      %3819 = vmatpush1.msra.mxu0 0.0
      %3820 = vmatprep.subr.mxu0 0.0
      %3821 = vmatpush1.msra.mxu0 0.0
      %3822 = vmatprep.subr.mxu0 0.0
      %3823 = vmatpush1.msra.mxu0 0.0
      %3824 = vmatprep.subr.mxu0 0.0
      %3825 = vmatpush1.msra.mxu0 0.0
      %3826 = vmatprep.subr.mxu0 0.0
      %3827 = vmatpush1.msra.mxu0 0.0
      %3828 = vmatprep.subr.mxu0 0.0
      %3829 = vmatpush1.msra.mxu0 0.0
      %3830 = vmatprep.subr.mxu0 0.0
      %3831 = vmatpush1.msra.mxu0 0.0
      %3832 = vmatprep.subr.mxu0 0.0
      %3833 = vmatpush1.msra.mxu0 0.0
      %3834 = vmatprep.subr.mxu0 0.0
      %3835 = vmatpush1.msra.mxu0 0.0
      %3836 = vmatprep.subr.mxu0 0.0
      %3837 = vmatpush1.msra.mxu0 0.0
      %3838 = vmatprep.subr.mxu0 0.0
      %3839 = vmatpush1.msra.mxu0 0.0
      %3840 = vmatprep.subr.mxu0 0.0
      %3841 = vmatpush1.msra.mxu0 0.0
      %3842 = vmatprep.subr.mxu0 0.0
      %3843 = vmatpush1.msra.mxu0 0.0
      %3844 = vmatprep.subr.mxu0 0.0
      %3845 = vmatpush1.msra.mxu0 0.0
      %3846 = vmatprep.subr.mxu0 0.0
      %3847 = vmatpush1.msra.mxu0 0.0
      %3848 = vmatprep.subr.mxu0 0.0
      %3849 = vmatpush1.msra.mxu0 0.0
      %3850 = vmatprep.subr.mxu0 0.0
      %3851 = vmatpush1.msra.mxu0 0.0
      %3852 = vmatprep.mubr.f32.mxu0 0.0
      %3853 = vmatmul.mubr.f32.gmra.mrb[0].mxu0 %v3786
      %v3854 = vpop.f32.mrb[0].mxu0
      %v3855 = vadd.f32 0.0, %v3854
      %v3856 = vpop.f32.mrb[0].mxu0
      %3857 = vdwg.mxu0
      %v3858 = vadd.f32 %v3778, %v3855
      %s3859 = scalar_lea.vmem [#allocation2], 50
      %v3860 = vld [vmem:[%s3859] ss:$2 sm:$0x7]
      %v3861 = vld [vmem:[%s3 + $0x140] sm:$0xff]
      %v3862 = vld [vmem:[%s3 + $0x148] sm:$0xff]
      %v3863 = vld [vmem:[%s3 + $0x150] sm:$0xff]
      %v3864 = vld [vmem:[%s3 + $0x158] sm:$0xff]
      %v3866 = vsel %vm499, %v3860, 0
      %3868 = vmatprep.subr.mxu0 0.0
      %3869 = vmatpush1.msra.mxu0 %v3861
      %3870 = vmatprep.subr.mxu0 0.0
      %3871 = vmatpush1.msra.mxu0 %v3862
      %3872 = vmatprep.subr.mxu0 0.0
      %3873 = vmatpush1.msra.mxu0 %v3863
      %3874 = vmatprep.subr.mxu0 0.0
      %3875 = vmatpush1.msra.mxu0 %v3864
      %3876 = vmatprep.subr.mxu0 0.0
      %3877 = vmatpush1.msra.mxu0 0.0
      %3878 = vmatprep.subr.mxu0 0.0
      %3879 = vmatpush1.msra.mxu0 0.0
      %3880 = vmatprep.subr.mxu0 0.0
      %3881 = vmatpush1.msra.mxu0 0.0
      %3882 = vmatprep.subr.mxu0 0.0
      %3883 = vmatpush1.msra.mxu0 0.0
      %3884 = vmatprep.subr.mxu0 0.0
      %3885 = vmatpush1.msra.mxu0 0.0
      %3886 = vmatprep.subr.mxu0 0.0
      %3887 = vmatpush1.msra.mxu0 0.0
      %3888 = vmatprep.subr.mxu0 0.0
      %3889 = vmatpush1.msra.mxu0 0.0
      %3890 = vmatprep.subr.mxu0 0.0
      %3891 = vmatpush1.msra.mxu0 0.0
      %3892 = vmatprep.subr.mxu0 0.0
      %3893 = vmatpush1.msra.mxu0 0.0
      %3894 = vmatprep.subr.mxu0 0.0
      %3895 = vmatpush1.msra.mxu0 0.0
      %3896 = vmatprep.subr.mxu0 0.0
      %3897 = vmatpush1.msra.mxu0 0.0
      %3898 = vmatprep.subr.mxu0 0.0
      %3899 = vmatpush1.msra.mxu0 0.0
      %3900 = vmatprep.subr.mxu0 0.0
      %3901 = vmatpush1.msra.mxu0 0.0
      %3902 = vmatprep.subr.mxu0 0.0
      %3903 = vmatpush1.msra.mxu0 0.0
      %3904 = vmatprep.subr.mxu0 0.0
      %3905 = vmatpush1.msra.mxu0 0.0
      %3906 = vmatprep.subr.mxu0 0.0
      %3907 = vmatpush1.msra.mxu0 0.0
      %3908 = vmatprep.subr.mxu0 0.0
      %3909 = vmatpush1.msra.mxu0 0.0
      %3910 = vmatprep.subr.mxu0 0.0
      %3911 = vmatpush1.msra.mxu0 0.0
      %3912 = vmatprep.subr.mxu0 0.0
      %3913 = vmatpush1.msra.mxu0 0.0
      %3914 = vmatprep.subr.mxu0 0.0
      %3915 = vmatpush1.msra.mxu0 0.0
      %3916 = vmatprep.subr.mxu0 0.0
      %3917 = vmatpush1.msra.mxu0 0.0
      %3918 = vmatprep.subr.mxu0 0.0
      %3919 = vmatpush1.msra.mxu0 0.0
      %3920 = vmatprep.subr.mxu0 0.0
      %3921 = vmatpush1.msra.mxu0 0.0
      %3922 = vmatprep.subr.mxu0 0.0
      %3923 = vmatpush1.msra.mxu0 0.0
      %3924 = vmatprep.subr.mxu0 0.0
      %3925 = vmatpush1.msra.mxu0 0.0
      %3926 = vmatprep.subr.mxu0 0.0
      %3927 = vmatpush1.msra.mxu0 0.0
      %3928 = vmatprep.subr.mxu0 0.0
      %3929 = vmatpush1.msra.mxu0 0.0
      %3930 = vmatprep.subr.mxu0 0.0
      %3931 = vmatpush1.msra.mxu0 0.0
      %3932 = vmatprep.mubr.f32.mxu0 0.0
      %3933 = vmatmul.mubr.f32.gmra.mrb[0].mxu0 %v3866
      %v3934 = vpop.f32.mrb[0].mxu0
      %v3935 = vadd.f32 0.0, %v3934
      %v3936 = vpop.f32.mrb[0].mxu0
      %3937 = vdwg.mxu0
      %v3938 = vadd.f32 %v3858, %v3935
      %s3939 = scalar_lea.vmem [#allocation2], 51
      %v3940 = vld [vmem:[%s3939] ss:$2 sm:$0x7]
      %v3941 = vld [vmem:[%s3 + $0x160] sm:$0xff]
      %v3942 = vld [vmem:[%s3 + $0x168] sm:$0xff]
      %v3943 = vld [vmem:[%s3 + $0x170] sm:$0xff]
      %v3944 = vld [vmem:[%s3 + $0x178] sm:$0xff]
      %v3946 = vsel %vm499, %v3940, 0
      %3948 = vmatprep.subr.mxu0 0.0
      %3949 = vmatpush1.msra.mxu0 %v3941
      %3950 = vmatprep.subr.mxu0 0.0
      %3951 = vmatpush1.msra.mxu0 %v3942
      %3952 = vmatprep.subr.mxu0 0.0
      %3953 = vmatpush1.msra.mxu0 %v3943
      %3954 = vmatprep.subr.mxu0 0.0
      %3955 = vmatpush1.msra.mxu0 %v3944
      %3956 = vmatprep.subr.mxu0 0.0
      %3957 = vmatpush1.msra.mxu0 0.0
      %3958 = vmatprep.subr.mxu0 0.0
      %3959 = vmatpush1.msra.mxu0 0.0
      %3960 = vmatprep.subr.mxu0 0.0
      %3961 = vmatpush1.msra.mxu0 0.0
      %3962 = vmatprep.subr.mxu0 0.0
      %3963 = vmatpush1.msra.mxu0 0.0
      %3964 = vmatprep.subr.mxu0 0.0
      %3965 = vmatpush1.msra.mxu0 0.0
      %3966 = vmatprep.subr.mxu0 0.0
      %3967 = vmatpush1.msra.mxu0 0.0
      %3968 = vmatprep.subr.mxu0 0.0
      %3969 = vmatpush1.msra.mxu0 0.0
      %3970 = vmatprep.subr.mxu0 0.0
      %3971 = vmatpush1.msra.mxu0 0.0
      %3972 = vmatprep.subr.mxu0 0.0
      %3973 = vmatpush1.msra.mxu0 0.0
      %3974 = vmatprep.subr.mxu0 0.0
      %3975 = vmatpush1.msra.mxu0 0.0
      %3976 = vmatprep.subr.mxu0 0.0
      %3977 = vmatpush1.msra.mxu0 0.0
      %3978 = vmatprep.subr.mxu0 0.0
      %3979 = vmatpush1.msra.mxu0 0.0
      %3980 = vmatprep.subr.mxu0 0.0
      %3981 = vmatpush1.msra.mxu0 0.0
      %3982 = vmatprep.subr.mxu0 0.0
      %3983 = vmatpush1.msra.mxu0 0.0
      %3984 = vmatprep.subr.mxu0 0.0
      %3985 = vmatpush1.msra.mxu0 0.0
      %3986 = vmatprep.subr.mxu0 0.0
      %3987 = vmatpush1.msra.mxu0 0.0
      %3988 = vmatprep.subr.mxu0 0.0
      %3989 = vmatpush1.msra.mxu0 0.0
      %3990 = vmatprep.subr.mxu0 0.0
      %3991 = vmatpush1.msra.mxu0 0.0
      %3992 = vmatprep.subr.mxu0 0.0
      %3993 = vmatpush1.msra.mxu0 0.0
      %3994 = vmatprep.subr.mxu0 0.0
      %3995 = vmatpush1.msra.mxu0 0.0
      %3996 = vmatprep.subr.mxu0 0.0
      %3997 = vmatpush1.msra.mxu0 0.0
      %3998 = vmatprep.subr.mxu0 0.0
      %3999 = vmatpush1.msra.mxu0 0.0
      %4000 = vmatprep.subr.mxu0 0.0
      %4001 = vmatpush1.msra.mxu0 0.0
      %4002 = vmatprep.subr.mxu0 0.0
      %4003 = vmatpush1.msra.mxu0 0.0
      %4004 = vmatprep.subr.mxu0 0.0
      %4005 = vmatpush1.msra.mxu0 0.0
      %4006 = vmatprep.subr.mxu0 0.0
      %4007 = vmatpush1.msra.mxu0 0.0
      %4008 = vmatprep.subr.mxu0 0.0
      %4009 = vmatpush1.msra.mxu0 0.0
      %4010 = vmatprep.subr.mxu0 0.0
      %4011 = vmatpush1.msra.mxu0 0.0
      %4012 = vmatprep.mubr.f32.mxu0 0.0
      %4013 = vmatmul.mubr.f32.gmra.mrb[0].mxu0 %v3946
      %v4014 = vpop.f32.mrb[0].mxu0
      %v4015 = vadd.f32 0.0, %v4014
      %v4016 = vpop.f32.mrb[0].mxu0
      %4017 = vdwg.mxu0
      %v4018 = vadd.f32 %v3938, %v4015
      %s4019 = scalar_lea.vmem [#allocation2], 56
      %v4020 = vld [vmem:[%s4019] ss:$2 sm:$0x7]
      %v4021 = vld [vmem:[%s3 + $0x180] sm:$0xff]
      %v4022 = vld [vmem:[%s3 + $0x188] sm:$0xff]
      %v4023 = vld [vmem:[%s3 + $0x190] sm:$0xff]
      %v4024 = vld [vmem:[%s3 + $0x198] sm:$0xff]
      %v4026 = vsel %vm499, %v4020, 0
      %4028 = vmatprep.subr.mxu0 0.0
      %4029 = vmatpush1.msra.mxu0 %v4021
      %4030 = vmatprep.subr.mxu0 0.0
      %4031 = vmatpush1.msra.mxu0 %v4022
      %4032 = vmatprep.subr.mxu0 0.0
      %4033 = vmatpush1.msra.mxu0 %v4023
      %4034 = vmatprep.subr.mxu0 0.0
      %4035 = vmatpush1.msra.mxu0 %v4024
      %4036 = vmatprep.subr.mxu0 0.0
      %4037 = vmatpush1.msra.mxu0 0.0
      %4038 = vmatprep.subr.mxu0 0.0
      %4039 = vmatpush1.msra.mxu0 0.0
      %4040 = vmatprep.subr.mxu0 0.0
      %4041 = vmatpush1.msra.mxu0 0.0
      %4042 = vmatprep.subr.mxu0 0.0
      %4043 = vmatpush1.msra.mxu0 0.0
      %4044 = vmatprep.subr.mxu0 0.0
      %4045 = vmatpush1.msra.mxu0 0.0
      %4046 = vmatprep.subr.mxu0 0.0
      %4047 = vmatpush1.msra.mxu0 0.0
      %4048 = vmatprep.subr.mxu0 0.0
      %4049 = vmatpush1.msra.mxu0 0.0
      %4050 = vmatprep.subr.mxu0 0.0
      %4051 = vmatpush1.msra.mxu0 0.0
      %4052 = vmatprep.subr.mxu0 0.0
      %4053 = vmatpush1.msra.mxu0 0.0
      %4054 = vmatprep.subr.mxu0 0.0
      %4055 = vmatpush1.msra.mxu0 0.0
      %4056 = vmatprep.subr.mxu0 0.0
      %4057 = vmatpush1.msra.mxu0 0.0
      %4058 = vmatprep.subr.mxu0 0.0
      %4059 = vmatpush1.msra.mxu0 0.0
      %4060 = vmatprep.subr.mxu0 0.0
      %4061 = vmatpush1.msra.mxu0 0.0
      %4062 = vmatprep.subr.mxu0 0.0
      %4063 = vmatpush1.msra.mxu0 0.0
      %4064 = vmatprep.subr.mxu0 0.0
      %4065 = vmatpush1.msra.mxu0 0.0
      %4066 = vmatprep.subr.mxu0 0.0
      %4067 = vmatpush1.msra.mxu0 0.0
      %4068 = vmatprep.subr.mxu0 0.0
      %4069 = vmatpush1.msra.mxu0 0.0
      %4070 = vmatprep.subr.mxu0 0.0
      %4071 = vmatpush1.msra.mxu0 0.0
      %4072 = vmatprep.subr.mxu0 0.0
      %4073 = vmatpush1.msra.mxu0 0.0
      %4074 = vmatprep.subr.mxu0 0.0
      %4075 = vmatpush1.msra.mxu0 0.0
      %4076 = vmatprep.subr.mxu0 0.0
      %4077 = vmatpush1.msra.mxu0 0.0
      %4078 = vmatprep.subr.mxu0 0.0
      %4079 = vmatpush1.msra.mxu0 0.0
      %4080 = vmatprep.subr.mxu0 0.0
      %4081 = vmatpush1.msra.mxu0 0.0
      %4082 = vmatprep.subr.mxu0 0.0
      %4083 = vmatpush1.msra.mxu0 0.0
      %4084 = vmatprep.subr.mxu0 0.0
      %4085 = vmatpush1.msra.mxu0 0.0
      %4086 = vmatprep.subr.mxu0 0.0
      %4087 = vmatpush1.msra.mxu0 0.0
      %4088 = vmatprep.subr.mxu0 0.0
      %4089 = vmatpush1.msra.mxu0 0.0
      %4090 = vmatprep.subr.mxu0 0.0
      %4091 = vmatpush1.msra.mxu0 0.0
      %4092 = vmatprep.mubr.f32.mxu0 0.0
      %4093 = vmatmul.mubr.f32.gmra.mrb[0].mxu0 %v4026
      %v4094 = vpop.f32.mrb[0].mxu0
      %v4095 = vadd.f32 0.0, %v4094
      %v4096 = vpop.f32.mrb[0].mxu0
      %4097 = vdwg.mxu0
      %v4098 = vadd.f32 %v4018, %v4095
      %s4099 = scalar_lea.vmem [#allocation2], 57
      %v4100 = vld [vmem:[%s4099] ss:$2 sm:$0x7]
      %v4101 = vld [vmem:[%s3 + $0x1a0] sm:$0xff]
      %v4102 = vld [vmem:[%s3 + $0x1a8] sm:$0xff]
      %v4103 = vld [vmem:[%s3 + $0x1b0] sm:$0xff]
      %v4104 = vld [vmem:[%s3 + $0x1b8] sm:$0xff]
      %v4106 = vsel %vm499, %v4100, 0
      %4108 = vmatprep.subr.mxu0 0.0
      %4109 = vmatpush1.msra.mxu0 %v4101
      %4110 = vmatprep.subr.mxu0 0.0
      %4111 = vmatpush1.msra.mxu0 %v4102
      %4112 = vmatprep.subr.mxu0 0.0
      %4113 = vmatpush1.msra.mxu0 %v4103
      %4114 = vmatprep.subr.mxu0 0.0
      %4115 = vmatpush1.msra.mxu0 %v4104
      %4116 = vmatprep.subr.mxu0 0.0
      %4117 = vmatpush1.msra.mxu0 0.0
      %4118 = vmatprep.subr.mxu0 0.0
      %4119 = vmatpush1.msra.mxu0 0.0
      %4120 = vmatprep.subr.mxu0 0.0
      %4121 = vmatpush1.msra.mxu0 0.0
      %4122 = vmatprep.subr.mxu0 0.0
      %4123 = vmatpush1.msra.mxu0 0.0
      %4124 = vmatprep.subr.mxu0 0.0
      %4125 = vmatpush1.msra.mxu0 0.0
      %4126 = vmatprep.subr.mxu0 0.0
      %4127 = vmatpush1.msra.mxu0 0.0
      %4128 = vmatprep.subr.mxu0 0.0
      %4129 = vmatpush1.msra.mxu0 0.0
      %4130 = vmatprep.subr.mxu0 0.0
      %4131 = vmatpush1.msra.mxu0 0.0
      %4132 = vmatprep.subr.mxu0 0.0
      %4133 = vmatpush1.msra.mxu0 0.0
      %4134 = vmatprep.subr.mxu0 0.0
      %4135 = vmatpush1.msra.mxu0 0.0
      %4136 = vmatprep.subr.mxu0 0.0
      %4137 = vmatpush1.msra.mxu0 0.0
      %4138 = vmatprep.subr.mxu0 0.0
      %4139 = vmatpush1.msra.mxu0 0.0
      %4140 = vmatprep.subr.mxu0 0.0
      %4141 = vmatpush1.msra.mxu0 0.0
      %4142 = vmatprep.subr.mxu0 0.0
      %4143 = vmatpush1.msra.mxu0 0.0
      %4144 = vmatprep.subr.mxu0 0.0
      %4145 = vmatpush1.msra.mxu0 0.0
      %4146 = vmatprep.subr.mxu0 0.0
      %4147 = vmatpush1.msra.mxu0 0.0
      %4148 = vmatprep.subr.mxu0 0.0
      %4149 = vmatpush1.msra.mxu0 0.0
      %4150 = vmatprep.subr.mxu0 0.0
      %4151 = vmatpush1.msra.mxu0 0.0
      %4152 = vmatprep.subr.mxu0 0.0
      %4153 = vmatpush1.msra.mxu0 0.0
      %4154 = vmatprep.subr.mxu0 0.0
      %4155 = vmatpush1.msra.mxu0 0.0
      %4156 = vmatprep.subr.mxu0 0.0
      %4157 = vmatpush1.msra.mxu0 0.0
      %4158 = vmatprep.subr.mxu0 0.0
      %4159 = vmatpush1.msra.mxu0 0.0
      %4160 = vmatprep.subr.mxu0 0.0
      %4161 = vmatpush1.msra.mxu0 0.0
      %4162 = vmatprep.subr.mxu0 0.0
      %4163 = vmatpush1.msra.mxu0 0.0
      %4164 = vmatprep.subr.mxu0 0.0
      %4165 = vmatpush1.msra.mxu0 0.0
      %4166 = vmatprep.subr.mxu0 0.0
      %4167 = vmatpush1.msra.mxu0 0.0
      %4168 = vmatprep.subr.mxu0 0.0
      %4169 = vmatpush1.msra.mxu0 0.0
      %4170 = vmatprep.subr.mxu0 0.0
      %4171 = vmatpush1.msra.mxu0 0.0
      %4172 = vmatprep.mubr.f32.mxu0 0.0
      %4173 = vmatmul.mubr.f32.gmra.mrb[0].mxu0 %v4106
      %v4174 = vpop.f32.mrb[0].mxu0
      %v4175 = vadd.f32 0.0, %v4174
      %v4176 = vpop.f32.mrb[0].mxu0
      %4177 = vdwg.mxu0
      %v4178 = vadd.f32 %v4098, %v4175
      %s4179 = scalar_lea.vmem [#allocation2], 58
      %v4180 = vld [vmem:[%s4179] ss:$2 sm:$0x7]
      %v4181 = vld [vmem:[%s3 + $0x1c0] sm:$0xff]
      %v4182 = vld [vmem:[%s3 + $0x1c8] sm:$0xff]
      %v4183 = vld [vmem:[%s3 + $0x1d0] sm:$0xff]
      %v4184 = vld [vmem:[%s3 + $0x1d8] sm:$0xff]
      %v4186 = vsel %vm499, %v4180, 0
      %4188 = vmatprep.subr.mxu0 0.0
      %4189 = vmatpush1.msra.mxu0 %v4181
      %4190 = vmatprep.subr.mxu0 0.0
      %4191 = vmatpush1.msra.mxu0 %v4182
      %4192 = vmatprep.subr.mxu0 0.0
      %4193 = vmatpush1.msra.mxu0 %v4183
      %4194 = vmatprep.subr.mxu0 0.0
      %4195 = vmatpush1.msra.mxu0 %v4184
      %4196 = vmatprep.subr.mxu0 0.0
      %4197 = vmatpush1.msra.mxu0 0.0
      %4198 = vmatprep.subr.mxu0 0.0
      %4199 = vmatpush1.msra.mxu0 0.0
      %4200 = vmatprep.subr.mxu0 0.0
      %4201 = vmatpush1.msra.mxu0 0.0
      %4202 = vmatprep.subr.mxu0 0.0
      %4203 = vmatpush1.msra.mxu0 0.0
      %4204 = vmatprep.subr.mxu0 0.0
      %4205 = vmatpush1.msra.mxu0 0.0
      %4206 = vmatprep.subr.mxu0 0.0
      %4207 = vmatpush1.msra.mxu0 0.0
      %4208 = vmatprep.subr.mxu0 0.0
      %4209 = vmatpush1.msra.mxu0 0.0
      %4210 = vmatprep.subr.mxu0 0.0
      %4211 = vmatpush1.msra.mxu0 0.0
      %4212 = vmatprep.subr.mxu0 0.0
      %4213 = vmatpush1.msra.mxu0 0.0
      %4214 = vmatprep.subr.mxu0 0.0
      %4215 = vmatpush1.msra.mxu0 0.0
      %4216 = vmatprep.subr.mxu0 0.0
      %4217 = vmatpush1.msra.mxu0 0.0
      %4218 = vmatprep.subr.mxu0 0.0
      %4219 = vmatpush1.msra.mxu0 0.0
      %4220 = vmatprep.subr.mxu0 0.0
      %4221 = vmatpush1.msra.mxu0 0.0
      %4222 = vmatprep.subr.mxu0 0.0
      %4223 = vmatpush1.msra.mxu0 0.0
      %4224 = vmatprep.subr.mxu0 0.0
      %4225 = vmatpush1.msra.mxu0 0.0
      %4226 = vmatprep.subr.mxu0 0.0
      %4227 = vmatpush1.msra.mxu0 0.0
      %4228 = vmatprep.subr.mxu0 0.0
      %4229 = vmatpush1.msra.mxu0 0.0
      %4230 = vmatprep.subr.mxu0 0.0
      %4231 = vmatpush1.msra.mxu0 0.0
      %4232 = vmatprep.subr.mxu0 0.0
      %4233 = vmatpush1.msra.mxu0 0.0
      %4234 = vmatprep.subr.mxu0 0.0
      %4235 = vmatpush1.msra.mxu0 0.0
      %4236 = vmatprep.subr.mxu0 0.0
      %4237 = vmatpush1.msra.mxu0 0.0
      %4238 = vmatprep.subr.mxu0 0.0
      %4239 = vmatpush1.msra.mxu0 0.0
      %4240 = vmatprep.subr.mxu0 0.0
      %4241 = vmatpush1.msra.mxu0 0.0
      %4242 = vmatprep.subr.mxu0 0.0
      %4243 = vmatpush1.msra.mxu0 0.0
      %4244 = vmatprep.subr.mxu0 0.0
      %4245 = vmatpush1.msra.mxu0 0.0
      %4246 = vmatprep.subr.mxu0 0.0
      %4247 = vmatpush1.msra.mxu0 0.0
      %4248 = vmatprep.subr.mxu0 0.0
      %4249 = vmatpush1.msra.mxu0 0.0
      %4250 = vmatprep.subr.mxu0 0.0
      %4251 = vmatpush1.msra.mxu0 0.0
      %4252 = vmatprep.mubr.f32.mxu0 0.0
      %4253 = vmatmul.mubr.f32.gmra.mrb[0].mxu0 %v4186
      %v4254 = vpop.f32.mrb[0].mxu0
      %v4255 = vadd.f32 0.0, %v4254
      %v4256 = vpop.f32.mrb[0].mxu0
      %4257 = vdwg.mxu0
      %v4258 = vadd.f32 %v4178, %v4255
      %s4259 = scalar_lea.vmem [#allocation2], 59
      %v4260 = vld [vmem:[%s4259] ss:$2 sm:$0x7]
      %v4261 = vld [vmem:[%s3 + $0x1e0] sm:$0xff]
      %v4262 = vld [vmem:[%s3 + $0x1e8] sm:$0xff]
      %v4263 = vld [vmem:[%s3 + $0x1f0] sm:$0xff]
      %v4264 = vld [vmem:[%s3 + $0x1f8] sm:$0xff]
      %v4266 = vsel %vm499, %v4260, 0
      %4268 = vmatprep.subr.mxu0 0.0
      %4269 = vmatpush1.msra.mxu0 %v4261
      %4270 = vmatprep.subr.mxu0 0.0
      %4271 = vmatpush1.msra.mxu0 %v4262
      %4272 = vmatprep.subr.mxu0 0.0
      %4273 = vmatpush1.msra.mxu0 %v4263
      %4274 = vmatprep.subr.mxu0 0.0
      %4275 = vmatpush1.msra.mxu0 %v4264
      %4276 = vmatprep.subr.mxu0 0.0
      %4277 = vmatpush1.msra.mxu0 0.0
      %4278 = vmatprep.subr.mxu0 0.0
      %4279 = vmatpush1.msra.mxu0 0.0
      %4280 = vmatprep.subr.mxu0 0.0
      %4281 = vmatpush1.msra.mxu0 0.0
      %4282 = vmatprep.subr.mxu0 0.0
      %4283 = vmatpush1.msra.mxu0 0.0
      %4284 = vmatprep.subr.mxu0 0.0
      %4285 = vmatpush1.msra.mxu0 0.0
      %4286 = vmatprep.subr.mxu0 0.0
      %4287 = vmatpush1.msra.mxu0 0.0
      %4288 = vmatprep.subr.mxu0 0.0
      %4289 = vmatpush1.msra.mxu0 0.0
      %4290 = vmatprep.subr.mxu0 0.0
      %4291 = vmatpush1.msra.mxu0 0.0
      %4292 = vmatprep.subr.mxu0 0.0
      %4293 = vmatpush1.msra.mxu0 0.0
      %4294 = vmatprep.subr.mxu0 0.0
      %4295 = vmatpush1.msra.mxu0 0.0
      %4296 = vmatprep.subr.mxu0 0.0
      %4297 = vmatpush1.msra.mxu0 0.0
      %4298 = vmatprep.subr.mxu0 0.0
      %4299 = vmatpush1.msra.mxu0 0.0
      %4300 = vmatprep.subr.mxu0 0.0
      %4301 = vmatpush1.msra.mxu0 0.0
      %4302 = vmatprep.subr.mxu0 0.0
      %4303 = vmatpush1.msra.mxu0 0.0
      %4304 = vmatprep.subr.mxu0 0.0
      %4305 = vmatpush1.msra.mxu0 0.0
      %4306 = vmatprep.subr.mxu0 0.0
      %4307 = vmatpush1.msra.mxu0 0.0
      %4308 = vmatprep.subr.mxu0 0.0
      %4309 = vmatpush1.msra.mxu0 0.0
      %4310 = vmatprep.subr.mxu0 0.0
      %4311 = vmatpush1.msra.mxu0 0.0
      %4312 = vmatprep.subr.mxu0 0.0
      %4313 = vmatpush1.msra.mxu0 0.0
      %4314 = vmatprep.subr.mxu0 0.0
      %4315 = vmatpush1.msra.mxu0 0.0
      %4316 = vmatprep.subr.mxu0 0.0
      %4317 = vmatpush1.msra.mxu0 0.0
      %4318 = vmatprep.subr.mxu0 0.0
      %4319 = vmatpush1.msra.mxu0 0.0
      %4320 = vmatprep.subr.mxu0 0.0
      %4321 = vmatpush1.msra.mxu0 0.0
      %4322 = vmatprep.subr.mxu0 0.0
      %4323 = vmatpush1.msra.mxu0 0.0
      %4324 = vmatprep.subr.mxu0 0.0
      %4325 = vmatpush1.msra.mxu0 0.0
      %4326 = vmatprep.subr.mxu0 0.0
      %4327 = vmatpush1.msra.mxu0 0.0
      %4328 = vmatprep.subr.mxu0 0.0
      %4329 = vmatpush1.msra.mxu0 0.0
      %4330 = vmatprep.subr.mxu0 0.0
      %4331 = vmatpush1.msra.mxu0 0.0
      %4332 = vmatprep.mubr.f32.mxu0 0.0
      %4333 = vmatmul.mubr.f32.gmra.mrb[0].mxu0 %v4266
      %v4334 = vpop.f32.mrb[0].mxu0
      %v4335 = vadd.f32 0.0, %v4334
      %v4336 = vpop.f32.mrb[0].mxu0
      %4337 = vdwg.mxu0
      %v4338 = vadd.f32 %v4258, %v4335
      %v4339 = vadd.f32 %v4338, %v1790
      %v4340 = vmax.f32 %v4339, 0.0
      %4341 = vst.msk [vmem:[#allocation3 + $0x6] sm:$0x7] %vm1794, %v4340
      %v4342 = vld [vmem:[%s6] sm:$0x1]
      %v4343 = vld [vmem:[%s8] sm:$0xf]
      %v4344 = vld [vmem:[#allocation3] sm:$0x1]
      %v4345 = vld [vmem:[%s5] sm:$0xff]
      %v4346 = vld [vmem:[%s5 + $0x8] sm:$0xff]
      %v4347 = vld [vmem:[%s5 + $0x10] sm:$0xff]
      %v4348 = vld [vmem:[%s5 + $0x18] sm:$0xff]
      %v4349 = vld [vmem:[%s5 + $0x20] sm:$0xff]
      %v4350 = vld [vmem:[%s5 + $0x28] sm:$0xff]
      %v4351 = vld [vmem:[%s5 + $0x30] sm:$0xff]
      %v4352 = vld [vmem:[%s5 + $0x38] sm:$0xff]
      %v4353 = vld [vmem:[#allocation3 + $0x1] sm:$0x1]
      %v4354 = vld [vmem:[%s5 + $0x40] sm:$0xff]
      %v4355 = vld [vmem:[%s5 + $0x48] sm:$0xff]
      %v4356 = vld [vmem:[%s5 + $0x50] sm:$0xff]
      %v4357 = vld [vmem:[%s5 + $0x58] sm:$0xff]
      %v4358 = vld [vmem:[%s5 + $0x60] sm:$0xff]
      %v4359 = vld [vmem:[%s5 + $0x68] sm:$0xff]
      %v4360 = vld [vmem:[%s5 + $0x70] sm:$0xff]
      %v4361 = vld [vmem:[%s5 + $0x78] sm:$0xff]
      %vm4362 = vcmask 523264
      %v4364 = vsel %vm4362, %v4353, 0
      %4366 = vmatprep.subr.mxu0 0.0
      %4367 = vmatpush1.msra.mxu0 %v4354
      %4368 = vmatprep.subr.mxu0 0.0
      %4369 = vmatpush1.msra.mxu0 %v4355
      %4370 = vmatprep.subr.mxu0 0.0
      %4371 = vmatpush1.msra.mxu0 %v4356
      %4372 = vmatprep.subr.mxu0 0.0
      %4373 = vmatpush1.msra.mxu0 %v4357
      %4374 = vmatprep.subr.mxu0 0.0
      %4375 = vmatpush1.msra.mxu0 %v4358
      %4376 = vmatprep.subr.mxu0 0.0
      %4377 = vmatpush1.msra.mxu0 %v4359
      %4378 = vmatprep.subr.mxu0 0.0
      %4379 = vmatpush1.msra.mxu0 %v4360
      %4380 = vmatprep.subr.mxu0 0.0
      %4381 = vmatpush1.msra.mxu0 %v4361
      %4382 = vmatprep.subr.mxu0 0.0
      %4383 = vmatpush1.msra.mxu0 0.0
      %4384 = vmatprep.subr.mxu0 0.0
      %4385 = vmatpush1.msra.mxu0 0.0
      %4386 = vmatprep.subr.mxu0 0.0
      %4387 = vmatpush1.msra.mxu0 0.0
      %4388 = vmatprep.subr.mxu0 0.0
      %4389 = vmatpush1.msra.mxu0 0.0
      %4390 = vmatprep.subr.mxu0 0.0
      %4391 = vmatpush1.msra.mxu0 0.0
      %4392 = vmatprep.subr.mxu0 0.0
      %4393 = vmatpush1.msra.mxu0 0.0
      %4394 = vmatprep.subr.mxu0 0.0
      %4395 = vmatpush1.msra.mxu0 0.0
      %4396 = vmatprep.subr.mxu0 0.0
      %4397 = vmatpush1.msra.mxu0 0.0
      %4398 = vmatprep.subr.mxu0 0.0
      %4399 = vmatpush1.msra.mxu0 0.0
      %4400 = vmatprep.subr.mxu0 0.0
      %4401 = vmatpush1.msra.mxu0 0.0
      %4402 = vmatprep.subr.mxu0 0.0
      %4403 = vmatpush1.msra.mxu0 0.0
      %4404 = vmatprep.subr.mxu0 0.0
      %4405 = vmatpush1.msra.mxu0 0.0
      %4406 = vmatprep.subr.mxu0 0.0
      %4407 = vmatpush1.msra.mxu0 0.0
      %4408 = vmatprep.subr.mxu0 0.0
      %4409 = vmatpush1.msra.mxu0 0.0
      %4410 = vmatprep.subr.mxu0 0.0
      %4411 = vmatpush1.msra.mxu0 0.0
      %4412 = vmatprep.subr.mxu0 0.0
      %4413 = vmatpush1.msra.mxu0 0.0
      %4414 = vmatprep.subr.mxu0 0.0
      %4415 = vmatpush1.msra.mxu0 0.0
      %4416 = vmatprep.subr.mxu0 0.0
      %4417 = vmatpush1.msra.mxu0 0.0
      %4418 = vmatprep.subr.mxu0 0.0
      %4419 = vmatpush1.msra.mxu0 0.0
      %4420 = vmatprep.subr.mxu0 0.0
      %4421 = vmatpush1.msra.mxu0 0.0
      %4422 = vmatprep.subr.mxu0 0.0
      %4423 = vmatpush1.msra.mxu0 0.0
      %4424 = vmatprep.subr.mxu0 0.0
      %4425 = vmatpush1.msra.mxu0 0.0
      %4426 = vmatprep.subr.mxu0 0.0
      %4427 = vmatpush1.msra.mxu0 0.0
      %4428 = vmatprep.subr.mxu0 0.0
      %4429 = vmatpush1.msra.mxu0 0.0
      %4430 = vmatprep.mubr.f32.mxu0 0.0
      %4431 = vmatmul.mubr.f32.gmra.mrb[0].mxu0 %v4364
      %v4432 = vpop.f32.mrb[0].mxu0
      %v4433 = vadd.f32 0.0, %v4432
      %v4434 = vpop.f32.mrb[0].mxu0
      %4435 = vdwg.mxu0
      %v4437 = vsel %vm4362, %v4344, 0
      %4439 = vmatprep.subr.mxu0 0.0
      %4440 = vmatpush1.msra.mxu0 %v4345
      %4441 = vmatprep.subr.mxu0 0.0
      %4442 = vmatpush1.msra.mxu0 %v4346
      %4443 = vmatprep.subr.mxu0 0.0
      %4444 = vmatpush1.msra.mxu0 %v4347
      %4445 = vmatprep.subr.mxu0 0.0
      %4446 = vmatpush1.msra.mxu0 %v4348
      %4447 = vmatprep.subr.mxu0 0.0
      %4448 = vmatpush1.msra.mxu0 %v4349
      %4449 = vmatprep.subr.mxu0 0.0
      %4450 = vmatpush1.msra.mxu0 %v4350
      %4451 = vmatprep.subr.mxu0 0.0
      %4452 = vmatpush1.msra.mxu0 %v4351
      %4453 = vmatprep.subr.mxu0 0.0
      %4454 = vmatpush1.msra.mxu0 %v4352
      %4455 = vmatprep.subr.mxu0 0.0
      %4456 = vmatpush1.msra.mxu0 0.0
      %4457 = vmatprep.subr.mxu0 0.0
      %4458 = vmatpush1.msra.mxu0 0.0
      %4459 = vmatprep.subr.mxu0 0.0
      %4460 = vmatpush1.msra.mxu0 0.0
      %4461 = vmatprep.subr.mxu0 0.0
      %4462 = vmatpush1.msra.mxu0 0.0
      %4463 = vmatprep.subr.mxu0 0.0
      %4464 = vmatpush1.msra.mxu0 0.0
      %4465 = vmatprep.subr.mxu0 0.0
      %4466 = vmatpush1.msra.mxu0 0.0
      %4467 = vmatprep.subr.mxu0 0.0
      %4468 = vmatpush1.msra.mxu0 0.0
      %4469 = vmatprep.subr.mxu0 0.0
      %4470 = vmatpush1.msra.mxu0 0.0
      %4471 = vmatprep.subr.mxu0 0.0
      %4472 = vmatpush1.msra.mxu0 0.0
      %4473 = vmatprep.subr.mxu0 0.0
      %4474 = vmatpush1.msra.mxu0 0.0
      %4475 = vmatprep.subr.mxu0 0.0
      %4476 = vmatpush1.msra.mxu0 0.0
      %4477 = vmatprep.subr.mxu0 0.0
      %4478 = vmatpush1.msra.mxu0 0.0
      %4479 = vmatprep.subr.mxu0 0.0
      %4480 = vmatpush1.msra.mxu0 0.0
      %4481 = vmatprep.subr.mxu0 0.0
      %4482 = vmatpush1.msra.mxu0 0.0
      %4483 = vmatprep.subr.mxu0 0.0
      %4484 = vmatpush1.msra.mxu0 0.0
      %4485 = vmatprep.subr.mxu0 0.0
      %4486 = vmatpush1.msra.mxu0 0.0
      %4487 = vmatprep.subr.mxu0 0.0
      %4488 = vmatpush1.msra.mxu0 0.0
      %4489 = vmatprep.subr.mxu0 0.0
      %4490 = vmatpush1.msra.mxu0 0.0
      %4491 = vmatprep.subr.mxu0 0.0
      %4492 = vmatpush1.msra.mxu0 0.0
      %4493 = vmatprep.subr.mxu0 0.0
      %4494 = vmatpush1.msra.mxu0 0.0
      %4495 = vmatprep.subr.mxu0 0.0
      %4496 = vmatpush1.msra.mxu0 0.0
      %4497 = vmatprep.subr.mxu0 0.0
      %4498 = vmatpush1.msra.mxu0 0.0
      %4499 = vmatprep.subr.mxu0 0.0
      %4500 = vmatpush1.msra.mxu0 0.0
      %4501 = vmatprep.subr.mxu0 0.0
      %4502 = vmatpush1.msra.mxu0 0.0
      %4503 = vmatprep.mubr.f32.mxu0 0.0
      %4504 = vmatmul.mubr.f32.gmra.mrb[0].mxu0 %v4437
      %v4505 = vpop.f32.mrb[0].mxu0
      %v4506 = vadd.f32 %v4433, %v4505
      %v4507 = vpop.f32.mrb[0].mxu0
      %4508 = vdwg.mxu0
      %v4509 = vld [vmem:[#allocation3 + $0x2] sm:$0x1]
      %v4510 = vld [vmem:[%s5 + $0x80] sm:$0xff]
      %v4511 = vld [vmem:[%s5 + $0x88] sm:$0xff]
      %v4512 = vld [vmem:[%s5 + $0x90] sm:$0xff]
      %v4513 = vld [vmem:[%s5 + $0x98] sm:$0xff]
      %v4514 = vld [vmem:[%s5 + $0xa0] sm:$0xff]
      %v4515 = vld [vmem:[%s5 + $0xa8] sm:$0xff]
      %v4516 = vld [vmem:[%s5 + $0xb0] sm:$0xff]
      %v4517 = vld [vmem:[%s5 + $0xb8] sm:$0xff]
      %v4519 = vsel %vm4362, %v4509, 0
      %4521 = vmatprep.subr.mxu0 0.0
      %4522 = vmatpush1.msra.mxu0 %v4510
      %4523 = vmatprep.subr.mxu0 0.0
      %4524 = vmatpush1.msra.mxu0 %v4511
      %4525 = vmatprep.subr.mxu0 0.0
      %4526 = vmatpush1.msra.mxu0 %v4512
      %4527 = vmatprep.subr.mxu0 0.0
      %4528 = vmatpush1.msra.mxu0 %v4513
      %4529 = vmatprep.subr.mxu0 0.0
      %4530 = vmatpush1.msra.mxu0 %v4514
      %4531 = vmatprep.subr.mxu0 0.0
      %4532 = vmatpush1.msra.mxu0 %v4515
      %4533 = vmatprep.subr.mxu0 0.0
      %4534 = vmatpush1.msra.mxu0 %v4516
      %4535 = vmatprep.subr.mxu0 0.0
      %4536 = vmatpush1.msra.mxu0 %v4517
      %4537 = vmatprep.subr.mxu0 0.0
      %4538 = vmatpush1.msra.mxu0 0.0
      %4539 = vmatprep.subr.mxu0 0.0
      %4540 = vmatpush1.msra.mxu0 0.0
      %4541 = vmatprep.subr.mxu0 0.0
      %4542 = vmatpush1.msra.mxu0 0.0
      %4543 = vmatprep.subr.mxu0 0.0
      %4544 = vmatpush1.msra.mxu0 0.0
      %4545 = vmatprep.subr.mxu0 0.0
      %4546 = vmatpush1.msra.mxu0 0.0
      %4547 = vmatprep.subr.mxu0 0.0
      %4548 = vmatpush1.msra.mxu0 0.0
      %4549 = vmatprep.subr.mxu0 0.0
      %4550 = vmatpush1.msra.mxu0 0.0
      %4551 = vmatprep.subr.mxu0 0.0
      %4552 = vmatpush1.msra.mxu0 0.0
      %4553 = vmatprep.subr.mxu0 0.0
      %4554 = vmatpush1.msra.mxu0 0.0
      %4555 = vmatprep.subr.mxu0 0.0
      %4556 = vmatpush1.msra.mxu0 0.0
      %4557 = vmatprep.subr.mxu0 0.0
      %4558 = vmatpush1.msra.mxu0 0.0
      %4559 = vmatprep.subr.mxu0 0.0
      %4560 = vmatpush1.msra.mxu0 0.0
      %4561 = vmatprep.subr.mxu0 0.0
      %4562 = vmatpush1.msra.mxu0 0.0
      %4563 = vmatprep.subr.mxu0 0.0
      %4564 = vmatpush1.msra.mxu0 0.0
      %4565 = vmatprep.subr.mxu0 0.0
      %4566 = vmatpush1.msra.mxu0 0.0
      %4567 = vmatprep.subr.mxu0 0.0
      %4568 = vmatpush1.msra.mxu0 0.0
      %4569 = vmatprep.subr.mxu0 0.0
      %4570 = vmatpush1.msra.mxu0 0.0
      %4571 = vmatprep.subr.mxu0 0.0
      %4572 = vmatpush1.msra.mxu0 0.0
      %4573 = vmatprep.subr.mxu0 0.0
      %4574 = vmatpush1.msra.mxu0 0.0
      %4575 = vmatprep.subr.mxu0 0.0
      %4576 = vmatpush1.msra.mxu0 0.0
      %4577 = vmatprep.subr.mxu0 0.0
      %4578 = vmatpush1.msra.mxu0 0.0
      %4579 = vmatprep.subr.mxu0 0.0
      %4580 = vmatpush1.msra.mxu0 0.0
      %4581 = vmatprep.subr.mxu0 0.0
      %4582 = vmatpush1.msra.mxu0 0.0
      %4583 = vmatprep.subr.mxu0 0.0
      %4584 = vmatpush1.msra.mxu0 0.0
      %4585 = vmatprep.mubr.f32.mxu0 0.0
      %4586 = vmatmul.mubr.f32.gmra.mrb[0].mxu0 %v4519
      %v4587 = vpop.f32.mrb[0].mxu0
      %v4588 = vadd.f32 0.0, %v4587
      %v4589 = vpop.f32.mrb[0].mxu0
      %4590 = vdwg.mxu0
      %v4591 = vadd.f32 %v4506, %v4588
      %v4592 = vld [vmem:[#allocation3 + $0x3] sm:$0x1]
      %v4593 = vld [vmem:[%s5 + $0xc0] sm:$0xff]
      %v4594 = vld [vmem:[%s5 + $0xc8] sm:$0xff]
      %v4595 = vld [vmem:[%s5 + $0xd0] sm:$0xff]
      %v4596 = vld [vmem:[%s5 + $0xd8] sm:$0xff]
      %v4597 = vld [vmem:[%s5 + $0xe0] sm:$0xff]
      %v4598 = vld [vmem:[%s5 + $0xe8] sm:$0xff]
      %v4599 = vld [vmem:[%s5 + $0xf0] sm:$0xff]
      %v4600 = vld [vmem:[%s5 + $0xf8] sm:$0xff]
      %v4602 = vsel %vm4362, %v4592, 0
      %4604 = vmatprep.subr.mxu0 0.0
      %4605 = vmatpush1.msra.mxu0 %v4593
      %4606 = vmatprep.subr.mxu0 0.0
      %4607 = vmatpush1.msra.mxu0 %v4594
      %4608 = vmatprep.subr.mxu0 0.0
      %4609 = vmatpush1.msra.mxu0 %v4595
      %4610 = vmatprep.subr.mxu0 0.0
      %4611 = vmatpush1.msra.mxu0 %v4596
      %4612 = vmatprep.subr.mxu0 0.0
      %4613 = vmatpush1.msra.mxu0 %v4597
      %4614 = vmatprep.subr.mxu0 0.0
      %4615 = vmatpush1.msra.mxu0 %v4598
      %4616 = vmatprep.subr.mxu0 0.0
      %4617 = vmatpush1.msra.mxu0 %v4599
      %4618 = vmatprep.subr.mxu0 0.0
      %4619 = vmatpush1.msra.mxu0 %v4600
      %4620 = vmatprep.subr.mxu0 0.0
      %4621 = vmatpush1.msra.mxu0 0.0
      %4622 = vmatprep.subr.mxu0 0.0
      %4623 = vmatpush1.msra.mxu0 0.0
      %4624 = vmatprep.subr.mxu0 0.0
      %4625 = vmatpush1.msra.mxu0 0.0
      %4626 = vmatprep.subr.mxu0 0.0
      %4627 = vmatpush1.msra.mxu0 0.0
      %4628 = vmatprep.subr.mxu0 0.0
      %4629 = vmatpush1.msra.mxu0 0.0
      %4630 = vmatprep.subr.mxu0 0.0
      %4631 = vmatpush1.msra.mxu0 0.0
      %4632 = vmatprep.subr.mxu0 0.0
      %4633 = vmatpush1.msra.mxu0 0.0
      %4634 = vmatprep.subr.mxu0 0.0
      %4635 = vmatpush1.msra.mxu0 0.0
      %4636 = vmatprep.subr.mxu0 0.0
      %4637 = vmatpush1.msra.mxu0 0.0
      %4638 = vmatprep.subr.mxu0 0.0
      %4639 = vmatpush1.msra.mxu0 0.0
      %4640 = vmatprep.subr.mxu0 0.0
      %4641 = vmatpush1.msra.mxu0 0.0
      %4642 = vmatprep.subr.mxu0 0.0
      %4643 = vmatpush1.msra.mxu0 0.0
      %4644 = vmatprep.subr.mxu0 0.0
      %4645 = vmatpush1.msra.mxu0 0.0
      %4646 = vmatprep.subr.mxu0 0.0
      %4647 = vmatpush1.msra.mxu0 0.0
      %4648 = vmatprep.subr.mxu0 0.0
      %4649 = vmatpush1.msra.mxu0 0.0
      %4650 = vmatprep.subr.mxu0 0.0
      %4651 = vmatpush1.msra.mxu0 0.0
      %4652 = vmatprep.subr.mxu0 0.0
      %4653 = vmatpush1.msra.mxu0 0.0
      %4654 = vmatprep.subr.mxu0 0.0
      %4655 = vmatpush1.msra.mxu0 0.0
      %4656 = vmatprep.subr.mxu0 0.0
      %4657 = vmatpush1.msra.mxu0 0.0
      %4658 = vmatprep.subr.mxu0 0.0
      %4659 = vmatpush1.msra.mxu0 0.0
      %4660 = vmatprep.subr.mxu0 0.0
      %4661 = vmatpush1.msra.mxu0 0.0
      %4662 = vmatprep.subr.mxu0 0.0
      %4663 = vmatpush1.msra.mxu0 0.0
      %4664 = vmatprep.subr.mxu0 0.0
      %4665 = vmatpush1.msra.mxu0 0.0
      %4666 = vmatprep.subr.mxu0 0.0
      %4667 = vmatpush1.msra.mxu0 0.0
      %4668 = vmatprep.mubr.f32.mxu0 0.0
      %4669 = vmatmul.mubr.f32.gmra.mrb[0].mxu0 %v4602
      %v4670 = vpop.f32.mrb[0].mxu0
      %v4671 = vadd.f32 0.0, %v4670
      %v4672 = vpop.f32.mrb[0].mxu0
      %4673 = vdwg.mxu0
      %v4674 = vadd.f32 %v4591, %v4671
      %v4675 = vld [vmem:[#allocation3 + $0x4] sm:$0x1]
      %v4676 = vld [vmem:[%s5 + $0x100] sm:$0xff]
      %v4677 = vld [vmem:[%s5 + $0x108] sm:$0xff]
      %v4678 = vld [vmem:[%s5 + $0x110] sm:$0xff]
      %v4679 = vld [vmem:[%s5 + $0x118] sm:$0xff]
      %v4680 = vld [vmem:[%s5 + $0x120] sm:$0xff]
      %v4681 = vld [vmem:[%s5 + $0x128] sm:$0xff]
      %v4682 = vld [vmem:[%s5 + $0x130] sm:$0xff]
      %v4683 = vld [vmem:[%s5 + $0x138] sm:$0xff]
      %v4685 = vsel %vm4362, %v4675, 0
      %4687 = vmatprep.subr.mxu0 0.0
      %4688 = vmatpush1.msra.mxu0 %v4676
      %4689 = vmatprep.subr.mxu0 0.0
      %4690 = vmatpush1.msra.mxu0 %v4677
      %4691 = vmatprep.subr.mxu0 0.0
      %4692 = vmatpush1.msra.mxu0 %v4678
      %4693 = vmatprep.subr.mxu0 0.0
      %4694 = vmatpush1.msra.mxu0 %v4679
      %4695 = vmatprep.subr.mxu0 0.0
      %4696 = vmatpush1.msra.mxu0 %v4680
      %4697 = vmatprep.subr.mxu0 0.0
      %4698 = vmatpush1.msra.mxu0 %v4681
      %4699 = vmatprep.subr.mxu0 0.0
      %4700 = vmatpush1.msra.mxu0 %v4682
      %4701 = vmatprep.subr.mxu0 0.0
      %4702 = vmatpush1.msra.mxu0 %v4683
      %4703 = vmatprep.subr.mxu0 0.0
      %4704 = vmatpush1.msra.mxu0 0.0
      %4705 = vmatprep.subr.mxu0 0.0
      %4706 = vmatpush1.msra.mxu0 0.0
      %4707 = vmatprep.subr.mxu0 0.0
      %4708 = vmatpush1.msra.mxu0 0.0
      %4709 = vmatprep.subr.mxu0 0.0
      %4710 = vmatpush1.msra.mxu0 0.0
      %4711 = vmatprep.subr.mxu0 0.0
      %4712 = vmatpush1.msra.mxu0 0.0
      %4713 = vmatprep.subr.mxu0 0.0
      %4714 = vmatpush1.msra.mxu0 0.0
      %4715 = vmatprep.subr.mxu0 0.0
      %4716 = vmatpush1.msra.mxu0 0.0
      %4717 = vmatprep.subr.mxu0 0.0
      %4718 = vmatpush1.msra.mxu0 0.0
      %4719 = vmatprep.subr.mxu0 0.0
      %4720 = vmatpush1.msra.mxu0 0.0
      %4721 = vmatprep.subr.mxu0 0.0
      %4722 = vmatpush1.msra.mxu0 0.0
      %4723 = vmatprep.subr.mxu0 0.0
      %4724 = vmatpush1.msra.mxu0 0.0
      %4725 = vmatprep.subr.mxu0 0.0
      %4726 = vmatpush1.msra.mxu0 0.0
      %4727 = vmatprep.subr.mxu0 0.0
      %4728 = vmatpush1.msra.mxu0 0.0
      %4729 = vmatprep.subr.mxu0 0.0
      %4730 = vmatpush1.msra.mxu0 0.0
      %4731 = vmatprep.subr.mxu0 0.0
      %4732 = vmatpush1.msra.mxu0 0.0
      %4733 = vmatprep.subr.mxu0 0.0
      %4734 = vmatpush1.msra.mxu0 0.0
      %4735 = vmatprep.subr.mxu0 0.0
      %4736 = vmatpush1.msra.mxu0 0.0
      %4737 = vmatprep.subr.mxu0 0.0
      %4738 = vmatpush1.msra.mxu0 0.0
      %4739 = vmatprep.subr.mxu0 0.0
      %4740 = vmatpush1.msra.mxu0 0.0
      %4741 = vmatprep.subr.mxu0 0.0
      %4742 = vmatpush1.msra.mxu0 0.0
      %4743 = vmatprep.subr.mxu0 0.0
      %4744 = vmatpush1.msra.mxu0 0.0
      %4745 = vmatprep.subr.mxu0 0.0
      %4746 = vmatpush1.msra.mxu0 0.0
      %4747 = vmatprep.subr.mxu0 0.0
      %4748 = vmatpush1.msra.mxu0 0.0
      %4749 = vmatprep.subr.mxu0 0.0
      %4750 = vmatpush1.msra.mxu0 0.0
      %4751 = vmatprep.mubr.f32.mxu0 0.0
      %4752 = vmatmul.mubr.f32.gmra.mrb[0].mxu0 %v4685
      %v4753 = vpop.f32.mrb[0].mxu0
      %v4754 = vadd.f32 0.0, %v4753
      %v4755 = vpop.f32.mrb[0].mxu0
      %4756 = vdwg.mxu0
      %v4757 = vadd.f32 %v4674, %v4754
      %v4758 = vld [vmem:[#allocation3 + $0x5] sm:$0x1]
      %v4759 = vld [vmem:[%s5 + $0x140] sm:$0xff]
      %v4760 = vld [vmem:[%s5 + $0x148] sm:$0xff]
      %v4761 = vld [vmem:[%s5 + $0x150] sm:$0xff]
      %v4762 = vld [vmem:[%s5 + $0x158] sm:$0xff]
      %v4763 = vld [vmem:[%s5 + $0x160] sm:$0xff]
      %v4764 = vld [vmem:[%s5 + $0x168] sm:$0xff]
      %v4765 = vld [vmem:[%s5 + $0x170] sm:$0xff]
      %v4766 = vld [vmem:[%s5 + $0x178] sm:$0xff]
      %v4768 = vsel %vm4362, %v4758, 0
      %4770 = vmatprep.subr.mxu0 0.0
      %4771 = vmatpush1.msra.mxu0 %v4759
      %4772 = vmatprep.subr.mxu0 0.0
      %4773 = vmatpush1.msra.mxu0 %v4760
      %4774 = vmatprep.subr.mxu0 0.0
      %4775 = vmatpush1.msra.mxu0 %v4761
      %4776 = vmatprep.subr.mxu0 0.0
      %4777 = vmatpush1.msra.mxu0 %v4762
      %4778 = vmatprep.subr.mxu0 0.0
      %4779 = vmatpush1.msra.mxu0 %v4763
      %4780 = vmatprep.subr.mxu0 0.0
      %4781 = vmatpush1.msra.mxu0 %v4764
      %4782 = vmatprep.subr.mxu0 0.0
      %4783 = vmatpush1.msra.mxu0 %v4765
      %4784 = vmatprep.subr.mxu0 0.0
      %4785 = vmatpush1.msra.mxu0 %v4766
      %4786 = vmatprep.subr.mxu0 0.0
      %4787 = vmatpush1.msra.mxu0 0.0
      %4788 = vmatprep.subr.mxu0 0.0
      %4789 = vmatpush1.msra.mxu0 0.0
      %4790 = vmatprep.subr.mxu0 0.0
      %4791 = vmatpush1.msra.mxu0 0.0
      %4792 = vmatprep.subr.mxu0 0.0
      %4793 = vmatpush1.msra.mxu0 0.0
      %4794 = vmatprep.subr.mxu0 0.0
      %4795 = vmatpush1.msra.mxu0 0.0
      %4796 = vmatprep.subr.mxu0 0.0
      %4797 = vmatpush1.msra.mxu0 0.0
      %4798 = vmatprep.subr.mxu0 0.0
      %4799 = vmatpush1.msra.mxu0 0.0
      %4800 = vmatprep.subr.mxu0 0.0
      %4801 = vmatpush1.msra.mxu0 0.0
      %4802 = vmatprep.subr.mxu0 0.0
      %4803 = vmatpush1.msra.mxu0 0.0
      %4804 = vmatprep.subr.mxu0 0.0
      %4805 = vmatpush1.msra.mxu0 0.0
      %4806 = vmatprep.subr.mxu0 0.0
      %4807 = vmatpush1.msra.mxu0 0.0
      %4808 = vmatprep.subr.mxu0 0.0
      %4809 = vmatpush1.msra.mxu0 0.0
      %4810 = vmatprep.subr.mxu0 0.0
      %4811 = vmatpush1.msra.mxu0 0.0
      %4812 = vmatprep.subr.mxu0 0.0
      %4813 = vmatpush1.msra.mxu0 0.0
      %4814 = vmatprep.subr.mxu0 0.0
      %4815 = vmatpush1.msra.mxu0 0.0
      %4816 = vmatprep.subr.mxu0 0.0
      %4817 = vmatpush1.msra.mxu0 0.0
      %4818 = vmatprep.subr.mxu0 0.0
      %4819 = vmatpush1.msra.mxu0 0.0
      %4820 = vmatprep.subr.mxu0 0.0
      %4821 = vmatpush1.msra.mxu0 0.0
      %4822 = vmatprep.subr.mxu0 0.0
      %4823 = vmatpush1.msra.mxu0 0.0
      %4824 = vmatprep.subr.mxu0 0.0
      %4825 = vmatpush1.msra.mxu0 0.0
      %4826 = vmatprep.subr.mxu0 0.0
      %4827 = vmatpush1.msra.mxu0 0.0
      %4828 = vmatprep.subr.mxu0 0.0
      %4829 = vmatpush1.msra.mxu0 0.0
      %4830 = vmatprep.subr.mxu0 0.0
      %4831 = vmatpush1.msra.mxu0 0.0
      %4832 = vmatprep.subr.mxu0 0.0
      %4833 = vmatpush1.msra.mxu0 0.0
      %4834 = vmatprep.mubr.f32.mxu0 0.0
      %4835 = vmatmul.mubr.f32.gmra.mrb[0].mxu0 %v4768
      %v4836 = vpop.f32.mrb[0].mxu0
      %v4837 = vadd.f32 0.0, %v4836
      %v4838 = vpop.f32.mrb[0].mxu0
      %4839 = vdwg.mxu0
      %v4840 = vadd.f32 %v4757, %v4837
      %v4841 = vld [vmem:[#allocation3 + $0x6] sm:$0x1]
      %v4842 = vld [vmem:[%s5 + $0x180] sm:$0xff]
      %v4843 = vld [vmem:[%s5 + $0x188] sm:$0xff]
      %v4844 = vld [vmem:[%s5 + $0x190] sm:$0xff]
      %v4845 = vld [vmem:[%s5 + $0x198] sm:$0xff]
      %v4846 = vld [vmem:[%s5 + $0x1a0] sm:$0xff]
      %v4847 = vld [vmem:[%s5 + $0x1a8] sm:$0xff]
      %v4848 = vld [vmem:[%s5 + $0x1b0] sm:$0xff]
      %v4849 = vld [vmem:[%s5 + $0x1b8] sm:$0xff]
      %v4851 = vsel %vm4362, %v4841, 0
      %4853 = vmatprep.subr.mxu0 0.0
      %4854 = vmatpush1.msra.mxu0 %v4842
      %4855 = vmatprep.subr.mxu0 0.0
      %4856 = vmatpush1.msra.mxu0 %v4843
      %4857 = vmatprep.subr.mxu0 0.0
      %4858 = vmatpush1.msra.mxu0 %v4844
      %4859 = vmatprep.subr.mxu0 0.0
      %4860 = vmatpush1.msra.mxu0 %v4845
      %4861 = vmatprep.subr.mxu0 0.0
      %4862 = vmatpush1.msra.mxu0 %v4846
      %4863 = vmatprep.subr.mxu0 0.0
      %4864 = vmatpush1.msra.mxu0 %v4847
      %4865 = vmatprep.subr.mxu0 0.0
      %4866 = vmatpush1.msra.mxu0 %v4848
      %4867 = vmatprep.subr.mxu0 0.0
      %4868 = vmatpush1.msra.mxu0 %v4849
      %4869 = vmatprep.subr.mxu0 0.0
      %4870 = vmatpush1.msra.mxu0 0.0
      %4871 = vmatprep.subr.mxu0 0.0
      %4872 = vmatpush1.msra.mxu0 0.0
      %4873 = vmatprep.subr.mxu0 0.0
      %4874 = vmatpush1.msra.mxu0 0.0
      %4875 = vmatprep.subr.mxu0 0.0
      %4876 = vmatpush1.msra.mxu0 0.0
      %4877 = vmatprep.subr.mxu0 0.0
      %4878 = vmatpush1.msra.mxu0 0.0
      %4879 = vmatprep.subr.mxu0 0.0
      %4880 = vmatpush1.msra.mxu0 0.0
      %4881 = vmatprep.subr.mxu0 0.0
      %4882 = vmatpush1.msra.mxu0 0.0
      %4883 = vmatprep.subr.mxu0 0.0
      %4884 = vmatpush1.msra.mxu0 0.0
      %4885 = vmatprep.subr.mxu0 0.0
      %4886 = vmatpush1.msra.mxu0 0.0
      %4887 = vmatprep.subr.mxu0 0.0
      %4888 = vmatpush1.msra.mxu0 0.0
      %4889 = vmatprep.subr.mxu0 0.0
      %4890 = vmatpush1.msra.mxu0 0.0
      %4891 = vmatprep.subr.mxu0 0.0
      %4892 = vmatpush1.msra.mxu0 0.0
      %4893 = vmatprep.subr.mxu0 0.0
      %4894 = vmatpush1.msra.mxu0 0.0
      %4895 = vmatprep.subr.mxu0 0.0
      %4896 = vmatpush1.msra.mxu0 0.0
      %4897 = vmatprep.subr.mxu0 0.0
      %4898 = vmatpush1.msra.mxu0 0.0
      %4899 = vmatprep.subr.mxu0 0.0
      %4900 = vmatpush1.msra.mxu0 0.0
      %4901 = vmatprep.subr.mxu0 0.0
      %4902 = vmatpush1.msra.mxu0 0.0
      %4903 = vmatprep.subr.mxu0 0.0
      %4904 = vmatpush1.msra.mxu0 0.0
      %4905 = vmatprep.subr.mxu0 0.0
      %4906 = vmatpush1.msra.mxu0 0.0
      %4907 = vmatprep.subr.mxu0 0.0
      %4908 = vmatpush1.msra.mxu0 0.0
      %4909 = vmatprep.subr.mxu0 0.0
      %4910 = vmatpush1.msra.mxu0 0.0
      %4911 = vmatprep.subr.mxu0 0.0
      %4912 = vmatpush1.msra.mxu0 0.0
      %4913 = vmatprep.subr.mxu0 0.0
      %4914 = vmatpush1.msra.mxu0 0.0
      %4915 = vmatprep.subr.mxu0 0.0
      %4916 = vmatpush1.msra.mxu0 0.0
      %4917 = vmatprep.mubr.f32.mxu0 0.0
      %4918 = vmatmul.mubr.f32.gmra.mrb[0].mxu0 %v4851
      %v4919 = vpop.f32.mrb[0].mxu0
      %v4920 = vadd.f32 0.0, %v4919
      %v4921 = vpop.f32.mrb[0].mxu0
      %4922 = vdwg.mxu0
      %v4923 = vadd.f32 %v4840, %v4920
      %v4924 = vld [vmem:[#allocation3 + $0x7] sm:$0x1]
      %v4925 = vld [vmem:[%s5 + $0x1c0] sm:$0xff]
      %v4926 = vld [vmem:[%s5 + $0x1c8] sm:$0xff]
      %v4927 = vld [vmem:[%s5 + $0x1d0] sm:$0xff]
      %v4928 = vld [vmem:[%s5 + $0x1d8] sm:$0xff]
      %v4929 = vld [vmem:[%s5 + $0x1e0] sm:$0xff]
      %v4930 = vld [vmem:[%s5 + $0x1e8] sm:$0xff]
      %v4931 = vld [vmem:[%s5 + $0x1f0] sm:$0xff]
      %v4932 = vld [vmem:[%s5 + $0x1f8] sm:$0xff]
      %v4934 = vsel %vm4362, %v4924, 0
      %4936 = vmatprep.subr.mxu0 0.0
      %4937 = vmatpush1.msra.mxu0 %v4925
      %4938 = vmatprep.subr.mxu0 0.0
      %4939 = vmatpush1.msra.mxu0 %v4926
      %4940 = vmatprep.subr.mxu0 0.0
      %4941 = vmatpush1.msra.mxu0 %v4927
      %4942 = vmatprep.subr.mxu0 0.0
      %4943 = vmatpush1.msra.mxu0 %v4928
      %4944 = vmatprep.subr.mxu0 0.0
      %4945 = vmatpush1.msra.mxu0 %v4929
      %4946 = vmatprep.subr.mxu0 0.0
      %4947 = vmatpush1.msra.mxu0 %v4930
      %4948 = vmatprep.subr.mxu0 0.0
      %4949 = vmatpush1.msra.mxu0 %v4931
      %4950 = vmatprep.subr.mxu0 0.0
      %4951 = vmatpush1.msra.mxu0 %v4932
      %4952 = vmatprep.subr.mxu0 0.0
      %4953 = vmatpush1.msra.mxu0 0.0
      %4954 = vmatprep.subr.mxu0 0.0
      %4955 = vmatpush1.msra.mxu0 0.0
      %4956 = vmatprep.subr.mxu0 0.0
      %4957 = vmatpush1.msra.mxu0 0.0
      %4958 = vmatprep.subr.mxu0 0.0
      %4959 = vmatpush1.msra.mxu0 0.0
      %4960 = vmatprep.subr.mxu0 0.0
      %4961 = vmatpush1.msra.mxu0 0.0
      %4962 = vmatprep.subr.mxu0 0.0
      %4963 = vmatpush1.msra.mxu0 0.0
      %4964 = vmatprep.subr.mxu0 0.0
      %4965 = vmatpush1.msra.mxu0 0.0
      %4966 = vmatprep.subr.mxu0 0.0
      %4967 = vmatpush1.msra.mxu0 0.0
      %4968 = vmatprep.subr.mxu0 0.0
      %4969 = vmatpush1.msra.mxu0 0.0
      %4970 = vmatprep.subr.mxu0 0.0
      %4971 = vmatpush1.msra.mxu0 0.0
      %4972 = vmatprep.subr.mxu0 0.0
      %4973 = vmatpush1.msra.mxu0 0.0
      %4974 = vmatprep.subr.mxu0 0.0
      %4975 = vmatpush1.msra.mxu0 0.0
      %4976 = vmatprep.subr.mxu0 0.0
      %4977 = vmatpush1.msra.mxu0 0.0
      %4978 = vmatprep.subr.mxu0 0.0
      %4979 = vmatpush1.msra.mxu0 0.0
      %4980 = vmatprep.subr.mxu0 0.0
      %4981 = vmatpush1.msra.mxu0 0.0
      %4982 = vmatprep.subr.mxu0 0.0
      %4983 = vmatpush1.msra.mxu0 0.0
      %4984 = vmatprep.subr.mxu0 0.0
      %4985 = vmatpush1.msra.mxu0 0.0
      %4986 = vmatprep.subr.mxu0 0.0
      %4987 = vmatpush1.msra.mxu0 0.0
      %4988 = vmatprep.subr.mxu0 0.0
      %4989 = vmatpush1.msra.mxu0 0.0
      %4990 = vmatprep.subr.mxu0 0.0
      %4991 = vmatpush1.msra.mxu0 0.0
      %4992 = vmatprep.subr.mxu0 0.0
      %4993 = vmatpush1.msra.mxu0 0.0
      %4994 = vmatprep.subr.mxu0 0.0
      %4995 = vmatpush1.msra.mxu0 0.0
      %4996 = vmatprep.subr.mxu0 0.0
      %4997 = vmatpush1.msra.mxu0 0.0
      %4998 = vmatprep.subr.mxu0 0.0
      %4999 = vmatpush1.msra.mxu0 0.0
      %5000 = vmatprep.mubr.f32.mxu0 0.0
      %5001 = vmatmul.mubr.f32.gmra.mrb[0].mxu0 %v4934
      %v5002 = vpop.f32.mrb[0].mxu0
      %v5003 = vadd.f32 0.0, %v5002
      %v5004 = vpop.f32.mrb[0].mxu0
      %5005 = vdwg.mxu0
      %v5006 = vadd.f32 %v4923, %v5003
      %v5007 = vld [vmem:[#allocation3 + $0x8] sm:$0x1]
      %v5008 = vld [vmem:[%s5 + $0x200] sm:$0xff]
      %v5009 = vld [vmem:[%s5 + $0x208] sm:$0xff]
      %v5010 = vld [vmem:[%s5 + $0x210] sm:$0xff]
      %v5011 = vld [vmem:[%s5 + $0x218] sm:$0xff]
      %v5012 = vld [vmem:[%s5 + $0x220] sm:$0xff]
      %v5013 = vld [vmem:[%s5 + $0x228] sm:$0xff]
      %v5014 = vld [vmem:[%s5 + $0x230] sm:$0xff]
      %v5015 = vld [vmem:[%s5 + $0x238] sm:$0xff]
      %v5017 = vsel %vm4362, %v5007, 0
      %5019 = vmatprep.subr.mxu0 0.0
      %5020 = vmatpush1.msra.mxu0 %v5008
      %5021 = vmatprep.subr.mxu0 0.0
      %5022 = vmatpush1.msra.mxu0 %v5009
      %5023 = vmatprep.subr.mxu0 0.0
      %5024 = vmatpush1.msra.mxu0 %v5010
      %5025 = vmatprep.subr.mxu0 0.0
      %5026 = vmatpush1.msra.mxu0 %v5011
      %5027 = vmatprep.subr.mxu0 0.0
      %5028 = vmatpush1.msra.mxu0 %v5012
      %5029 = vmatprep.subr.mxu0 0.0
      %5030 = vmatpush1.msra.mxu0 %v5013
      %5031 = vmatprep.subr.mxu0 0.0
      %5032 = vmatpush1.msra.mxu0 %v5014
      %5033 = vmatprep.subr.mxu0 0.0
      %5034 = vmatpush1.msra.mxu0 %v5015
      %5035 = vmatprep.subr.mxu0 0.0
      %5036 = vmatpush1.msra.mxu0 0.0
      %5037 = vmatprep.subr.mxu0 0.0
      %5038 = vmatpush1.msra.mxu0 0.0
      %5039 = vmatprep.subr.mxu0 0.0
      %5040 = vmatpush1.msra.mxu0 0.0
      %5041 = vmatprep.subr.mxu0 0.0
      %5042 = vmatpush1.msra.mxu0 0.0
      %5043 = vmatprep.subr.mxu0 0.0
      %5044 = vmatpush1.msra.mxu0 0.0
      %5045 = vmatprep.subr.mxu0 0.0
      %5046 = vmatpush1.msra.mxu0 0.0
      %5047 = vmatprep.subr.mxu0 0.0
      %5048 = vmatpush1.msra.mxu0 0.0
      %5049 = vmatprep.subr.mxu0 0.0
      %5050 = vmatpush1.msra.mxu0 0.0
      %5051 = vmatprep.subr.mxu0 0.0
      %5052 = vmatpush1.msra.mxu0 0.0
      %5053 = vmatprep.subr.mxu0 0.0
      %5054 = vmatpush1.msra.mxu0 0.0
      %5055 = vmatprep.subr.mxu0 0.0
      %5056 = vmatpush1.msra.mxu0 0.0
      %5057 = vmatprep.subr.mxu0 0.0
      %5058 = vmatpush1.msra.mxu0 0.0
      %5059 = vmatprep.subr.mxu0 0.0
      %5060 = vmatpush1.msra.mxu0 0.0
      %5061 = vmatprep.subr.mxu0 0.0
      %5062 = vmatpush1.msra.mxu0 0.0
      %5063 = vmatprep.subr.mxu0 0.0
      %5064 = vmatpush1.msra.mxu0 0.0
      %5065 = vmatprep.subr.mxu0 0.0
      %5066 = vmatpush1.msra.mxu0 0.0
      %5067 = vmatprep.subr.mxu0 0.0
      %5068 = vmatpush1.msra.mxu0 0.0
      %5069 = vmatprep.subr.mxu0 0.0
      %5070 = vmatpush1.msra.mxu0 0.0
      %5071 = vmatprep.subr.mxu0 0.0
      %5072 = vmatpush1.msra.mxu0 0.0
      %5073 = vmatprep.subr.mxu0 0.0
      %5074 = vmatpush1.msra.mxu0 0.0
      %5075 = vmatprep.subr.mxu0 0.0
      %5076 = vmatpush1.msra.mxu0 0.0
      %5077 = vmatprep.subr.mxu0 0.0
      %5078 = vmatpush1.msra.mxu0 0.0
      %5079 = vmatprep.subr.mxu0 0.0
      %5080 = vmatpush1.msra.mxu0 0.0
      %5081 = vmatprep.subr.mxu0 0.0
      %5082 = vmatpush1.msra.mxu0 0.0
      %5083 = vmatprep.mubr.f32.mxu0 0.0
      %5084 = vmatmul.mubr.f32.gmra.mrb[0].mxu0 %v5017
      %v5085 = vpop.f32.mrb[0].mxu0
      %v5086 = vadd.f32 0.0, %v5085
      %v5087 = vpop.f32.mrb[0].mxu0
      %5088 = vdwg.mxu0
      %v5089 = vadd.f32 %v5006, %v5086
      %v5090 = vadd.f32 %v5089, %v4342
      %v5091 = vmax.f32 %v5090, 0.0
      %v5092 = vld [vmem:[%s7] sm:$0xff]
      %v5093 = vld [vmem:[%s7 + $0x8] sm:$0xff]
      %v5094 = vld [vmem:[%s7 + $0x10] sm:$0xff]
      %v5095 = vld [vmem:[%s7 + $0x18] sm:$0xff]
      %v5096 = vld [vmem:[%s7 + $0x20] sm:$0xff]
      %v5097 = vld [vmem:[%s7 + $0x28] sm:$0xff]
      %v5098 = vld [vmem:[%s7 + $0x30] sm:$0xff]
      %v5099 = vld [vmem:[%s7 + $0x38] sm:$0xff]
      %v5100 = vld [vmem:[%s7 + $0x40] sm:$0xff]
      %v5101 = vld [vmem:[%s7 + $0x48] sm:$0xff]
      %v5102 = vld [vmem:[%s7 + $0x50] sm:$0xff]
      %v5103 = vld [vmem:[%s7 + $0x58] sm:$0xff]
      %v5104 = vld [vmem:[%s7 + $0x60] sm:$0xff]
      %v5105 = vld [vmem:[%s7 + $0x68] sm:$0xff]
      %v5106 = vld [vmem:[%s7 + $0x70] sm:$0xff]
      %v5107 = vld [vmem:[%s7 + $0x78] sm:$0xff]
      %v5108 = vld [vmem:[%s7 + $0x80] sm:$0xff]
      %v5109 = vld [vmem:[%s7 + $0x88] sm:$0xff]
      %v5110 = vld [vmem:[%s7 + $0x90] sm:$0xff]
      %v5111 = vld [vmem:[%s7 + $0x98] sm:$0xff]
      %v5112 = vld [vmem:[%s7 + $0xa0] sm:$0xff]
      %v5113 = vld [vmem:[%s7 + $0xa8] sm:$0xff]
      %v5114 = vld [vmem:[%s7 + $0xb0] sm:$0xff]
      %v5115 = vld [vmem:[%s7 + $0xb8] sm:$0xff]
      %v5116 = vld [vmem:[%s7 + $0xc0] sm:$0xff]
      %v5117 = vld [vmem:[%s7 + $0xc8] sm:$0xff]
      %v5118 = vld [vmem:[%s7 + $0xd0] sm:$0xff]
      %v5119 = vld [vmem:[%s7 + $0xd8] sm:$0xff]
      %v5120 = vld [vmem:[%s7 + $0xe0] sm:$0xff]
      %v5121 = vld [vmem:[%s7 + $0xe8] sm:$0xff]
      %v5122 = vld [vmem:[%s7 + $0xf0] sm:$0xff]
      %v5123 = vld [vmem:[%s7 + $0xf8] sm:$0xff]
      %v5125 = vsel %vm4362, %v5091, 0
      %5127 = vmatprep.subr.mxu0 %v5093
      %5128 = vmatpush1.msra.mxu0 %v5092
      %5129 = vmatprep.subr.mxu0 %v5097
      %5130 = vmatpush1.msra.mxu0 %v5096
      %5131 = vmatprep.subr.mxu0 %v5101
      %5132 = vmatpush1.msra.mxu0 %v5100
      %5133 = vmatprep.subr.mxu0 %v5105
      %5134 = vmatpush1.msra.mxu0 %v5104
      %5135 = vmatprep.subr.mxu0 %v5109
      %5136 = vmatpush1.msra.mxu0 %v5108
      %5137 = vmatprep.subr.mxu0 %v5113
      %5138 = vmatpush1.msra.mxu0 %v5112
      %5139 = vmatprep.subr.mxu0 %v5117
      %5140 = vmatpush1.msra.mxu0 %v5116
      %5141 = vmatprep.subr.mxu0 %v5121
      %5142 = vmatpush1.msra.mxu0 %v5120
      %5143 = vmatprep.subr.mxu0 0.0
      %5144 = vmatpush1.msra.mxu0 0.0
      %5145 = vmatprep.subr.mxu0 0.0
      %5146 = vmatpush1.msra.mxu0 0.0
      %5147 = vmatprep.subr.mxu0 0.0
      %5148 = vmatpush1.msra.mxu0 0.0
      %5149 = vmatprep.subr.mxu0 0.0
      %5150 = vmatpush1.msra.mxu0 0.0
      %5151 = vmatprep.subr.mxu0 0.0
      %5152 = vmatpush1.msra.mxu0 0.0
      %5153 = vmatprep.subr.mxu0 0.0
      %5154 = vmatpush1.msra.mxu0 0.0
      %5155 = vmatprep.subr.mxu0 0.0
      %5156 = vmatpush1.msra.mxu0 0.0
      %5157 = vmatprep.subr.mxu0 0.0
      %5158 = vmatpush1.msra.mxu0 0.0
      %5159 = vmatprep.subr.mxu0 0.0
      %5160 = vmatpush1.msra.mxu0 0.0
      %5161 = vmatprep.subr.mxu0 0.0
      %5162 = vmatpush1.msra.mxu0 0.0
      %5163 = vmatprep.subr.mxu0 0.0
      %5164 = vmatpush1.msra.mxu0 0.0
      %5165 = vmatprep.subr.mxu0 0.0
      %5166 = vmatpush1.msra.mxu0 0.0
      %5167 = vmatprep.subr.mxu0 0.0
      %5168 = vmatpush1.msra.mxu0 0.0
      %5169 = vmatprep.subr.mxu0 0.0
      %5170 = vmatpush1.msra.mxu0 0.0
      %5171 = vmatprep.subr.mxu0 0.0
      %5172 = vmatpush1.msra.mxu0 0.0
      %5173 = vmatprep.subr.mxu0 0.0
      %5174 = vmatpush1.msra.mxu0 0.0
      %5175 = vmatprep.subr.mxu0 0.0
      %5176 = vmatpush1.msra.mxu0 0.0
      %5177 = vmatprep.subr.mxu0 0.0
      %5178 = vmatpush1.msra.mxu0 0.0
      %5179 = vmatprep.subr.mxu0 0.0
      %5180 = vmatpush1.msra.mxu0 0.0
      %5181 = vmatprep.subr.mxu0 0.0
      %5182 = vmatpush1.msra.mxu0 0.0
      %5183 = vmatprep.subr.mxu0 0.0
      %5184 = vmatpush1.msra.mxu0 0.0
      %5185 = vmatprep.subr.mxu0 0.0
      %5186 = vmatpush1.msra.mxu0 0.0
      %5187 = vmatprep.subr.mxu0 0.0
      %5188 = vmatpush1.msra.mxu0 0.0
      %5189 = vmatprep.subr.mxu0 0.0
      %5190 = vmatpush1.msra.mxu0 0.0
      %5191 = vmatprep.mubr.f32.mxu0 0.0
      %5192 = vmatmul.mubr.f32.gmra.mrb[0].mxu0 %v5125
      %v5193 = vpop.f32.mrb[0].mxu0
      %v5194 = vadd.f32 0.0, %v5193
      %v5195 = vpop.f32.mrb[0].mxu0
      %v5196 = vadd.f32 0.0, %v5195
      %5197 = vdwg.mxu0
      %5198 = vmatprep.subr.mxu0 %v5095
      %5199 = vmatpush1.msra.mxu0 %v5094
      %5200 = vmatprep.subr.mxu0 %v5099
      %5201 = vmatpush1.msra.mxu0 %v5098
      %5202 = vmatprep.subr.mxu0 %v5103
      %5203 = vmatpush1.msra.mxu0 %v5102
      %5204 = vmatprep.subr.mxu0 %v5107
      %5205 = vmatpush1.msra.mxu0 %v5106
      %5206 = vmatprep.subr.mxu0 %v5111
      %5207 = vmatpush1.msra.mxu0 %v5110
      %5208 = vmatprep.subr.mxu0 %v5115
      %5209 = vmatpush1.msra.mxu0 %v5114
      %5210 = vmatprep.subr.mxu0 %v5119
      %5211 = vmatpush1.msra.mxu0 %v5118
      %5212 = vmatprep.subr.mxu0 %v5123
      %5213 = vmatpush1.msra.mxu0 %v5122
      %5214 = vmatprep.subr.mxu0 0.0
      %5215 = vmatpush1.msra.mxu0 0.0
      %5216 = vmatprep.subr.mxu0 0.0
      %5217 = vmatpush1.msra.mxu0 0.0
      %5218 = vmatprep.subr.mxu0 0.0
      %5219 = vmatpush1.msra.mxu0 0.0
      %5220 = vmatprep.subr.mxu0 0.0
      %5221 = vmatpush1.msra.mxu0 0.0
      %5222 = vmatprep.subr.mxu0 0.0
      %5223 = vmatpush1.msra.mxu0 0.0
      %5224 = vmatprep.subr.mxu0 0.0
      %5225 = vmatpush1.msra.mxu0 0.0
      %5226 = vmatprep.subr.mxu0 0.0
      %5227 = vmatpush1.msra.mxu0 0.0
      %5228 = vmatprep.subr.mxu0 0.0
      %5229 = vmatpush1.msra.mxu0 0.0
      %5230 = vmatprep.subr.mxu0 0.0
      %5231 = vmatpush1.msra.mxu0 0.0
      %5232 = vmatprep.subr.mxu0 0.0
      %5233 = vmatpush1.msra.mxu0 0.0
      %5234 = vmatprep.subr.mxu0 0.0
      %5235 = vmatpush1.msra.mxu0 0.0
      %5236 = vmatprep.subr.mxu0 0.0
      %5237 = vmatpush1.msra.mxu0 0.0
      %5238 = vmatprep.subr.mxu0 0.0
      %5239 = vmatpush1.msra.mxu0 0.0
      %5240 = vmatprep.subr.mxu0 0.0
      %5241 = vmatpush1.msra.mxu0 0.0
      %5242 = vmatprep.subr.mxu0 0.0
      %5243 = vmatpush1.msra.mxu0 0.0
      %5244 = vmatprep.subr.mxu0 0.0
      %5245 = vmatpush1.msra.mxu0 0.0
      %5246 = vmatprep.subr.mxu0 0.0
      %5247 = vmatpush1.msra.mxu0 0.0
      %5248 = vmatprep.subr.mxu0 0.0
      %5249 = vmatpush1.msra.mxu0 0.0
      %5250 = vmatprep.subr.mxu0 0.0
      %5251 = vmatpush1.msra.mxu0 0.0
      %5252 = vmatprep.subr.mxu0 0.0
      %5253 = vmatpush1.msra.mxu0 0.0
      %5254 = vmatprep.subr.mxu0 0.0
      %5255 = vmatpush1.msra.mxu0 0.0
      %5256 = vmatprep.subr.mxu0 0.0
      %5257 = vmatpush1.msra.mxu0 0.0
      %5258 = vmatprep.subr.mxu0 0.0
      %5259 = vmatpush1.msra.mxu0 0.0
      %5260 = vmatprep.subr.mxu0 0.0
      %5261 = vmatpush1.msra.mxu0 0.0
      %5262 = vmatprep.mubr.f32.mxu0 0.0
      %5263 = vmatmul.mubr.f32.gmra.mrb[0].mxu0 %v5125
      %v5264 = vpop.f32.mrb[0].mxu0
      %v5265 = vadd.f32 0.0, %v5264
      %v5266 = vpop.f32.mrb[0].mxu0
      %v5267 = vadd.f32 0.0, %v5266
      %5268 = vdwg.mxu0
      %v5273 = vcombine.low %v5194, %v5196
      %v5274 = vcombine.low %v5265, %v5267
      %v5276 = vunpack.c.l.s4 1966171168
      %v5277 = vunpack.c.0.s8 %v5276
      %v5278 = vlaneseq
      %v5279 = vshrl.u32 %v5278, 7
      %v5280 = vsub.s32 %v5277, %v5279
      %v5281 = vrot.slane %v5273, %v5280
      %v5283 = vunpack.c.l.s4 1966171168
      %v5284 = vunpack.c.0.s8 %v5283
      %v5285 = vlaneseq
      %v5286 = vshrl.u32 %v5285, 7
      %v5287 = vsub.s32 %v5284, %v5286
      %v5288 = vrot.slane %v5274, %v5287
      %v5289 = vcombine.low %v5281, %v5288
      %v5291 = vunpack.c.l.s4 1966171168
      %v5292 = vunpack.c.0.s8 %v5291
      %v5293 = vlaneseq
      %v5294 = vshrl.u32 %v5293, 7
      %v5295 = vsub.s32 %v5292, %v5294
      %v5296 = vrot.slane %v5289, %v5295
      %v5298 = vadd.f32 %v4343, %v5296
      %v5299 = vmax.f32 %v5298, 0.0
      %v5300 = vlaneseq
      %vm5301 = vcmp.ge.s32.totalorder %v5300, 0
      %vm5302 = vcmp.lt.s32.totalorder %v5300, 512
      %vm5303 = vmand %vm5301, %vm5302
      %5304 = vst.msk [vmem:[%s330] sm:$0xf] %vm5303, %v5299
      %p5305 = scmp.lt.s32.totalorder %s20, 1
      %s5306 = scalar_select %p5305, %s20, 1
      %s5307 = smul.addr %s5306, 4
      %s5308 = scalar_lea.vmem %s9, %s5307
      // Predicated region
      $region57: #{nature_cnn_forward.1} parent=55 // pred_check
        %p5309 = pneg %p232
      $region58: #{nature_cnn_forward.1} parent=55 // pred_check_branch
        %5311 = sbr.rel (%p5309) target = $region60
      $region59: #{nature_cnn_forward.1} parent=55 // pred_region
        _
      $region60: #{nature_cnn_forward.1} parent=55 // pred_fallthru
        _
    $region56: #{nature_cnn_forward.1} parent=5 // pred_fallthru
      _
    %p5312 = scmp.le.s32.totalorder 2, %s15
    // Predicated region
    $region61: #{nature_cnn_forward.1} parent=5 // pred_check
      %p5313 = pneg %p5312
    $region62: #{nature_cnn_forward.1} parent=5 // pred_check_branch
      %5315 = sbr.rel (%p5313) target = $region64
    $region63: #{nature_cnn_forward.1} parent=5 // pred_region
      %s5316 = ssub.s32 %s15, 2
      // Predicated region
      $region65: #{nature_cnn_forward.1} parent=63 // pred_check
        %p5317 = pneg %p238
      $region66: #{nature_cnn_forward.1} parent=63 // pred_check_branch
        %5319 = sbr.rel (%p5317) target = $region68
      $region67: #{nature_cnn_forward.1} parent=63 // pred_region
        %p5320 = scmp.lt.s32.totalorder %s21, 1
        %s5321 = scalar_select %p5320, %s21, 1
        %s5322 = smul.addr %s5321, 4
        %s5323 = scalar_lea.vmem %s9, %s5322
      $region68: #{nature_cnn_forward.1} parent=63 // pred_fallthru
        _
    $region64: #{nature_cnn_forward.1} parent=5 // pred_fallthru
      _
  $region6: #{nature_cnn_forward.1} parent=0 // loop_footer
    %s19 = sadd.s32 1, %s15
  $region7: #{nature_cnn_forward.1} parent=0 // loop_footer_branch
    %14 = sbr.rel target = $region3
  $region8: #{nature_cnn_forward.1} parent=0 // loop_exit
    _

</llo_original>
